<compile_context>
chip_gen: v6e
topology: v6e:2x2x1
jax: 0.10.0
libtpu: 0.0.40
codegen_flags: <defaults>
</compile_context>

<pallas_src>
import functools

import numpy as np
import jax
import jax.numpy as jnp
from jax.experimental import pallas as pl
from jax.experimental.pallas import tpu as pltpu


# --------------------------------------------------------------------------------------
# Pallas kernel: full InceptionB forward for one batch element, layout (C, H*W).
# --------------------------------------------------------------------------------------
def inception_b_kernel(x_ref,
                       w1a_ref, b1a_ref, k1_ref, b1b_ref,
                       w2a_ref, b2a_ref, k2b_ref, b2b_ref, k2c_ref, b2c_ref,
                       w3_ref, b3_ref,
                       sel_ref, masks_ref,
                       o_ref, *, H, W):
    f32 = jnp.float32
    HW = H * W
    x = x_ref[...].astype(f32)                       # (Cin, HW)
    sel = sel_ref[...]                               # (HW, HoWo) 0/1 stride-2 selection

    def relu6(t):
        return jnp.clip(t, 0.0, 6.0)

    def shift_lanes(t, s):
        # out[:, p] = t[:, p + s] with zero fill outside [0, HW)
        c = t.shape[0]
        if s == 0:
            return t
        if s > 0:
            return jnp.concatenate([t[:, s:], jnp.zeros((c, s), f32)], axis=1)
        return jnp.concatenate([jnp.zeros((c, -s), f32), t[:, :s]], axis=1)

    def taps(t):
        # 9 shifted copies of t plus their validity masks (precomputed on host).
        for dh in (-1, 0, 1):
            for dw in (-1, 0, 1):
                idx = (dh + 1) * 3 + (dw + 1)
                yield idx, masks_ref[idx], shift_lanes(t, dh * W + dw)

    def conv3x3_full(t, k_ref):
        # 3x3, stride 1, pad 1 conv of t:(Cin, HW) with k_ref:(9, Cout, Cin) -> (Cout, HW)
        acc = jnp.zeros((k_ref.shape[1], HW), f32)
        for idx, m, sh in taps(t):
            acc = acc + jnp.dot(k_ref[idx], sh * m, preferred_element_type=f32)
        return acc

    def maxpool3x3_full(t):
        # 3x3, stride 1, pad 1 max pool (implicit -inf padding), t:(C, HW) -> (C, HW)
        acc = jnp.full(t.shape, -1e30, f32)
        for _, m, sh in taps(t):
            acc = jnp.maximum(acc, jnp.where(m > 0.0, sh, -1e30))
        return acc

    def down(t):
        # stride-2 spatial downsample via exact 0/1 selection matmul: (C, HW) -> (C, HoWo)
        return jnp.dot(t, sel, preferred_element_type=f32)

    # ---- stream 1: 1x1 conv -> 3x3 stride-2 conv ------------------------------------
    t1 = relu6(jnp.dot(w1a_ref[...], x, preferred_element_type=f32) + b1a_ref[...])
    s1 = relu6(down(conv3x3_full(t1, k1_ref)) + b1b_ref[...])

    # ---- stream 2: 1x1 conv -> 3x3 conv -> 3x3 stride-2 conv ------------------------
    t2 = relu6(jnp.dot(w2a_ref[...], x, preferred_element_type=f32) + b2a_ref[...])
    u2 = relu6(conv3x3_full(t2, k2b_ref) + b2b_ref[...])
    s2 = relu6(down(conv3x3_full(u2, k2c_ref)) + b2c_ref[...])

    # ---- stream 3: 3x3 stride-2 maxpool -> 1x1 conv ---------------------------------
    mp = down(maxpool3x3_full(x))                                        # (Cin, HoWo)
    s3 = relu6(jnp.dot(w3_ref[...], mp, preferred_element_type=f32) + b3_ref[...])

    # ---- concat along channels -------------------------------------------------------
    mid = s1.shape[0]
    o_ref[0:mid, :] = s1.astype(o_ref.dtype)
    o_ref[mid:2 * mid, :] = s2.astype(o_ref.dtype)
    o_ref[2 * mid:4 * mid, :] = s3.astype(o_ref.dtype)


# --------------------------------------------------------------------------------------
# Host-side structural helpers (built once, tiny).
# --------------------------------------------------------------------------------------
def downsample_select_matrix(H, W):
    """0/1 matrix S (HW, HoWo) with S[(2i)*W + 2j, i*Wo + j] = 1 (stride-2 selection)."""
    Ho, Wo = H // 2, W // 2
    S = np.zeros((H * W, Ho * Wo), np.float32)
    for i in range(Ho):
        for j in range(Wo):
            S[(2 * i) * W + 2 * j, i * Wo + j] = 1.0
    return S


def conv_tap_masks(H, W):
    """(9, 1, HW) float masks: tap (dh,dw) is valid at (h,w) iff (h+dh, w+dw) is in-image."""
    m = np.zeros((9, 1, H * W), np.float32)
    for dh in (-1, 0, 1):
        for dw in (-1, 0, 1):
            idx = (dh + 1) * 3 + (dw + 1)
            grid = np.zeros((H, W), np.float32)
            grid[max(0, -dh):min(H, H - dh), max(0, -dw):min(W, W - dw)] = 1.0
            m[idx, 0] = grid.reshape(-1)
    return m


# --------------------------------------------------------------------------------------
# Deterministic parameter initialization (mirrors the nn.Module's shapes; BN in eval mode).
# --------------------------------------------------------------------------------------
def init_params(key, in_c, out_c):
    mid = out_c // 4
    ks = jax.random.split(key, 12)
    eps = 1e-5

    def bn(k, n):
        k1, k2, k3, k4 = jax.random.split(k, 4)
        gamma = 1.0 + 0.1 * jax.random.normal(k1, (n,))
        beta = 0.1 * jax.random.normal(k2, (n,))
        mean = 0.1 * jax.random.normal(k3, (n,))
        var = jax.random.uniform(k4, (n,), minval=0.5, maxval=1.5)
        s = gamma / jnp.sqrt(var + eps)
        t = beta - s * mean
        return s, t

    def conv_w(k, o, i, kh, kw):
        return jax.random.normal(k, (o, i, kh, kw)) * (1.0 / np.sqrt(i * kh * kw))

    p = {}
    p['w1a'] = conv_w(ks[0], mid, in_c, 1, 1); p['s1a'], p['t1a'] = bn(ks[1], mid)
    p['w1b'] = conv_w(ks[2], mid, mid, 3, 3);  p['s1b'], p['t1b'] = bn(ks[3], mid)
    p['w2a'] = conv_w(ks[4], mid, in_c, 1, 1); p['s2a'], p['t2a'] = bn(ks[5], mid)
    p['w2b'] = conv_w(ks[6], mid, mid, 3, 3);  p['s2b'], p['t2b'] = bn(ks[7], mid)
    p['w2c'] = conv_w(ks[8], mid, mid, 3, 3);  p['s2c'], p['t2c'] = bn(ks[9], mid)
    p['w3'] = conv_w(ks[10], 2 * mid, in_c, 1, 1); p['s3'], p['t3'] = bn(ks[11], 2 * mid)
    return p


def build_kernel_inputs(params, H, W):
    """Fold BN into the convs and build the structural arrays.  Call once, reuse."""
    assert H % 2 == 0 and W % 2 == 0, "even spatial dims assumed"

    def fold1x1(w, s):                                       # (O, I, 1, 1) -> (O, I)
        return jnp.asarray(w[:, :, 0, 0] * s[:, None], jnp.float32)

    def fold3x3(w, s):                                       # (O, I, 3, 3) -> (9, O, I)
        wf = w * s[:, None, None, None]
        O, I = w.shape[0], w.shape[1]
        return jnp.asarray(jnp.transpose(wf, (2, 3, 0, 1)).reshape(9, O, I), jnp.float32)

    def bias(t):                                             # (O,) -> (O, 1)
        return jnp.asarray(t, jnp.float32).reshape(-1, 1)

    return dict(
        w1a=fold1x1(params['w1a'], params['s1a']), b1a=bias(params['t1a']),
        k1=fold3x3(params['w1b'], params['s1b']),  b1b=bias(params['t1b']),
        w2a=fold1x1(params['w2a'], params['s2a']), b2a=bias(params['t2a']),
        k2b=fold3x3(params['w2b'], params['s2b']), b2b=bias(params['t2b']),
        k2c=fold3x3(params['w2c'], params['s2c']), b2c=bias(params['t2c']),
        w3=fold1x1(params['w3'], params['s3']),    b3=bias(params['t3']),
        sel=jnp.asarray(downsample_select_matrix(H, W), jnp.float32),
        masks=jnp.asarray(conv_tap_masks(H, W), jnp.float32),
    )


# --------------------------------------------------------------------------------------
# Wrapper: NCHW in, NCHW out (only free reshapes around the kernel).
# --------------------------------------------------------------------------------------
def inception_b_forward(x_nchw, ins):
    B, Cin, H, W = x_nchw.shape
    mid = ins['k1'].shape[1]
    out_c = 4 * mid
    HW, Ho, Wo = H * W, H // 2, W // 2
    HoWo = Ho * Wo

    x_flat = x_nchw.reshape(B, Cin, HW)          # contiguous NCHW -> free reshape

    kern = functools.partial(inception_b_kernel, H=H, W=W)

    def wspec(shape):
        return pl.BlockSpec(shape, lambda b: (0,) * len(shape))

    weight_names = ['w1a', 'b1a', 'k1', 'b1b',
                    'w2a', 'b2a', 'k2b', 'b2b', 'k2c', 'b2c',
                    'w3', 'b3', 'sel', 'masks']

    out_flat = pl.pallas_call(
        kern,
        out_shape=jax.ShapeDtypeStruct((B, out_c, HoWo), jnp.float32),
        grid=(B,),
        in_specs=[pl.BlockSpec((None, Cin, HW), lambda b: (b, 0, 0))]
                 + [wspec(ins[n].shape) for n in weight_names],
        out_specs=pl.BlockSpec((None, out_c, HoWo), lambda b: (b, 0, 0)),
        compiler_params=pltpu.CompilerParams(dimension_semantics=("parallel",)),
    )(x_flat, *[ins[n] for n in weight_names])

    return out_flat.reshape(B, out_c, Ho, Wo)


# --------------------------------------------------------------------------------------
# Pure-JAX reference (lax conv / reduce_window on the raw params) for correctness check.
# --------------------------------------------------------------------------------------
def inception_b_reference(x, p):
    hi = jax.lax.Precision.HIGHEST

    def cb(t, w, s, b, stride=1, pad=0):
        y = jax.lax.conv_general_dilated(
            t, jnp.asarray(w, jnp.float32), (stride, stride),
            [(pad, pad), (pad, pad)],
            dimension_numbers=('NCHW', 'OIHW', 'NCHW'), precision=hi)
        y = y * s[None, :, None, None] + b[None, :, None, None]
        return jnp.clip(y, 0.0, 6.0)

    s1 = cb(cb(x, p['w1a'], p['s1a'], p['t1a']),
            p['w1b'], p['s1b'], p['t1b'], stride=2, pad=1)
    s2 = cb(cb(cb(x, p['w2a'], p['s2a'], p['t2a']),
               p['w2b'], p['s2b'], p['t2b'], stride=1, pad=1),
            p['w2c'], p['s2c'], p['t2c'], stride=2, pad=1)
    mp = jax.lax.reduce_window(x, -jnp.inf, jax.lax.max,
                               (1, 1, 3, 3), (1, 1, 2, 2),
                               ((0, 0), (0, 0), (1, 1), (1, 1)))
    s3 = cb(mp, p['w3'], p['s3'], p['t3'])
    return jnp.concatenate([s1, s2, s3], axis=1)


if __name__ == "__main__":
    B, Cin, H, W = 2, 16, 16, 16
    out_c = 32                                   # mid = 8
    key = jax.random.PRNGKey(0)
    kx, kp = jax.random.split(key)
    x = jax.random.normal(kx, (B, Cin, H, W), dtype=jnp.float32)

    params = init_params(kp, Cin, out_c)
    ins = build_kernel_inputs(params, H, W)      # built once (hoisted out of forward)

    fwd = jax.jit(inception_b_forward)
    out = fwd(x, ins)
    out = jax.block_until_ready(out)

    ref = inception_b_reference(x, params)
    assert out.shape == (B, out_c, H // 2, W // 2)
    assert bool(jnp.all(jnp.isfinite(out)))
    np.testing.assert_allclose(np.asarray(out), np.asarray(ref), atol=3e-3, rtol=3e-3)
    print("KERNEL_OK")
</pallas_src>

<mosaic_0001>
module attributes {stable_mosaic.version = 11 : i64} {
  func.func @inception_b_kernel(%arg0: i32, %arg1: memref<1x16x256xf32, #tpu.memory_space<vmem>>, %arg2: memref<8x16xf32, #tpu.memory_space<vmem>>, %arg3: memref<8x1xf32, #tpu.memory_space<vmem>>, %arg4: memref<9x8x8xf32, #tpu.memory_space<vmem>>, %arg5: memref<8x1xf32, #tpu.memory_space<vmem>>, %arg6: memref<8x16xf32, #tpu.memory_space<vmem>>, %arg7: memref<8x1xf32, #tpu.memory_space<vmem>>, %arg8: memref<9x8x8xf32, #tpu.memory_space<vmem>>, %arg9: memref<8x1xf32, #tpu.memory_space<vmem>>, %arg10: memref<9x8x8xf32, #tpu.memory_space<vmem>>, %arg11: memref<8x1xf32, #tpu.memory_space<vmem>>, %arg12: memref<16x16xf32, #tpu.memory_space<vmem>>, %arg13: memref<16x1xf32, #tpu.memory_space<vmem>>, %arg14: memref<256x64xf32, #tpu.memory_space<vmem>>, %arg15: memref<9x1x256xf32, #tpu.memory_space<vmem>>, %arg16: memref<1x32x64xf32, #tpu.memory_space<vmem>>) attributes {dimension_semantics = [#tpu.dimension_semantics<parallel>], iteration_bounds = array<i64: 2>, scalar_prefetch = 0 : i64, scratch_operands = 0 : i64, tpu.core_type = #tpu.core_type<tc>, window_params = [{transform_indices = @transform_0, window_bounds = array<i64: 1, 16, 256>}, {pipeline_mode = #tpu.pipeline_mode<synchronous>, transform_indices = @transform_1, window_bounds = array<i64: 8, 16>}, {pipeline_mode = #tpu.pipeline_mode<synchronous>, transform_indices = @transform_2, window_bounds = array<i64: 8, 1>}, {pipeline_mode = #tpu.pipeline_mode<synchronous>, transform_indices = @transform_3, window_bounds = array<i64: 9, 8, 8>}, {pipeline_mode = #tpu.pipeline_mode<synchronous>, transform_indices = @transform_4, window_bounds = array<i64: 8, 1>}, {pipeline_mode = #tpu.pipeline_mode<synchronous>, transform_indices = @transform_5, window_bounds = array<i64: 8, 16>}, {pipeline_mode = #tpu.pipeline_mode<synchronous>, transform_indices = @transform_6, window_bounds = array<i64: 8, 1>}, {pipeline_mode = #tpu.pipeline_mode<synchronous>, transform_indices = @transform_7, window_bounds = array<i64: 9, 8, 8>}, {pipeline_mode = #tpu.pipeline_mode<synchronous>, transform_indices = @transform_8, window_bounds = array<i64: 8, 1>}, {pipeline_mode = #tpu.pipeline_mode<synchronous>, transform_indices = @transform_9, window_bounds = array<i64: 9, 8, 8>}, {pipeline_mode = #tpu.pipeline_mode<synchronous>, transform_indices = @transform_10, window_bounds = array<i64: 8, 1>}, {pipeline_mode = #tpu.pipeline_mode<synchronous>, transform_indices = @transform_11, window_bounds = array<i64: 16, 16>}, {pipeline_mode = #tpu.pipeline_mode<synchronous>, transform_indices = @transform_12, window_bounds = array<i64: 16, 1>}, {pipeline_mode = #tpu.pipeline_mode<synchronous>, transform_indices = @transform_13, window_bounds = array<i64: 256, 64>}, {pipeline_mode = #tpu.pipeline_mode<synchronous>, transform_indices = @transform_14, window_bounds = array<i64: 9, 1, 256>}, {transform_indices = @transform_15, window_bounds = array<i64: 1, 32, 64>}]} {
    %c0 = arith.constant 0 : index
    %c0_0 = arith.constant 0 : index
    %c0_1 = arith.constant 0 : index
    %0 = vector.load %arg1[%c0, %c0_0, %c0_1] : memref<1x16x256xf32, #tpu.memory_space<vmem>>, vector<1x16x256xf32>
    %1 = vector.shape_cast %0 : vector<1x16x256xf32> to vector<16x256xf32>
    %c0_2 = arith.constant 0 : index
    %c0_3 = arith.constant 0 : index
    %2 = vector.load %arg14[%c0_2, %c0_3] : memref<256x64xf32, #tpu.memory_space<vmem>>, vector<256x64xf32>
    %c0_4 = arith.constant 0 : index
    %c0_5 = arith.constant 0 : index
    %3 = vector.load %arg2[%c0_4, %c0_5] : memref<8x16xf32, #tpu.memory_space<vmem>>, vector<8x16xf32>
    %cst = arith.constant dense<0.000000e+00> : vector<8x256xf32>
    %4 = tpu.matmul %3, %1, %cst {dimension_numbers = #tpu.dot_dimension_numbers<[1], [0], [0], [1], [0, 0, 1, 1], [], []>} : vector<8x16xf32>, vector<16x256xf32>, vector<8x256xf32> -> vector<8x256xf32>
    %c0_6 = arith.constant 0 : index
    %c0_7 = arith.constant 0 : index
    %5 = vector.load %arg3[%c0_6, %c0_7] : memref<8x1xf32, #tpu.memory_space<vmem>>, vector<8x1xf32>
    %6 = vector.broadcast %5 : vector<8x1xf32> to vector<8x256xf32>
    %7 = arith.addf %4, %6 : vector<8x256xf32>
    %cst_8 = arith.constant 0.000000e+00 : f32
    %cst_9 = arith.constant 6.000000e+00 : f32
    %8 = vector.broadcast %cst_8 : f32 to vector<8x256xf32>
    %9 = arith.maximumf %8, %7 : vector<8x256xf32>
    %10 = vector.broadcast %cst_9 : f32 to vector<8x256xf32>
    %11 = arith.minimumf %10, %9 : vector<8x256xf32>
    %cst_10 = arith.constant 0.000000e+00 : f32
    %12 = vector.broadcast %cst_10 : f32 to vector<8x256xf32>
    %c0_11 = arith.constant 0 : index
    %c0_12 = arith.constant 0 : index
    %c0_13 = arith.constant 0 : index
    %13 = vector.load %arg15[%c0_11, %c0_12, %c0_13] : memref<9x1x256xf32, #tpu.memory_space<vmem>>, vector<1x1x256xf32>
    %14 = vector.shape_cast %13 : vector<1x1x256xf32> to vector<1x256xf32>
    %cst_14 = arith.constant 0.000000e+00 : f32
    %15 = vector.broadcast %cst_14 : f32 to vector<8x17xf32>
    %16 = vector.extract_strided_slice %11 {offsets = [0, 0], sizes = [8, 239], strides = [1, 1]} : vector<8x256xf32> to vector<8x239xf32>
    %17 = tpu.concatenate %15, %16 in 1 : vector<8x17xf32>, vector<8x239xf32> -> vector<8x256xf32>
    %c0_15 = arith.constant 0 : index
    %c0_16 = arith.constant 0 : index
    %c0_17 = arith.constant 0 : index
    %18 = vector.load %arg4[%c0_15, %c0_16, %c0_17] : memref<9x8x8xf32, #tpu.memory_space<vmem>>, vector<1x8x8xf32>
    %19 = vector.shape_cast %18 : vector<1x8x8xf32> to vector<8x8xf32>
    %20 = vector.broadcast %14 : vector<1x256xf32> to vector<8x256xf32>
    %21 = arith.mulf %17, %20 : vector<8x256xf32>
    %cst_18 = arith.constant dense<0.000000e+00> : vector<8x256xf32>
    %22 = tpu.matmul %19, %21, %cst_18 {dimension_numbers = #tpu.dot_dimension_numbers<[1], [0], [0], [1], [0, 0, 1, 1], [], []>} : vector<8x8xf32>, vector<8x256xf32>, vector<8x256xf32> -> vector<8x256xf32>
    %23 = arith.addf %12, %22 : vector<8x256xf32>
    %c1 = arith.constant 1 : index
    %c0_19 = arith.constant 0 : index
    %c0_20 = arith.constant 0 : index
    %24 = vector.load %arg15[%c1, %c0_19, %c0_20] : memref<9x1x256xf32, #tpu.memory_space<vmem>>, vector<1x1x256xf32>
    %25 = vector.shape_cast %24 : vector<1x1x256xf32> to vector<1x256xf32>
    %cst_21 = arith.constant 0.000000e+00 : f32
    %26 = vector.broadcast %cst_21 : f32 to vector<8x16xf32>
    %27 = vector.extract_strided_slice %11 {offsets = [0, 0], sizes = [8, 240], strides = [1, 1]} : vector<8x256xf32> to vector<8x240xf32>
    %28 = tpu.concatenate %26, %27 in 1 : vector<8x16xf32>, vector<8x240xf32> -> vector<8x256xf32>
    %c1_22 = arith.constant 1 : index
    %c0_23 = arith.constant 0 : index
    %c0_24 = arith.constant 0 : index
    %29 = vector.load %arg4[%c1_22, %c0_23, %c0_24] : memref<9x8x8xf32, #tpu.memory_space<vmem>>, vector<1x8x8xf32>
    %30 = vector.shape_cast %29 : vector<1x8x8xf32> to vector<8x8xf32>
    %31 = vector.broadcast %25 : vector<1x256xf32> to vector<8x256xf32>
    %32 = arith.mulf %28, %31 : vector<8x256xf32>
    %cst_25 = arith.constant dense<0.000000e+00> : vector<8x256xf32>
    %33 = tpu.matmul %30, %32, %cst_25 {dimension_numbers = #tpu.dot_dimension_numbers<[1], [0], [0], [1], [0, 0, 1, 1], [], []>} : vector<8x8xf32>, vector<8x256xf32>, vector<8x256xf32> -> vector<8x256xf32>
    %34 = arith.addf %23, %33 : vector<8x256xf32>
    %c2 = arith.constant 2 : index
    %c0_26 = arith.constant 0 : index
    %c0_27 = arith.constant 0 : index
    %35 = vector.load %arg15[%c2, %c0_26, %c0_27] : memref<9x1x256xf32, #tpu.memory_space<vmem>>, vector<1x1x256xf32>
    %36 = vector.shape_cast %35 : vector<1x1x256xf32> to vector<1x256xf32>
    %cst_28 = arith.constant 0.000000e+00 : f32
    %37 = vector.broadcast %cst_28 : f32 to vector<8x15xf32>
    %38 = vector.extract_strided_slice %11 {offsets = [0, 0], sizes = [8, 241], strides = [1, 1]} : vector<8x256xf32> to vector<8x241xf32>
    %39 = tpu.concatenate %37, %38 in 1 : vector<8x15xf32>, vector<8x241xf32> -> vector<8x256xf32>
    %c2_29 = arith.constant 2 : index
    %c0_30 = arith.constant 0 : index
    %c0_31 = arith.constant 0 : index
    %40 = vector.load %arg4[%c2_29, %c0_30, %c0_31] : memref<9x8x8xf32, #tpu.memory_space<vmem>>, vector<1x8x8xf32>
    %41 = vector.shape_cast %40 : vector<1x8x8xf32> to vector<8x8xf32>
    %42 = vector.broadcast %36 : vector<1x256xf32> to vector<8x256xf32>
    %43 = arith.mulf %39, %42 : vector<8x256xf32>
    %cst_32 = arith.constant dense<0.000000e+00> : vector<8x256xf32>
    %44 = tpu.matmul %41, %43, %cst_32 {dimension_numbers = #tpu.dot_dimension_numbers<[1], [0], [0], [1], [0, 0, 1, 1], [], []>} : vector<8x8xf32>, vector<8x256xf32>, vector<8x256xf32> -> vector<8x256xf32>
    %45 = arith.addf %34, %44 : vector<8x256xf32>
    %c3 = arith.constant 3 : index
    %c0_33 = arith.constant 0 : index
    %c0_34 = arith.constant 0 : index
    %46 = vector.load %arg15[%c3, %c0_33, %c0_34] : memref<9x1x256xf32, #tpu.memory_space<vmem>>, vector<1x1x256xf32>
    %47 = vector.shape_cast %46 : vector<1x1x256xf32> to vector<1x256xf32>
    %cst_35 = arith.constant 0.000000e+00 : f32
    %48 = vector.broadcast %cst_35 : f32 to vector<8x1xf32>
    %49 = vector.extract_strided_slice %11 {offsets = [0, 0], sizes = [8, 255], strides = [1, 1]} : vector<8x256xf32> to vector<8x255xf32>
    %50 = tpu.concatenate %48, %49 in 1 : vector<8x1xf32>, vector<8x255xf32> -> vector<8x256xf32>
    %c3_36 = arith.constant 3 : index
    %c0_37 = arith.constant 0 : index
    %c0_38 = arith.constant 0 : index
    %51 = vector.load %arg4[%c3_36, %c0_37, %c0_38] : memref<9x8x8xf32, #tpu.memory_space<vmem>>, vector<1x8x8xf32>
    %52 = vector.shape_cast %51 : vector<1x8x8xf32> to vector<8x8xf32>
    %53 = vector.broadcast %47 : vector<1x256xf32> to vector<8x256xf32>
    %54 = arith.mulf %50, %53 : vector<8x256xf32>
    %cst_39 = arith.constant dense<0.000000e+00> : vector<8x256xf32>
    %55 = tpu.matmul %52, %54, %cst_39 {dimension_numbers = #tpu.dot_dimension_numbers<[1], [0], [0], [1], [0, 0, 1, 1], [], []>} : vector<8x8xf32>, vector<8x256xf32>, vector<8x256xf32> -> vector<8x256xf32>
    %56 = arith.addf %45, %55 : vector<8x256xf32>
    %c4 = arith.constant 4 : index
    %c0_40 = arith.constant 0 : index
    %c0_41 = arith.constant 0 : index
    %57 = vector.load %arg15[%c4, %c0_40, %c0_41] : memref<9x1x256xf32, #tpu.memory_space<vmem>>, vector<1x1x256xf32>
    %58 = vector.shape_cast %57 : vector<1x1x256xf32> to vector<1x256xf32>
    %c4_42 = arith.constant 4 : index
    %c0_43 = arith.constant 0 : index
    %c0_44 = arith.constant 0 : index
    %59 = vector.load %arg4[%c4_42, %c0_43, %c0_44] : memref<9x8x8xf32, #tpu.memory_space<vmem>>, vector<1x8x8xf32>
    %60 = vector.shape_cast %59 : vector<1x8x8xf32> to vector<8x8xf32>
    %61 = vector.broadcast %58 : vector<1x256xf32> to vector<8x256xf32>
    %62 = arith.mulf %11, %61 : vector<8x256xf32>
    %cst_45 = arith.constant dense<0.000000e+00> : vector<8x256xf32>
    %63 = tpu.matmul %60, %62, %cst_45 {dimension_numbers = #tpu.dot_dimension_numbers<[1], [0], [0], [1], [0, 0, 1, 1], [], []>} : vector<8x8xf32>, vector<8x256xf32>, vector<8x256xf32> -> vector<8x256xf32>
    %64 = arith.addf %56, %63 : vector<8x256xf32>
    %c5 = arith.constant 5 : index
    %c0_46 = arith.constant 0 : index
    %c0_47 = arith.constant 0 : index
    %65 = vector.load %arg15[%c5, %c0_46, %c0_47] : memref<9x1x256xf32, #tpu.memory_space<vmem>>, vector<1x1x256xf32>
    %66 = vector.shape_cast %65 : vector<1x1x256xf32> to vector<1x256xf32>
    %67 = vector.extract_strided_slice %11 {offsets = [0, 1], sizes = [8, 255], strides = [1, 1]} : vector<8x256xf32> to vector<8x255xf32>
    %cst_48 = arith.constant 0.000000e+00 : f32
    %68 = vector.broadcast %cst_48 : f32 to vector<8x1xf32>
    %69 = tpu.concatenate %67, %68 in 1 : vector<8x255xf32>, vector<8x1xf32> -> vector<8x256xf32>
    %c5_49 = arith.constant 5 : index
    %c0_50 = arith.constant 0 : index
    %c0_51 = arith.constant 0 : index
    %70 = vector.load %arg4[%c5_49, %c0_50, %c0_51] : memref<9x8x8xf32, #tpu.memory_space<vmem>>, vector<1x8x8xf32>
    %71 = vector.shape_cast %70 : vector<1x8x8xf32> to vector<8x8xf32>
    %72 = vector.broadcast %66 : vector<1x256xf32> to vector<8x256xf32>
    %73 = arith.mulf %69, %72 : vector<8x256xf32>
    %cst_52 = arith.constant dense<0.000000e+00> : vector<8x256xf32>
    %74 = tpu.matmul %71, %73, %cst_52 {dimension_numbers = #tpu.dot_dimension_numbers<[1], [0], [0], [1], [0, 0, 1, 1], [], []>} : vector<8x8xf32>, vector<8x256xf32>, vector<8x256xf32> -> vector<8x256xf32>
    %75 = arith.addf %64, %74 : vector<8x256xf32>
    %c6 = arith.constant 6 : index
    %c0_53 = arith.constant 0 : index
    %c0_54 = arith.constant 0 : index
    %76 = vector.load %arg15[%c6, %c0_53, %c0_54] : memref<9x1x256xf32, #tpu.memory_space<vmem>>, vector<1x1x256xf32>
    %77 = vector.shape_cast %76 : vector<1x1x256xf32> to vector<1x256xf32>
    %78 = vector.extract_strided_slice %11 {offsets = [0, 15], sizes = [8, 241], strides = [1, 1]} : vector<8x256xf32> to vector<8x241xf32>
    %cst_55 = arith.constant 0.000000e+00 : f32
    %79 = vector.broadcast %cst_55 : f32 to vector<8x15xf32>
    %80 = tpu.concatenate %78, %79 in 1 : vector<8x241xf32>, vector<8x15xf32> -> vector<8x256xf32>
    %c6_56 = arith.constant 6 : index
    %c0_57 = arith.constant 0 : index
    %c0_58 = arith.constant 0 : index
    %81 = vector.load %arg4[%c6_56, %c0_57, %c0_58] : memref<9x8x8xf32, #tpu.memory_space<vmem>>, vector<1x8x8xf32>
    %82 = vector.shape_cast %81 : vector<1x8x8xf32> to vector<8x8xf32>
    %83 = vector.broadcast %77 : vector<1x256xf32> to vector<8x256xf32>
    %84 = arith.mulf %80, %83 : vector<8x256xf32>
    %cst_59 = arith.constant dense<0.000000e+00> : vector<8x256xf32>
    %85 = tpu.matmul %82, %84, %cst_59 {dimension_numbers = #tpu.dot_dimension_numbers<[1], [0], [0], [1], [0, 0, 1, 1], [], []>} : vector<8x8xf32>, vector<8x256xf32>, vector<8x256xf32> -> vector<8x256xf32>
    %86 = arith.addf %75, %85 : vector<8x256xf32>
    %c7 = arith.constant 7 : index
    %c0_60 = arith.constant 0 : index
    %c0_61 = arith.constant 0 : index
    %87 = vector.load %arg15[%c7, %c0_60, %c0_61] : memref<9x1x256xf32, #tpu.memory_space<vmem>>, vector<1x1x256xf32>
    %88 = vector.shape_cast %87 : vector<1x1x256xf32> to vector<1x256xf32>
    %89 = vector.extract_strided_slice %11 {offsets = [0, 16], sizes = [8, 240], strides = [1, 1]} : vector<8x256xf32> to vector<8x240xf32>
    %cst_62 = arith.constant 0.000000e+00 : f32
    %90 = vector.broadcast %cst_62 : f32 to vector<8x16xf32>
    %91 = tpu.concatenate %89, %90 in 1 : vector<8x240xf32>, vector<8x16xf32> -> vector<8x256xf32>
    %c7_63 = arith.constant 7 : index
    %c0_64 = arith.constant 0 : index
    %c0_65 = arith.constant 0 : index
    %92 = vector.load %arg4[%c7_63, %c0_64, %c0_65] : memref<9x8x8xf32, #tpu.memory_space<vmem>>, vector<1x8x8xf32>
    %93 = vector.shape_cast %92 : vector<1x8x8xf32> to vector<8x8xf32>
    %94 = vector.broadcast %88 : vector<1x256xf32> to vector<8x256xf32>
    %95 = arith.mulf %91, %94 : vector<8x256xf32>
    %cst_66 = arith.constant dense<0.000000e+00> : vector<8x256xf32>
    %96 = tpu.matmul %93, %95, %cst_66 {dimension_numbers = #tpu.dot_dimension_numbers<[1], [0], [0], [1], [0, 0, 1, 1], [], []>} : vector<8x8xf32>, vector<8x256xf32>, vector<8x256xf32> -> vector<8x256xf32>
    %97 = arith.addf %86, %96 : vector<8x256xf32>
    %c8 = arith.constant 8 : index
    %c0_67 = arith.constant 0 : index
    %c0_68 = arith.constant 0 : index
    %98 = vector.load %arg15[%c8, %c0_67, %c0_68] : memref<9x1x256xf32, #tpu.memory_space<vmem>>, vector<1x1x256xf32>
    %99 = vector.shape_cast %98 : vector<1x1x256xf32> to vector<1x256xf32>
    %100 = vector.extract_strided_slice %11 {offsets = [0, 17], sizes = [8, 239], strides = [1, 1]} : vector<8x256xf32> to vector<8x239xf32>
    %cst_69 = arith.constant 0.000000e+00 : f32
    %101 = vector.broadcast %cst_69 : f32 to vector<8x17xf32>
    %102 = tpu.concatenate %100, %101 in 1 : vector<8x239xf32>, vector<8x17xf32> -> vector<8x256xf32>
    %c8_70 = arith.constant 8 : index
    %c0_71 = arith.constant 0 : index
    %c0_72 = arith.constant 0 : index
    %103 = vector.load %arg4[%c8_70, %c0_71, %c0_72] : memref<9x8x8xf32, #tpu.memory_space<vmem>>, vector<1x8x8xf32>
    %104 = vector.shape_cast %103 : vector<1x8x8xf32> to vector<8x8xf32>
    %105 = vector.broadcast %99 : vector<1x256xf32> to vector<8x256xf32>
    %106 = arith.mulf %102, %105 : vector<8x256xf32>
    %cst_73 = arith.constant dense<0.000000e+00> : vector<8x256xf32>
    %107 = tpu.matmul %104, %106, %cst_73 {dimension_numbers = #tpu.dot_dimension_numbers<[1], [0], [0], [1], [0, 0, 1, 1], [], []>} : vector<8x8xf32>, vector<8x256xf32>, vector<8x256xf32> -> vector<8x256xf32>
    %108 = arith.addf %97, %107 : vector<8x256xf32>
    %cst_74 = arith.constant dense<0.000000e+00> : vector<8x64xf32>
    %109 = tpu.matmul %108, %2, %cst_74 {dimension_numbers = #tpu.dot_dimension_numbers<[1], [0], [0], [1], [0, 0, 1, 1], [], []>} : vector<8x256xf32>, vector<256x64xf32>, vector<8x64xf32> -> vector<8x64xf32>
    %c0_75 = arith.constant 0 : index
    %c0_76 = arith.constant 0 : index
    %110 = vector.load %arg5[%c0_75, %c0_76] : memref<8x1xf32, #tpu.memory_space<vmem>>, vector<8x1xf32>
    %111 = vector.broadcast %110 : vector<8x1xf32> to vector<8x64xf32>
    %112 = arith.addf %109, %111 : vector<8x64xf32>
    %cst_77 = arith.constant 0.000000e+00 : f32
    %cst_78 = arith.constant 6.000000e+00 : f32
    %113 = vector.broadcast %cst_77 : f32 to vector<8x64xf32>
    %114 = arith.maximumf %113, %112 : vector<8x64xf32>
    %115 = vector.broadcast %cst_78 : f32 to vector<8x64xf32>
    %116 = arith.minimumf %115, %114 : vector<8x64xf32>
    %c0_79 = arith.constant 0 : index
    %c0_80 = arith.constant 0 : index
    %117 = vector.load %arg6[%c0_79, %c0_80] : memref<8x16xf32, #tpu.memory_space<vmem>>, vector<8x16xf32>
    %cst_81 = arith.constant dense<0.000000e+00> : vector<8x256xf32>
    %118 = tpu.matmul %117, %1, %cst_81 {dimension_numbers = #tpu.dot_dimension_numbers<[1], [0], [0], [1], [0, 0, 1, 1], [], []>} : vector<8x16xf32>, vector<16x256xf32>, vector<8x256xf32> -> vector<8x256xf32>
    %c0_82 = arith.constant 0 : index
    %c0_83 = arith.constant 0 : index
    %119 = vector.load %arg7[%c0_82, %c0_83] : memref<8x1xf32, #tpu.memory_space<vmem>>, vector<8x1xf32>
    %120 = vector.broadcast %119 : vector<8x1xf32> to vector<8x256xf32>
    %121 = arith.addf %118, %120 : vector<8x256xf32>
    %cst_84 = arith.constant 0.000000e+00 : f32
    %cst_85 = arith.constant 6.000000e+00 : f32
    %122 = vector.broadcast %cst_84 : f32 to vector<8x256xf32>
    %123 = arith.maximumf %122, %121 : vector<8x256xf32>
    %124 = vector.broadcast %cst_85 : f32 to vector<8x256xf32>
    %125 = arith.minimumf %124, %123 : vector<8x256xf32>
    %cst_86 = arith.constant 0.000000e+00 : f32
    %126 = vector.broadcast %cst_86 : f32 to vector<8x256xf32>
    %c0_87 = arith.constant 0 : index
    %c0_88 = arith.constant 0 : index
    %c0_89 = arith.constant 0 : index
    %127 = vector.load %arg15[%c0_87, %c0_88, %c0_89] : memref<9x1x256xf32, #tpu.memory_space<vmem>>, vector<1x1x256xf32>
    %128 = vector.shape_cast %127 : vector<1x1x256xf32> to vector<1x256xf32>
    %cst_90 = arith.constant 0.000000e+00 : f32
    %129 = vector.broadcast %cst_90 : f32 to vector<8x17xf32>
    %130 = vector.extract_strided_slice %125 {offsets = [0, 0], sizes = [8, 239], strides = [1, 1]} : vector<8x256xf32> to vector<8x239xf32>
    %131 = tpu.concatenate %129, %130 in 1 : vector<8x17xf32>, vector<8x239xf32> -> vector<8x256xf32>
    %c0_91 = arith.constant 0 : index
    %c0_92 = arith.constant 0 : index
    %c0_93 = arith.constant 0 : index
    %132 = vector.load %arg8[%c0_91, %c0_92, %c0_93] : memref<9x8x8xf32, #tpu.memory_space<vmem>>, vector<1x8x8xf32>
    %133 = vector.shape_cast %132 : vector<1x8x8xf32> to vector<8x8xf32>
    %134 = vector.broadcast %128 : vector<1x256xf32> to vector<8x256xf32>
    %135 = arith.mulf %131, %134 : vector<8x256xf32>
    %cst_94 = arith.constant dense<0.000000e+00> : vector<8x256xf32>
    %136 = tpu.matmul %133, %135, %cst_94 {dimension_numbers = #tpu.dot_dimension_numbers<[1], [0], [0], [1], [0, 0, 1, 1], [], []>} : vector<8x8xf32>, vector<8x256xf32>, vector<8x256xf32> -> vector<8x256xf32>
    %137 = arith.addf %126, %136 : vector<8x256xf32>
    %c1_95 = arith.constant 1 : index
    %c0_96 = arith.constant 0 : index
    %c0_97 = arith.constant 0 : index
    %138 = vector.load %arg15[%c1_95, %c0_96, %c0_97] : memref<9x1x256xf32, #tpu.memory_space<vmem>>, vector<1x1x256xf32>
    %139 = vector.shape_cast %138 : vector<1x1x256xf32> to vector<1x256xf32>
    %cst_98 = arith.constant 0.000000e+00 : f32
    %140 = vector.broadcast %cst_98 : f32 to vector<8x16xf32>
    %141 = vector.extract_strided_slice %125 {offsets = [0, 0], sizes = [8, 240], strides = [1, 1]} : vector<8x256xf32> to vector<8x240xf32>
    %142 = tpu.concatenate %140, %141 in 1 : vector<8x16xf32>, vector<8x240xf32> -> vector<8x256xf32>
    %c1_99 = arith.constant 1 : index
    %c0_100 = arith.constant 0 : index
    %c0_101 = arith.constant 0 : index
    %143 = vector.load %arg8[%c1_99, %c0_100, %c0_101] : memref<9x8x8xf32, #tpu.memory_space<vmem>>, vector<1x8x8xf32>
    %144 = vector.shape_cast %143 : vector<1x8x8xf32> to vector<8x8xf32>
    %145 = vector.broadcast %139 : vector<1x256xf32> to vector<8x256xf32>
    %146 = arith.mulf %142, %145 : vector<8x256xf32>
    %cst_102 = arith.constant dense<0.000000e+00> : vector<8x256xf32>
    %147 = tpu.matmul %144, %146, %cst_102 {dimension_numbers = #tpu.dot_dimension_numbers<[1], [0], [0], [1], [0, 0, 1, 1], [], []>} : vector<8x8xf32>, vector<8x256xf32>, vector<8x256xf32> -> vector<8x256xf32>
    %148 = arith.addf %137, %147 : vector<8x256xf32>
    %c2_103 = arith.constant 2 : index
    %c0_104 = arith.constant 0 : index
    %c0_105 = arith.constant 0 : index
    %149 = vector.load %arg15[%c2_103, %c0_104, %c0_105] : memref<9x1x256xf32, #tpu.memory_space<vmem>>, vector<1x1x256xf32>
    %150 = vector.shape_cast %149 : vector<1x1x256xf32> to vector<1x256xf32>
    %cst_106 = arith.constant 0.000000e+00 : f32
    %151 = vector.broadcast %cst_106 : f32 to vector<8x15xf32>
    %152 = vector.extract_strided_slice %125 {offsets = [0, 0], sizes = [8, 241], strides = [1, 1]} : vector<8x256xf32> to vector<8x241xf32>
    %153 = tpu.concatenate %151, %152 in 1 : vector<8x15xf32>, vector<8x241xf32> -> vector<8x256xf32>
    %c2_107 = arith.constant 2 : index
    %c0_108 = arith.constant 0 : index
    %c0_109 = arith.constant 0 : index
    %154 = vector.load %arg8[%c2_107, %c0_108, %c0_109] : memref<9x8x8xf32, #tpu.memory_space<vmem>>, vector<1x8x8xf32>
    %155 = vector.shape_cast %154 : vector<1x8x8xf32> to vector<8x8xf32>
    %156 = vector.broadcast %150 : vector<1x256xf32> to vector<8x256xf32>
    %157 = arith.mulf %153, %156 : vector<8x256xf32>
    %cst_110 = arith.constant dense<0.000000e+00> : vector<8x256xf32>
    %158 = tpu.matmul %155, %157, %cst_110 {dimension_numbers = #tpu.dot_dimension_numbers<[1], [0], [0], [1], [0, 0, 1, 1], [], []>} : vector<8x8xf32>, vector<8x256xf32>, vector<8x256xf32> -> vector<8x256xf32>
    %159 = arith.addf %148, %158 : vector<8x256xf32>
    %c3_111 = arith.constant 3 : index
    %c0_112 = arith.constant 0 : index
    %c0_113 = arith.constant 0 : index
    %160 = vector.load %arg15[%c3_111, %c0_112, %c0_113] : memref<9x1x256xf32, #tpu.memory_space<vmem>>, vector<1x1x256xf32>
    %161 = vector.shape_cast %160 : vector<1x1x256xf32> to vector<1x256xf32>
    %cst_114 = arith.constant 0.000000e+00 : f32
    %162 = vector.broadcast %cst_114 : f32 to vector<8x1xf32>
    %163 = vector.extract_strided_slice %125 {offsets = [0, 0], sizes = [8, 255], strides = [1, 1]} : vector<8x256xf32> to vector<8x255xf32>
    %164 = tpu.concatenate %162, %163 in 1 : vector<8x1xf32>, vector<8x255xf32> -> vector<8x256xf32>
    %c3_115 = arith.constant 3 : index
    %c0_116 = arith.constant 0 : index
    %c0_117 = arith.constant 0 : index
    %165 = vector.load %arg8[%c3_115, %c0_116, %c0_117] : memref<9x8x8xf32, #tpu.memory_space<vmem>>, vector<1x8x8xf32>
    %166 = vector.shape_cast %165 : vector<1x8x8xf32> to vector<8x8xf32>
    %167 = vector.broadcast %161 : vector<1x256xf32> to vector<8x256xf32>
    %168 = arith.mulf %164, %167 : vector<8x256xf32>
    %cst_118 = arith.constant dense<0.000000e+00> : vector<8x256xf32>
    %169 = tpu.matmul %166, %168, %cst_118 {dimension_numbers = #tpu.dot_dimension_numbers<[1], [0], [0], [1], [0, 0, 1, 1], [], []>} : vector<8x8xf32>, vector<8x256xf32>, vector<8x256xf32> -> vector<8x256xf32>
    %170 = arith.addf %159, %169 : vector<8x256xf32>
    %c4_119 = arith.constant 4 : index
    %c0_120 = arith.constant 0 : index
    %c0_121 = arith.constant 0 : index
    %171 = vector.load %arg15[%c4_119, %c0_120, %c0_121] : memref<9x1x256xf32, #tpu.memory_space<vmem>>, vector<1x1x256xf32>
    %172 = vector.shape_cast %171 : vector<1x1x256xf32> to vector<1x256xf32>
    %c4_122 = arith.constant 4 : index
    %c0_123 = arith.constant 0 : index
    %c0_124 = arith.constant 0 : index
    %173 = vector.load %arg8[%c4_122, %c0_123, %c0_124] : memref<9x8x8xf32, #tpu.memory_space<vmem>>, vector<1x8x8xf32>
    %174 = vector.shape_cast %173 : vector<1x8x8xf32> to vector<8x8xf32>
    %175 = vector.broadcast %172 : vector<1x256xf32> to vector<8x256xf32>
    %176 = arith.mulf %125, %175 : vector<8x256xf32>
    %cst_125 = arith.constant dense<0.000000e+00> : vector<8x256xf32>
    %177 = tpu.matmul %174, %176, %cst_125 {dimension_numbers = #tpu.dot_dimension_numbers<[1], [0], [0], [1], [0, 0, 1, 1], [], []>} : vector<8x8xf32>, vector<8x256xf32>, vector<8x256xf32> -> vector<8x256xf32>
    %178 = arith.addf %170, %177 : vector<8x256xf32>
    %c5_126 = arith.constant 5 : index
    %c0_127 = arith.constant 0 : index
    %c0_128 = arith.constant 0 : index
    %179 = vector.load %arg15[%c5_126, %c0_127, %c0_128] : memref<9x1x256xf32, #tpu.memory_space<vmem>>, vector<1x1x256xf32>
    %180 = vector.shape_cast %179 : vector<1x1x256xf32> to vector<1x256xf32>
    %181 = vector.extract_strided_slice %125 {offsets = [0, 1], sizes = [8, 255], strides = [1, 1]} : vector<8x256xf32> to vector<8x255xf32>
    %cst_129 = arith.constant 0.000000e+00 : f32
    %182 = vector.broadcast %cst_129 : f32 to vector<8x1xf32>
    %183 = tpu.concatenate %181, %182 in 1 : vector<8x255xf32>, vector<8x1xf32> -> vector<8x256xf32>
    %c5_130 = arith.constant 5 : index
    %c0_131 = arith.constant 0 : index
    %c0_132 = arith.constant 0 : index
    %184 = vector.load %arg8[%c5_130, %c0_131, %c0_132] : memref<9x8x8xf32, #tpu.memory_space<vmem>>, vector<1x8x8xf32>
    %185 = vector.shape_cast %184 : vector<1x8x8xf32> to vector<8x8xf32>
    %186 = vector.broadcast %180 : vector<1x256xf32> to vector<8x256xf32>
    %187 = arith.mulf %183, %186 : vector<8x256xf32>
    %cst_133 = arith.constant dense<0.000000e+00> : vector<8x256xf32>
    %188 = tpu.matmul %185, %187, %cst_133 {dimension_numbers = #tpu.dot_dimension_numbers<[1], [0], [0], [1], [0, 0, 1, 1], [], []>} : vector<8x8xf32>, vector<8x256xf32>, vector<8x256xf32> -> vector<8x256xf32>
    %189 = arith.addf %178, %188 : vector<8x256xf32>
    %c6_134 = arith.constant 6 : index
    %c0_135 = arith.constant 0 : index
    %c0_136 = arith.constant 0 : index
    %190 = vector.load %arg15[%c6_134, %c0_135, %c0_136] : memref<9x1x256xf32, #tpu.memory_space<vmem>>, vector<1x1x256xf32>
    %191 = vector.shape_cast %190 : vector<1x1x256xf32> to vector<1x256xf32>
    %192 = vector.extract_strided_slice %125 {offsets = [0, 15], sizes = [8, 241], strides = [1, 1]} : vector<8x256xf32> to vector<8x241xf32>
    %cst_137 = arith.constant 0.000000e+00 : f32
    %193 = vector.broadcast %cst_137 : f32 to vector<8x15xf32>
    %194 = tpu.concatenate %192, %193 in 1 : vector<8x241xf32>, vector<8x15xf32> -> vector<8x256xf32>
    %c6_138 = arith.constant 6 : index
    %c0_139 = arith.constant 0 : index
    %c0_140 = arith.constant 0 : index
    %195 = vector.load %arg8[%c6_138, %c0_139, %c0_140] : memref<9x8x8xf32, #tpu.memory_space<vmem>>, vector<1x8x8xf32>
    %196 = vector.shape_cast %195 : vector<1x8x8xf32> to vector<8x8xf32>
    %197 = vector.broadcast %191 : vector<1x256xf32> to vector<8x256xf32>
    %198 = arith.mulf %194, %197 : vector<8x256xf32>
    %cst_141 = arith.constant dense<0.000000e+00> : vector<8x256xf32>
    %199 = tpu.matmul %196, %198, %cst_141 {dimension_numbers = #tpu.dot_dimension_numbers<[1], [0], [0], [1], [0, 0, 1, 1], [], []>} : vector<8x8xf32>, vector<8x256xf32>, vector<8x256xf32> -> vector<8x256xf32>
    %200 = arith.addf %189, %199 : vector<8x256xf32>
    %c7_142 = arith.constant 7 : index
    %c0_143 = arith.constant 0 : index
    %c0_144 = arith.constant 0 : index
    %201 = vector.load %arg15[%c7_142, %c0_143, %c0_144] : memref<9x1x256xf32, #tpu.memory_space<vmem>>, vector<1x1x256xf32>
    %202 = vector.shape_cast %201 : vector<1x1x256xf32> to vector<1x256xf32>
    %203 = vector.extract_strided_slice %125 {offsets = [0, 16], sizes = [8, 240], strides = [1, 1]} : vector<8x256xf32> to vector<8x240xf32>
    %cst_145 = arith.constant 0.000000e+00 : f32
    %204 = vector.broadcast %cst_145 : f32 to vector<8x16xf32>
    %205 = tpu.concatenate %203, %204 in 1 : vector<8x240xf32>, vector<8x16xf32> -> vector<8x256xf32>
    %c7_146 = arith.constant 7 : index
    %c0_147 = arith.constant 0 : index
    %c0_148 = arith.constant 0 : index
    %206 = vector.load %arg8[%c7_146, %c0_147, %c0_148] : memref<9x8x8xf32, #tpu.memory_space<vmem>>, vector<1x8x8xf32>
    %207 = vector.shape_cast %206 : vector<1x8x8xf32> to vector<8x8xf32>
    %208 = vector.broadcast %202 : vector<1x256xf32> to vector<8x256xf32>
    %209 = arith.mulf %205, %208 : vector<8x256xf32>
    %cst_149 = arith.constant dense<0.000000e+00> : vector<8x256xf32>
    %210 = tpu.matmul %207, %209, %cst_149 {dimension_numbers = #tpu.dot_dimension_numbers<[1], [0], [0], [1], [0, 0, 1, 1], [], []>} : vector<8x8xf32>, vector<8x256xf32>, vector<8x256xf32> -> vector<8x256xf32>
    %211 = arith.addf %200, %210 : vector<8x256xf32>
    %c8_150 = arith.constant 8 : index
    %c0_151 = arith.constant 0 : index
    %c0_152 = arith.constant 0 : index
    %212 = vector.load %arg15[%c8_150, %c0_151, %c0_152] : memref<9x1x256xf32, #tpu.memory_space<vmem>>, vector<1x1x256xf32>
    %213 = vector.shape_cast %212 : vector<1x1x256xf32> to vector<1x256xf32>
    %214 = vector.extract_strided_slice %125 {offsets = [0, 17], sizes = [8, 239], strides = [1, 1]} : vector<8x256xf32> to vector<8x239xf32>
    %cst_153 = arith.constant 0.000000e+00 : f32
    %215 = vector.broadcast %cst_153 : f32 to vector<8x17xf32>
    %216 = tpu.concatenate %214, %215 in 1 : vector<8x239xf32>, vector<8x17xf32> -> vector<8x256xf32>
    %c8_154 = arith.constant 8 : index
    %c0_155 = arith.constant 0 : index
    %c0_156 = arith.constant 0 : index
    %217 = vector.load %arg8[%c8_154, %c0_155, %c0_156] : memref<9x8x8xf32, #tpu.memory_space<vmem>>, vector<1x8x8xf32>
    %218 = vector.shape_cast %217 : vector<1x8x8xf32> to vector<8x8xf32>
    %219 = vector.broadcast %213 : vector<1x256xf32> to vector<8x256xf32>
    %220 = arith.mulf %216, %219 : vector<8x256xf32>
    %cst_157 = arith.constant dense<0.000000e+00> : vector<8x256xf32>
    %221 = tpu.matmul %218, %220, %cst_157 {dimension_numbers = #tpu.dot_dimension_numbers<[1], [0], [0], [1], [0, 0, 1, 1], [], []>} : vector<8x8xf32>, vector<8x256xf32>, vector<8x256xf32> -> vector<8x256xf32>
    %222 = arith.addf %211, %221 : vector<8x256xf32>
    %c0_158 = arith.constant 0 : index
    %c0_159 = arith.constant 0 : index
    %223 = vector.load %arg9[%c0_158, %c0_159] : memref<8x1xf32, #tpu.memory_space<vmem>>, vector<8x1xf32>
    %224 = vector.broadcast %223 : vector<8x1xf32> to vector<8x256xf32>
    %225 = arith.addf %222, %224 : vector<8x256xf32>
    %cst_160 = arith.constant 0.000000e+00 : f32
    %cst_161 = arith.constant 6.000000e+00 : f32
    %226 = vector.broadcast %cst_160 : f32 to vector<8x256xf32>
    %227 = arith.maximumf %226, %225 : vector<8x256xf32>
    %228 = vector.broadcast %cst_161 : f32 to vector<8x256xf32>
    %229 = arith.minimumf %228, %227 : vector<8x256xf32>
    %cst_162 = arith.constant 0.000000e+00 : f32
    %230 = vector.broadcast %cst_162 : f32 to vector<8x256xf32>
    %c0_163 = arith.constant 0 : index
    %c0_164 = arith.constant 0 : index
    %c0_165 = arith.constant 0 : index
    %231 = vector.load %arg15[%c0_163, %c0_164, %c0_165] : memref<9x1x256xf32, #tpu.memory_space<vmem>>, vector<1x1x256xf32>
    %232 = vector.shape_cast %231 : vector<1x1x256xf32> to vector<1x256xf32>
    %cst_166 = arith.constant 0.000000e+00 : f32
    %233 = vector.broadcast %cst_166 : f32 to vector<8x17xf32>
    %234 = vector.extract_strided_slice %229 {offsets = [0, 0], sizes = [8, 239], strides = [1, 1]} : vector<8x256xf32> to vector<8x239xf32>
    %235 = tpu.concatenate %233, %234 in 1 : vector<8x17xf32>, vector<8x239xf32> -> vector<8x256xf32>
    %c0_167 = arith.constant 0 : index
    %c0_168 = arith.constant 0 : index
    %c0_169 = arith.constant 0 : index
    %236 = vector.load %arg10[%c0_167, %c0_168, %c0_169] : memref<9x8x8xf32, #tpu.memory_space<vmem>>, vector<1x8x8xf32>
    %237 = vector.shape_cast %236 : vector<1x8x8xf32> to vector<8x8xf32>
    %238 = vector.broadcast %232 : vector<1x256xf32> to vector<8x256xf32>
    %239 = arith.mulf %235, %238 : vector<8x256xf32>
    %cst_170 = arith.constant dense<0.000000e+00> : vector<8x256xf32>
    %240 = tpu.matmul %237, %239, %cst_170 {dimension_numbers = #tpu.dot_dimension_numbers<[1], [0], [0], [1], [0, 0, 1, 1], [], []>} : vector<8x8xf32>, vector<8x256xf32>, vector<8x256xf32> -> vector<8x256xf32>
    %241 = arith.addf %230, %240 : vector<8x256xf32>
    %c1_171 = arith.constant 1 : index
    %c0_172 = arith.constant 0 : index
    %c0_173 = arith.constant 0 : index
    %242 = vector.load %arg15[%c1_171, %c0_172, %c0_173] : memref<9x1x256xf32, #tpu.memory_space<vmem>>, vector<1x1x256xf32>
    %243 = vector.shape_cast %242 : vector<1x1x256xf32> to vector<1x256xf32>
    %cst_174 = arith.constant 0.000000e+00 : f32
    %244 = vector.broadcast %cst_174 : f32 to vector<8x16xf32>
    %245 = vector.extract_strided_slice %229 {offsets = [0, 0], sizes = [8, 240], strides = [1, 1]} : vector<8x256xf32> to vector<8x240xf32>
    %246 = tpu.concatenate %244, %245 in 1 : vector<8x16xf32>, vector<8x240xf32> -> vector<8x256xf32>
    %c1_175 = arith.constant 1 : index
    %c0_176 = arith.constant 0 : index
    %c0_177 = arith.constant 0 : index
    %247 = vector.load %arg10[%c1_175, %c0_176, %c0_177] : memref<9x8x8xf32, #tpu.memory_space<vmem>>, vector<1x8x8xf32>
    %248 = vector.shape_cast %247 : vector<1x8x8xf32> to vector<8x8xf32>
    %249 = vector.broadcast %243 : vector<1x256xf32> to vector<8x256xf32>
    %250 = arith.mulf %246, %249 : vector<8x256xf32>
    %cst_178 = arith.constant dense<0.000000e+00> : vector<8x256xf32>
    %251 = tpu.matmul %248, %250, %cst_178 {dimension_numbers = #tpu.dot_dimension_numbers<[1], [0], [0], [1], [0, 0, 1, 1], [], []>} : vector<8x8xf32>, vector<8x256xf32>, vector<8x256xf32> -> vector<8x256xf32>
    %252 = arith.addf %241, %251 : vector<8x256xf32>
    %c2_179 = arith.constant 2 : index
    %c0_180 = arith.constant 0 : index
    %c0_181 = arith.constant 0 : index
    %253 = vector.load %arg15[%c2_179, %c0_180, %c0_181] : memref<9x1x256xf32, #tpu.memory_space<vmem>>, vector<1x1x256xf32>
    %254 = vector.shape_cast %253 : vector<1x1x256xf32> to vector<1x256xf32>
    %cst_182 = arith.constant 0.000000e+00 : f32
    %255 = vector.broadcast %cst_182 : f32 to vector<8x15xf32>
    %256 = vector.extract_strided_slice %229 {offsets = [0, 0], sizes = [8, 241], strides = [1, 1]} : vector<8x256xf32> to vector<8x241xf32>
    %257 = tpu.concatenate %255, %256 in 1 : vector<8x15xf32>, vector<8x241xf32> -> vector<8x256xf32>
    %c2_183 = arith.constant 2 : index
    %c0_184 = arith.constant 0 : index
    %c0_185 = arith.constant 0 : index
    %258 = vector.load %arg10[%c2_183, %c0_184, %c0_185] : memref<9x8x8xf32, #tpu.memory_space<vmem>>, vector<1x8x8xf32>
    %259 = vector.shape_cast %258 : vector<1x8x8xf32> to vector<8x8xf32>
    %260 = vector.broadcast %254 : vector<1x256xf32> to vector<8x256xf32>
    %261 = arith.mulf %257, %260 : vector<8x256xf32>
    %cst_186 = arith.constant dense<0.000000e+00> : vector<8x256xf32>
    %262 = tpu.matmul %259, %261, %cst_186 {dimension_numbers = #tpu.dot_dimension_numbers<[1], [0], [0], [1], [0, 0, 1, 1], [], []>} : vector<8x8xf32>, vector<8x256xf32>, vector<8x256xf32> -> vector<8x256xf32>
    %263 = arith.addf %252, %262 : vector<8x256xf32>
    %c3_187 = arith.constant 3 : index
    %c0_188 = arith.constant 0 : index
    %c0_189 = arith.constant 0 : index
    %264 = vector.load %arg15[%c3_187, %c0_188, %c0_189] : memref<9x1x256xf32, #tpu.memory_space<vmem>>, vector<1x1x256xf32>
    %265 = vector.shape_cast %264 : vector<1x1x256xf32> to vector<1x256xf32>
    %cst_190 = arith.constant 0.000000e+00 : f32
    %266 = vector.broadcast %cst_190 : f32 to vector<8x1xf32>
    %267 = vector.extract_strided_slice %229 {offsets = [0, 0], sizes = [8, 255], strides = [1, 1]} : vector<8x256xf32> to vector<8x255xf32>
    %268 = tpu.concatenate %266, %267 in 1 : vector<8x1xf32>, vector<8x255xf32> -> vector<8x256xf32>
    %c3_191 = arith.constant 3 : index
    %c0_192 = arith.constant 0 : index
    %c0_193 = arith.constant 0 : index
    %269 = vector.load %arg10[%c3_191, %c0_192, %c0_193] : memref<9x8x8xf32, #tpu.memory_space<vmem>>, vector<1x8x8xf32>
    %270 = vector.shape_cast %269 : vector<1x8x8xf32> to vector<8x8xf32>
    %271 = vector.broadcast %265 : vector<1x256xf32> to vector<8x256xf32>
    %272 = arith.mulf %268, %271 : vector<8x256xf32>
    %cst_194 = arith.constant dense<0.000000e+00> : vector<8x256xf32>
    %273 = tpu.matmul %270, %272, %cst_194 {dimension_numbers = #tpu.dot_dimension_numbers<[1], [0], [0], [1], [0, 0, 1, 1], [], []>} : vector<8x8xf32>, vector<8x256xf32>, vector<8x256xf32> -> vector<8x256xf32>
    %274 = arith.addf %263, %273 : vector<8x256xf32>
    %c4_195 = arith.constant 4 : index
    %c0_196 = arith.constant 0 : index
    %c0_197 = arith.constant 0 : index
    %275 = vector.load %arg15[%c4_195, %c0_196, %c0_197] : memref<9x1x256xf32, #tpu.memory_space<vmem>>, vector<1x1x256xf32>
    %276 = vector.shape_cast %275 : vector<1x1x256xf32> to vector<1x256xf32>
    %c4_198 = arith.constant 4 : index
    %c0_199 = arith.constant 0 : index
    %c0_200 = arith.constant 0 : index
    %277 = vector.load %arg10[%c4_198, %c0_199, %c0_200] : memref<9x8x8xf32, #tpu.memory_space<vmem>>, vector<1x8x8xf32>
    %278 = vector.shape_cast %277 : vector<1x8x8xf32> to vector<8x8xf32>
    %279 = vector.broadcast %276 : vector<1x256xf32> to vector<8x256xf32>
    %280 = arith.mulf %229, %279 : vector<8x256xf32>
    %cst_201 = arith.constant dense<0.000000e+00> : vector<8x256xf32>
    %281 = tpu.matmul %278, %280, %cst_201 {dimension_numbers = #tpu.dot_dimension_numbers<[1], [0], [0], [1], [0, 0, 1, 1], [], []>} : vector<8x8xf32>, vector<8x256xf32>, vector<8x256xf32> -> vector<8x256xf32>
    %282 = arith.addf %274, %281 : vector<8x256xf32>
    %c5_202 = arith.constant 5 : index
    %c0_203 = arith.constant 0 : index
    %c0_204 = arith.constant 0 : index
    %283 = vector.load %arg15[%c5_202, %c0_203, %c0_204] : memref<9x1x256xf32, #tpu.memory_space<vmem>>, vector<1x1x256xf32>
    %284 = vector.shape_cast %283 : vector<1x1x256xf32> to vector<1x256xf32>
    %285 = vector.extract_strided_slice %229 {offsets = [0, 1], sizes = [8, 255], strides = [1, 1]} : vector<8x256xf32> to vector<8x255xf32>
    %cst_205 = arith.constant 0.000000e+00 : f32
    %286 = vector.broadcast %cst_205 : f32 to vector<8x1xf32>
    %287 = tpu.concatenate %285, %286 in 1 : vector<8x255xf32>, vector<8x1xf32> -> vector<8x256xf32>
    %c5_206 = arith.constant 5 : index
    %c0_207 = arith.constant 0 : index
    %c0_208 = arith.constant 0 : index
    %288 = vector.load %arg10[%c5_206, %c0_207, %c0_208] : memref<9x8x8xf32, #tpu.memory_space<vmem>>, vector<1x8x8xf32>
    %289 = vector.shape_cast %288 : vector<1x8x8xf32> to vector<8x8xf32>
    %290 = vector.broadcast %284 : vector<1x256xf32> to vector<8x256xf32>
    %291 = arith.mulf %287, %290 : vector<8x256xf32>
    %cst_209 = arith.constant dense<0.000000e+00> : vector<8x256xf32>
    %292 = tpu.matmul %289, %291, %cst_209 {dimension_numbers = #tpu.dot_dimension_numbers<[1], [0], [0], [1], [0, 0, 1, 1], [], []>} : vector<8x8xf32>, vector<8x256xf32>, vector<8x256xf32> -> vector<8x256xf32>
    %293 = arith.addf %282, %292 : vector<8x256xf32>
    %c6_210 = arith.constant 6 : index
    %c0_211 = arith.constant 0 : index
    %c0_212 = arith.constant 0 : index
    %294 = vector.load %arg15[%c6_210, %c0_211, %c0_212] : memref<9x1x256xf32, #tpu.memory_space<vmem>>, vector<1x1x256xf32>
    %295 = vector.shape_cast %294 : vector<1x1x256xf32> to vector<1x256xf32>
    %296 = vector.extract_strided_slice %229 {offsets = [0, 15], sizes = [8, 241], strides = [1, 1]} : vector<8x256xf32> to vector<8x241xf32>
    %cst_213 = arith.constant 0.000000e+00 : f32
    %297 = vector.broadcast %cst_213 : f32 to vector<8x15xf32>
    %298 = tpu.concatenate %296, %297 in 1 : vector<8x241xf32>, vector<8x15xf32> -> vector<8x256xf32>
    %c6_214 = arith.constant 6 : index
    %c0_215 = arith.constant 0 : index
    %c0_216 = arith.constant 0 : index
    %299 = vector.load %arg10[%c6_214, %c0_215, %c0_216] : memref<9x8x8xf32, #tpu.memory_space<vmem>>, vector<1x8x8xf32>
    %300 = vector.shape_cast %299 : vector<1x8x8xf32> to vector<8x8xf32>
    %301 = vector.broadcast %295 : vector<1x256xf32> to vector<8x256xf32>
    %302 = arith.mulf %298, %301 : vector<8x256xf32>
    %cst_217 = arith.constant dense<0.000000e+00> : vector<8x256xf32>
    %303 = tpu.matmul %300, %302, %cst_217 {dimension_numbers = #tpu.dot_dimension_numbers<[1], [0], [0], [1], [0, 0, 1, 1], [], []>} : vector<8x8xf32>, vector<8x256xf32>, vector<8x256xf32> -> vector<8x256xf32>
    %304 = arith.addf %293, %303 : vector<8x256xf32>
    %c7_218 = arith.constant 7 : index
    %c0_219 = arith.constant 0 : index
    %c0_220 = arith.constant 0 : index
    %305 = vector.load %arg15[%c7_218, %c0_219, %c0_220] : memref<9x1x256xf32, #tpu.memory_space<vmem>>, vector<1x1x256xf32>
    %306 = vector.shape_cast %305 : vector<1x1x256xf32> to vector<1x256xf32>
    %307 = vector.extract_strided_slice %229 {offsets = [0, 16], sizes = [8, 240], strides = [1, 1]} : vector<8x256xf32> to vector<8x240xf32>
    %cst_221 = arith.constant 0.000000e+00 : f32
    %308 = vector.broadcast %cst_221 : f32 to vector<8x16xf32>
    %309 = tpu.concatenate %307, %308 in 1 : vector<8x240xf32>, vector<8x16xf32> -> vector<8x256xf32>
    %c7_222 = arith.constant 7 : index
    %c0_223 = arith.constant 0 : index
    %c0_224 = arith.constant 0 : index
    %310 = vector.load %arg10[%c7_222, %c0_223, %c0_224] : memref<9x8x8xf32, #tpu.memory_space<vmem>>, vector<1x8x8xf32>
    %311 = vector.shape_cast %310 : vector<1x8x8xf32> to vector<8x8xf32>
    %312 = vector.broadcast %306 : vector<1x256xf32> to vector<8x256xf32>
    %313 = arith.mulf %309, %312 : vector<8x256xf32>
    %cst_225 = arith.constant dense<0.000000e+00> : vector<8x256xf32>
    %314 = tpu.matmul %311, %313, %cst_225 {dimension_numbers = #tpu.dot_dimension_numbers<[1], [0], [0], [1], [0, 0, 1, 1], [], []>} : vector<8x8xf32>, vector<8x256xf32>, vector<8x256xf32> -> vector<8x256xf32>
    %315 = arith.addf %304, %314 : vector<8x256xf32>
    %c8_226 = arith.constant 8 : index
    %c0_227 = arith.constant 0 : index
    %c0_228 = arith.constant 0 : index
    %316 = vector.load %arg15[%c8_226, %c0_227, %c0_228] : memref<9x1x256xf32, #tpu.memory_space<vmem>>, vector<1x1x256xf32>
    %317 = vector.shape_cast %316 : vector<1x1x256xf32> to vector<1x256xf32>
    %318 = vector.extract_strided_slice %229 {offsets = [0, 17], sizes = [8, 239], strides = [1, 1]} : vector<8x256xf32> to vector<8x239xf32>
    %cst_229 = arith.constant 0.000000e+00 : f32
    %319 = vector.broadcast %cst_229 : f32 to vector<8x17xf32>
    %320 = tpu.concatenate %318, %319 in 1 : vector<8x239xf32>, vector<8x17xf32> -> vector<8x256xf32>
    %c8_230 = arith.constant 8 : index
    %c0_231 = arith.constant 0 : index
    %c0_232 = arith.constant 0 : index
    %321 = vector.load %arg10[%c8_230, %c0_231, %c0_232] : memref<9x8x8xf32, #tpu.memory_space<vmem>>, vector<1x8x8xf32>
    %322 = vector.shape_cast %321 : vector<1x8x8xf32> to vector<8x8xf32>
    %323 = vector.broadcast %317 : vector<1x256xf32> to vector<8x256xf32>
    %324 = arith.mulf %320, %323 : vector<8x256xf32>
    %cst_233 = arith.constant dense<0.000000e+00> : vector<8x256xf32>
    %325 = tpu.matmul %322, %324, %cst_233 {dimension_numbers = #tpu.dot_dimension_numbers<[1], [0], [0], [1], [0, 0, 1, 1], [], []>} : vector<8x8xf32>, vector<8x256xf32>, vector<8x256xf32> -> vector<8x256xf32>
    %326 = arith.addf %315, %325 : vector<8x256xf32>
    %cst_234 = arith.constant dense<0.000000e+00> : vector<8x64xf32>
    %327 = tpu.matmul %326, %2, %cst_234 {dimension_numbers = #tpu.dot_dimension_numbers<[1], [0], [0], [1], [0, 0, 1, 1], [], []>} : vector<8x256xf32>, vector<256x64xf32>, vector<8x64xf32> -> vector<8x64xf32>
    %c0_235 = arith.constant 0 : index
    %c0_236 = arith.constant 0 : index
    %328 = vector.load %arg11[%c0_235, %c0_236] : memref<8x1xf32, #tpu.memory_space<vmem>>, vector<8x1xf32>
    %329 = vector.broadcast %328 : vector<8x1xf32> to vector<8x64xf32>
    %330 = arith.addf %327, %329 : vector<8x64xf32>
    %cst_237 = arith.constant 0.000000e+00 : f32
    %cst_238 = arith.constant 6.000000e+00 : f32
    %331 = vector.broadcast %cst_237 : f32 to vector<8x64xf32>
    %332 = arith.maximumf %331, %330 : vector<8x64xf32>
    %333 = vector.broadcast %cst_238 : f32 to vector<8x64xf32>
    %334 = arith.minimumf %333, %332 : vector<8x64xf32>
    %cst_239 = arith.constant -1.000000e+30 : f32
    %335 = vector.broadcast %cst_239 : f32 to vector<16x256xf32>
    %c0_240 = arith.constant 0 : index
    %c0_241 = arith.constant 0 : index
    %c0_242 = arith.constant 0 : index
    %336 = vector.load %arg15[%c0_240, %c0_241, %c0_242] : memref<9x1x256xf32, #tpu.memory_space<vmem>>, vector<1x1x256xf32>
    %337 = vector.shape_cast %336 : vector<1x1x256xf32> to vector<1x256xf32>
    %cst_243 = arith.constant 0.000000e+00 : f32
    %338 = vector.broadcast %cst_243 : f32 to vector<16x17xf32>
    %339 = vector.extract_strided_slice %1 {offsets = [0, 0], sizes = [16, 239], strides = [1, 1]} : vector<16x256xf32> to vector<16x239xf32>
    %340 = tpu.concatenate %338, %339 in 1 : vector<16x17xf32>, vector<16x239xf32> -> vector<16x256xf32>
    %cst_244 = arith.constant 0.000000e+00 : f32
    %341 = vector.broadcast %cst_244 : f32 to vector<1x256xf32>
    %342 = arith.cmpf ogt, %337, %341 : vector<1x256xf32>
    %cst_245 = arith.constant -1.000000e+30 : f32
    %343 = vector.shape_cast %342 : vector<1x256xi1> to vector<1x256xi1>
    %344 = vector.broadcast %343 : vector<1x256xi1> to vector<16x256xi1>
    %345 = vector.broadcast %cst_245 : f32 to vector<16x256xf32>
    %346 = arith.select %344, %340, %345 : vector<16x256xi1>, vector<16x256xf32>
    %347 = arith.maximumf %335, %346 : vector<16x256xf32>
    %c1_246 = arith.constant 1 : index
    %c0_247 = arith.constant 0 : index
    %c0_248 = arith.constant 0 : index
    %348 = vector.load %arg15[%c1_246, %c0_247, %c0_248] : memref<9x1x256xf32, #tpu.memory_space<vmem>>, vector<1x1x256xf32>
    %349 = vector.shape_cast %348 : vector<1x1x256xf32> to vector<1x256xf32>
    %cst_249 = arith.constant 0.000000e+00 : f32
    %350 = vector.broadcast %cst_249 : f32 to vector<16x16xf32>
    %351 = vector.extract_strided_slice %1 {offsets = [0, 0], sizes = [16, 240], strides = [1, 1]} : vector<16x256xf32> to vector<16x240xf32>
    %352 = tpu.concatenate %350, %351 in 1 : vector<16x16xf32>, vector<16x240xf32> -> vector<16x256xf32>
    %cst_250 = arith.constant 0.000000e+00 : f32
    %353 = vector.broadcast %cst_250 : f32 to vector<1x256xf32>
    %354 = arith.cmpf ogt, %349, %353 : vector<1x256xf32>
    %cst_251 = arith.constant -1.000000e+30 : f32
    %355 = vector.shape_cast %354 : vector<1x256xi1> to vector<1x256xi1>
    %356 = vector.broadcast %355 : vector<1x256xi1> to vector<16x256xi1>
    %357 = vector.broadcast %cst_251 : f32 to vector<16x256xf32>
    %358 = arith.select %356, %352, %357 : vector<16x256xi1>, vector<16x256xf32>
    %359 = arith.maximumf %347, %358 : vector<16x256xf32>
    %c2_252 = arith.constant 2 : index
    %c0_253 = arith.constant 0 : index
    %c0_254 = arith.constant 0 : index
    %360 = vector.load %arg15[%c2_252, %c0_253, %c0_254] : memref<9x1x256xf32, #tpu.memory_space<vmem>>, vector<1x1x256xf32>
    %361 = vector.shape_cast %360 : vector<1x1x256xf32> to vector<1x256xf32>
    %cst_255 = arith.constant 0.000000e+00 : f32
    %362 = vector.broadcast %cst_255 : f32 to vector<16x15xf32>
    %363 = vector.extract_strided_slice %1 {offsets = [0, 0], sizes = [16, 241], strides = [1, 1]} : vector<16x256xf32> to vector<16x241xf32>
    %364 = tpu.concatenate %362, %363 in 1 : vector<16x15xf32>, vector<16x241xf32> -> vector<16x256xf32>
    %cst_256 = arith.constant 0.000000e+00 : f32
    %365 = vector.broadcast %cst_256 : f32 to vector<1x256xf32>
    %366 = arith.cmpf ogt, %361, %365 : vector<1x256xf32>
    %cst_257 = arith.constant -1.000000e+30 : f32
    %367 = vector.shape_cast %366 : vector<1x256xi1> to vector<1x256xi1>
    %368 = vector.broadcast %367 : vector<1x256xi1> to vector<16x256xi1>
    %369 = vector.broadcast %cst_257 : f32 to vector<16x256xf32>
    %370 = arith.select %368, %364, %369 : vector<16x256xi1>, vector<16x256xf32>
    %371 = arith.maximumf %359, %370 : vector<16x256xf32>
    %c3_258 = arith.constant 3 : index
    %c0_259 = arith.constant 0 : index
    %c0_260 = arith.constant 0 : index
    %372 = vector.load %arg15[%c3_258, %c0_259, %c0_260] : memref<9x1x256xf32, #tpu.memory_space<vmem>>, vector<1x1x256xf32>
    %373 = vector.shape_cast %372 : vector<1x1x256xf32> to vector<1x256xf32>
    %cst_261 = arith.constant 0.000000e+00 : f32
    %374 = vector.broadcast %cst_261 : f32 to vector<16x1xf32>
    %375 = vector.extract_strided_slice %1 {offsets = [0, 0], sizes = [16, 255], strides = [1, 1]} : vector<16x256xf32> to vector<16x255xf32>
    %376 = tpu.concatenate %374, %375 in 1 : vector<16x1xf32>, vector<16x255xf32> -> vector<16x256xf32>
    %cst_262 = arith.constant 0.000000e+00 : f32
    %377 = vector.broadcast %cst_262 : f32 to vector<1x256xf32>
    %378 = arith.cmpf ogt, %373, %377 : vector<1x256xf32>
    %cst_263 = arith.constant -1.000000e+30 : f32
    %379 = vector.shape_cast %378 : vector<1x256xi1> to vector<1x256xi1>
    %380 = vector.broadcast %379 : vector<1x256xi1> to vector<16x256xi1>
    %381 = vector.broadcast %cst_263 : f32 to vector<16x256xf32>
    %382 = arith.select %380, %376, %381 : vector<16x256xi1>, vector<16x256xf32>
    %383 = arith.maximumf %371, %382 : vector<16x256xf32>
    %c4_264 = arith.constant 4 : index
    %c0_265 = arith.constant 0 : index
    %c0_266 = arith.constant 0 : index
    %384 = vector.load %arg15[%c4_264, %c0_265, %c0_266] : memref<9x1x256xf32, #tpu.memory_space<vmem>>, vector<1x1x256xf32>
    %385 = vector.shape_cast %384 : vector<1x1x256xf32> to vector<1x256xf32>
    %cst_267 = arith.constant 0.000000e+00 : f32
    %386 = vector.broadcast %cst_267 : f32 to vector<1x256xf32>
    %387 = arith.cmpf ogt, %385, %386 : vector<1x256xf32>
    %cst_268 = arith.constant -1.000000e+30 : f32
    %388 = vector.shape_cast %387 : vector<1x256xi1> to vector<1x256xi1>
    %389 = vector.broadcast %388 : vector<1x256xi1> to vector<16x256xi1>
    %390 = vector.broadcast %cst_268 : f32 to vector<16x256xf32>
    %391 = arith.select %389, %1, %390 : vector<16x256xi1>, vector<16x256xf32>
    %392 = arith.maximumf %383, %391 : vector<16x256xf32>
    %c5_269 = arith.constant 5 : index
    %c0_270 = arith.constant 0 : index
    %c0_271 = arith.constant 0 : index
    %393 = vector.load %arg15[%c5_269, %c0_270, %c0_271] : memref<9x1x256xf32, #tpu.memory_space<vmem>>, vector<1x1x256xf32>
    %394 = vector.shape_cast %393 : vector<1x1x256xf32> to vector<1x256xf32>
    %395 = vector.extract_strided_slice %1 {offsets = [0, 1], sizes = [16, 255], strides = [1, 1]} : vector<16x256xf32> to vector<16x255xf32>
    %cst_272 = arith.constant 0.000000e+00 : f32
    %396 = vector.broadcast %cst_272 : f32 to vector<16x1xf32>
    %397 = tpu.concatenate %395, %396 in 1 : vector<16x255xf32>, vector<16x1xf32> -> vector<16x256xf32>
    %cst_273 = arith.constant 0.000000e+00 : f32
    %398 = vector.broadcast %cst_273 : f32 to vector<1x256xf32>
    %399 = arith.cmpf ogt, %394, %398 : vector<1x256xf32>
    %cst_274 = arith.constant -1.000000e+30 : f32
    %400 = vector.shape_cast %399 : vector<1x256xi1> to vector<1x256xi1>
    %401 = vector.broadcast %400 : vector<1x256xi1> to vector<16x256xi1>
    %402 = vector.broadcast %cst_274 : f32 to vector<16x256xf32>
    %403 = arith.select %401, %397, %402 : vector<16x256xi1>, vector<16x256xf32>
    %404 = arith.maximumf %392, %403 : vector<16x256xf32>
    %c6_275 = arith.constant 6 : index
    %c0_276 = arith.constant 0 : index
    %c0_277 = arith.constant 0 : index
    %405 = vector.load %arg15[%c6_275, %c0_276, %c0_277] : memref<9x1x256xf32, #tpu.memory_space<vmem>>, vector<1x1x256xf32>
    %406 = vector.shape_cast %405 : vector<1x1x256xf32> to vector<1x256xf32>
    %407 = vector.extract_strided_slice %1 {offsets = [0, 15], sizes = [16, 241], strides = [1, 1]} : vector<16x256xf32> to vector<16x241xf32>
    %cst_278 = arith.constant 0.000000e+00 : f32
    %408 = vector.broadcast %cst_278 : f32 to vector<16x15xf32>
    %409 = tpu.concatenate %407, %408 in 1 : vector<16x241xf32>, vector<16x15xf32> -> vector<16x256xf32>
    %cst_279 = arith.constant 0.000000e+00 : f32
    %410 = vector.broadcast %cst_279 : f32 to vector<1x256xf32>
    %411 = arith.cmpf ogt, %406, %410 : vector<1x256xf32>
    %cst_280 = arith.constant -1.000000e+30 : f32
    %412 = vector.shape_cast %411 : vector<1x256xi1> to vector<1x256xi1>
    %413 = vector.broadcast %412 : vector<1x256xi1> to vector<16x256xi1>
    %414 = vector.broadcast %cst_280 : f32 to vector<16x256xf32>
    %415 = arith.select %413, %409, %414 : vector<16x256xi1>, vector<16x256xf32>
    %416 = arith.maximumf %404, %415 : vector<16x256xf32>
    %c7_281 = arith.constant 7 : index
    %c0_282 = arith.constant 0 : index
    %c0_283 = arith.constant 0 : index
    %417 = vector.load %arg15[%c7_281, %c0_282, %c0_283] : memref<9x1x256xf32, #tpu.memory_space<vmem>>, vector<1x1x256xf32>
    %418 = vector.shape_cast %417 : vector<1x1x256xf32> to vector<1x256xf32>
    %419 = vector.extract_strided_slice %1 {offsets = [0, 16], sizes = [16, 240], strides = [1, 1]} : vector<16x256xf32> to vector<16x240xf32>
    %cst_284 = arith.constant 0.000000e+00 : f32
    %420 = vector.broadcast %cst_284 : f32 to vector<16x16xf32>
    %421 = tpu.concatenate %419, %420 in 1 : vector<16x240xf32>, vector<16x16xf32> -> vector<16x256xf32>
    %cst_285 = arith.constant 0.000000e+00 : f32
    %422 = vector.broadcast %cst_285 : f32 to vector<1x256xf32>
    %423 = arith.cmpf ogt, %418, %422 : vector<1x256xf32>
    %cst_286 = arith.constant -1.000000e+30 : f32
    %424 = vector.shape_cast %423 : vector<1x256xi1> to vector<1x256xi1>
    %425 = vector.broadcast %424 : vector<1x256xi1> to vector<16x256xi1>
    %426 = vector.broadcast %cst_286 : f32 to vector<16x256xf32>
    %427 = arith.select %425, %421, %426 : vector<16x256xi1>, vector<16x256xf32>
    %428 = arith.maximumf %416, %427 : vector<16x256xf32>
    %c8_287 = arith.constant 8 : index
    %c0_288 = arith.constant 0 : index
    %c0_289 = arith.constant 0 : index
    %429 = vector.load %arg15[%c8_287, %c0_288, %c0_289] : memref<9x1x256xf32, #tpu.memory_space<vmem>>, vector<1x1x256xf32>
    %430 = vector.shape_cast %429 : vector<1x1x256xf32> to vector<1x256xf32>
    %431 = vector.extract_strided_slice %1 {offsets = [0, 17], sizes = [16, 239], strides = [1, 1]} : vector<16x256xf32> to vector<16x239xf32>
    %cst_290 = arith.constant 0.000000e+00 : f32
    %432 = vector.broadcast %cst_290 : f32 to vector<16x17xf32>
    %433 = tpu.concatenate %431, %432 in 1 : vector<16x239xf32>, vector<16x17xf32> -> vector<16x256xf32>
    %cst_291 = arith.constant 0.000000e+00 : f32
    %434 = vector.broadcast %cst_291 : f32 to vector<1x256xf32>
    %435 = arith.cmpf ogt, %430, %434 : vector<1x256xf32>
    %cst_292 = arith.constant -1.000000e+30 : f32
    %436 = vector.shape_cast %435 : vector<1x256xi1> to vector<1x256xi1>
    %437 = vector.broadcast %436 : vector<1x256xi1> to vector<16x256xi1>
    %438 = vector.broadcast %cst_292 : f32 to vector<16x256xf32>
    %439 = arith.select %437, %433, %438 : vector<16x256xi1>, vector<16x256xf32>
    %440 = arith.maximumf %428, %439 : vector<16x256xf32>
    %cst_293 = arith.constant dense<0.000000e+00> : vector<16x64xf32>
    %441 = tpu.matmul %440, %2, %cst_293 {dimension_numbers = #tpu.dot_dimension_numbers<[1], [0], [0], [1], [0, 0, 1, 1], [], []>} : vector<16x256xf32>, vector<256x64xf32>, vector<16x64xf32> -> vector<16x64xf32>
    %c0_294 = arith.constant 0 : index
    %c0_295 = arith.constant 0 : index
    %442 = vector.load %arg12[%c0_294, %c0_295] : memref<16x16xf32, #tpu.memory_space<vmem>>, vector<16x16xf32>
    %cst_296 = arith.constant dense<0.000000e+00> : vector<16x64xf32>
    %443 = tpu.matmul %442, %441, %cst_296 {dimension_numbers = #tpu.dot_dimension_numbers<[1], [0], [0], [1], [0, 0, 1, 1], [], []>} : vector<16x16xf32>, vector<16x64xf32>, vector<16x64xf32> -> vector<16x64xf32>
    %c0_297 = arith.constant 0 : index
    %c0_298 = arith.constant 0 : index
    %444 = vector.load %arg13[%c0_297, %c0_298] : memref<16x1xf32, #tpu.memory_space<vmem>>, vector<16x1xf32>
    %445 = vector.broadcast %444 : vector<16x1xf32> to vector<16x64xf32>
    %446 = arith.addf %443, %445 : vector<16x64xf32>
    %cst_299 = arith.constant 0.000000e+00 : f32
    %cst_300 = arith.constant 6.000000e+00 : f32
    %447 = vector.broadcast %cst_299 : f32 to vector<16x64xf32>
    %448 = arith.maximumf %447, %446 : vector<16x64xf32>
    %449 = vector.broadcast %cst_300 : f32 to vector<16x64xf32>
    %450 = arith.minimumf %449, %448 : vector<16x64xf32>
    %c0_301 = arith.constant 0 : index
    %c0_302 = arith.constant 0 : index
    %c0_303 = arith.constant 0 : index
    %451 = vector.load %arg16[%c0_301, %c0_302, %c0_303] : memref<1x32x64xf32, #tpu.memory_space<vmem>>, vector<1x8x64xf32>
    %452 = vector.shape_cast %451 : vector<1x8x64xf32> to vector<8x64xf32>
    %453 = vector.shape_cast %116 : vector<8x64xf32> to vector<1x8x64xf32>
    tpu.vector_store %arg16[%c0_301, %c0_302, %c0_303], %453 {strides = array<i32>} : memref<1x32x64xf32, #tpu.memory_space<vmem>>, vector<1x8x64xf32>,
    %c0_304 = arith.constant 0 : index
    %c8_305 = arith.constant 8 : index
    %c0_306 = arith.constant 0 : index
    %454 = vector.load %arg16[%c0_304, %c8_305, %c0_306] : memref<1x32x64xf32, #tpu.memory_space<vmem>>, vector<1x8x64xf32>
    %455 = vector.shape_cast %454 : vector<1x8x64xf32> to vector<8x64xf32>
    %456 = vector.shape_cast %334 : vector<8x64xf32> to vector<1x8x64xf32>
    tpu.vector_store %arg16[%c0_304, %c8_305, %c0_306], %456 {strides = array<i32>} : memref<1x32x64xf32, #tpu.memory_space<vmem>>, vector<1x8x64xf32>,
    %c0_307 = arith.constant 0 : index
    %c16 = arith.constant 16 : index
    %c0_308 = arith.constant 0 : index
    %457 = vector.load %arg16[%c0_307, %c16, %c0_308] : memref<1x32x64xf32, #tpu.memory_space<vmem>>, vector<1x16x64xf32>
    %458 = vector.shape_cast %457 : vector<1x16x64xf32> to vector<16x64xf32>
    %459 = vector.shape_cast %450 : vector<16x64xf32> to vector<1x16x64xf32>
    tpu.vector_store %arg16[%c0_307, %c16, %c0_308], %459 {strides = array<i32>} : memref<1x32x64xf32, #tpu.memory_space<vmem>>, vector<1x16x64xf32>,
    return
  }
  func.func @transform_0(%arg0: i32) -> (i32, i32, i32) {
    %c0_i32 = arith.constant 0 : i32
    %c0_i32_0 = arith.constant 0 : i32
    %c0_i32_1 = arith.constant 0 : i32
    return %arg0, %c0_i32, %c0_i32_0 : i32, i32, i32
  }
  func.func @transform_1(%arg0: i32) -> (i32, i32) {
    %c0_i32 = arith.constant 0 : i32
    %c0_i32_0 = arith.constant 0 : i32
    %c0_i32_1 = arith.constant 0 : i32
    return %c0_i32, %c0_i32_0 : i32, i32
  }
  func.func @transform_2(%arg0: i32) -> (i32, i32) {
    %c0_i32 = arith.constant 0 : i32
    %c0_i32_0 = arith.constant 0 : i32
    %c0_i32_1 = arith.constant 0 : i32
    return %c0_i32, %c0_i32_0 : i32, i32
  }
  func.func @transform_3(%arg0: i32) -> (i32, i32, i32) {
    %c0_i32 = arith.constant 0 : i32
    %c0_i32_0 = arith.constant 0 : i32
    %c0_i32_1 = arith.constant 0 : i32
    %c0_i32_2 = arith.constant 0 : i32
    return %c0_i32, %c0_i32_0, %c0_i32_1 : i32, i32, i32
  }
  func.func @transform_4(%arg0: i32) -> (i32, i32) {
    %c0_i32 = arith.constant 0 : i32
    %c0_i32_0 = arith.constant 0 : i32
    %c0_i32_1 = arith.constant 0 : i32
    return %c0_i32, %c0_i32_0 : i32, i32
  }
  func.func @transform_5(%arg0: i32) -> (i32, i32) {
    %c0_i32 = arith.constant 0 : i32
    %c0_i32_0 = arith.constant 0 : i32
    %c0_i32_1 = arith.constant 0 : i32
    return %c0_i32, %c0_i32_0 : i32, i32
  }
  func.func @transform_6(%arg0: i32) -> (i32, i32) {
    %c0_i32 = arith.constant 0 : i32
    %c0_i32_0 = arith.constant 0 : i32
    %c0_i32_1 = arith.constant 0 : i32
    return %c0_i32, %c0_i32_0 : i32, i32
  }
  func.func @transform_7(%arg0: i32) -> (i32, i32, i32) {
    %c0_i32 = arith.constant 0 : i32
    %c0_i32_0 = arith.constant 0 : i32
    %c0_i32_1 = arith.constant 0 : i32
    %c0_i32_2 = arith.constant 0 : i32
    return %c0_i32, %c0_i32_0, %c0_i32_1 : i32, i32, i32
  }
  func.func @transform_8(%arg0: i32) -> (i32, i32) {
    %c0_i32 = arith.constant 0 : i32
    %c0_i32_0 = arith.constant 0 : i32
    %c0_i32_1 = arith.constant 0 : i32
    return %c0_i32, %c0_i32_0 : i32, i32
  }
  func.func @transform_9(%arg0: i32) -> (i32, i32, i32) {
    %c0_i32 = arith.constant 0 : i32
    %c0_i32_0 = arith.constant 0 : i32
    %c0_i32_1 = arith.constant 0 : i32
    %c0_i32_2 = arith.constant 0 : i32
    return %c0_i32, %c0_i32_0, %c0_i32_1 : i32, i32, i32
  }
  func.func @transform_10(%arg0: i32) -> (i32, i32) {
    %c0_i32 = arith.constant 0 : i32
    %c0_i32_0 = arith.constant 0 : i32
    %c0_i32_1 = arith.constant 0 : i32
    return %c0_i32, %c0_i32_0 : i32, i32
  }
  func.func @transform_11(%arg0: i32) -> (i32, i32) {
    %c0_i32 = arith.constant 0 : i32
    %c0_i32_0 = arith.constant 0 : i32
    %c0_i32_1 = arith.constant 0 : i32
    return %c0_i32, %c0_i32_0 : i32, i32
  }
  func.func @transform_12(%arg0: i32) -> (i32, i32) {
    %c0_i32 = arith.constant 0 : i32
    %c0_i32_0 = arith.constant 0 : i32
    %c0_i32_1 = arith.constant 0 : i32
    return %c0_i32, %c0_i32_0 : i32, i32
  }
  func.func @transform_13(%arg0: i32) -> (i32, i32) {
    %c0_i32 = arith.constant 0 : i32
    %c0_i32_0 = arith.constant 0 : i32
    %c0_i32_1 = arith.constant 0 : i32
    return %c0_i32, %c0_i32_0 : i32, i32
  }
  func.func @transform_14(%arg0: i32) -> (i32, i32, i32) {
    %c0_i32 = arith.constant 0 : i32
    %c0_i32_0 = arith.constant 0 : i32
    %c0_i32_1 = arith.constant 0 : i32
    %c0_i32_2 = arith.constant 0 : i32
    return %c0_i32, %c0_i32_0, %c0_i32_1 : i32, i32, i32
  }
  func.func @transform_15(%arg0: i32) -> (i32, i32, i32) {
    %c0_i32 = arith.constant 0 : i32
    %c0_i32_0 = arith.constant 0 : i32
    %c0_i32_1 = arith.constant 0 : i32
    return %arg0, %c0_i32, %c0_i32_0 : i32, i32, i32
  }
}

</mosaic_0001>

<llo_original>
// kernel: inception_b_forward.1
$region0: #{inception_b_forward.1}
  #allocation0 [shape = 'u32[]', space=smem, size = 0x4, offset = 0x4, fixed_abs, tag = 'smem constant byte address 0x4 - core index']
  #allocation1 [shape = 'u32[144,128]{1,0:T(1,128)}', space=vmem, size = 0x12000, scoped, tag = 'internal scratch']
  %s0 = inlined_call_operand.vmem [shape: f32[2,16,256], index: 0, kind: input, shape index: {}]
  %s1 = inlined_call_operand.vmem [shape: f32[8,16], index: 1, kind: input, shape index: {}]
  %s2 = inlined_call_operand.vmem [shape: f32[8,1], index: 2, kind: input, shape index: {}]
  %s3 = inlined_call_operand.vmem [shape: f32[9,8,8], index: 3, kind: input, shape index: {}]
  %s4 = inlined_call_operand.vmem [shape: f32[8,1], index: 4, kind: input, shape index: {}]
  %s5 = inlined_call_operand.vmem [shape: f32[8,16], index: 5, kind: input, shape index: {}]
  %s6 = inlined_call_operand.vmem [shape: f32[8,1], index: 6, kind: input, shape index: {}]
  %s7 = inlined_call_operand.vmem [shape: f32[9,8,8], index: 7, kind: input, shape index: {}]
  %s8 = inlined_call_operand.vmem [shape: f32[8,1], index: 8, kind: input, shape index: {}]
  %s9 = inlined_call_operand.vmem [shape: f32[9,8,8], index: 9, kind: input, shape index: {}]
  %s10 = inlined_call_operand.vmem [shape: f32[8,1], index: 10, kind: input, shape index: {}]
  %s11 = inlined_call_operand.vmem [shape: f32[16,16], index: 11, kind: input, shape index: {}]
  %s12 = inlined_call_operand.vmem [shape: f32[16,1], index: 12, kind: input, shape index: {}]
  %s13 = inlined_call_operand.vmem [shape: f32[256,64], index: 13, kind: input, shape index: {}]
  %s14 = inlined_call_operand.vmem [shape: f32[9,1,256], index: 14, kind: input, shape index: {}]
  %s15 = inlined_call_operand.vmem [shape: f32[2,32,64], index: 15, kind: output, shape index: {}]
  %s16 = sld [smem:[#allocation0]]
  $region93: #{inception_b_forward.1} parent=0
    _
  %s18 = ssub.s32 1, %s16
  %s19 = scalar_select 0, %s18, %s16
  loop: start=0, step=1, limit=4
  $region2: #{inception_b_forward.1} parent=0 // loop_pre_header
    _
  $region3: #{inception_b_forward.1} parent=0 // loop_header
    %s21 = sphi 0, %s25
    %p22 = scmp.ge.s32.totalorder %s21, 4
    %s31 = sphi 0, %s33
    %s34 = sphi 0, %s31
    %s35 = sphi 0, %s34
    %s51 = sphi 0, %s35
    %s55 = sphi 0, %s55
    %s57 = sphi 0, %s55
    %s58 = sphi 0, %s57
    %s72 = sphi 0, %s58
    %s76 = sphi 0, %s76
    %s78 = sphi 0, %s76
    %s79 = sphi 0, %s78
    %s93 = sphi 0, %s79
    %s97 = sphi 0, %s97
    %s99 = sphi 0, %s97
    %s100 = sphi 0, %s99
    %s114 = sphi 0, %s100
    %s118 = sphi 0, %s118
    %s120 = sphi 0, %s118
    %s121 = sphi 0, %s120
    %s135 = sphi 0, %s121
    %s139 = sphi 0, %s139
    %s141 = sphi 0, %s139
    %s142 = sphi 0, %s141
    %s156 = sphi 0, %s142
    %s160 = sphi 0, %s160
    %s162 = sphi 0, %s160
    %s163 = sphi 0, %s162
    %s177 = sphi 0, %s163
    %s181 = sphi 0, %s181
    %s183 = sphi 0, %s181
    %s184 = sphi 0, %s183
    %s198 = sphi 0, %s184
    %s202 = sphi 0, %s202
    %s204 = sphi 0, %s202
    %s205 = sphi 0, %s204
    %s219 = sphi 0, %s205
    %s223 = sphi 0, %s223
    %s225 = sphi 0, %s223
    %s226 = sphi 0, %s225
    %s240 = sphi 0, %s226
    %s244 = sphi 0, %s244
    %s246 = sphi 0, %s244
    %s247 = sphi 0, %s246
    %s261 = sphi 0, %s247
    %s265 = sphi 0, %s265
    %s267 = sphi 0, %s265
    %s268 = sphi 0, %s267
    %s282 = sphi 0, %s268
    %s286 = sphi 0, %s286
    %s288 = sphi 0, %s286
    %s289 = sphi 0, %s288
    %s303 = sphi 0, %s289
    %s307 = sphi 0, %s307
    %s309 = sphi 0, %s307
    %s310 = sphi 0, %s309
    %s324 = sphi 0, %s310
    %s328 = sphi 0, %s328
    %s330 = sphi 0, %s328
    %s331 = sphi 0, %s330
    %s345 = sphi 0, %s331
    %s351 = sphi 0, %s353
    %s354 = sphi 0, %s351
    %s355 = sphi 0, %s354
    %s371 = sphi 0, %s355
  $region4: #{inception_b_forward.1} parent=0 // loop_header_branch
    %24 = sbr.rel (%p22) target = $region8
  $region5: #{inception_b_forward.1} parent=0 // loop_body
    %s26 = ssub.s32 %s21, 1
    %s27 = ssub.s32 %s21, 2
    %s28 = sadd.s32 %s21, 1
    %s29 = ssub.s32 %s21, %s28
    %p30 = scmp.eq.s32.totalorder %s29, 0
    %s32 = sadd.s32 %s31, 1
    %s33 = scalar_select %p30, %s31, %s32
    %p36 = pneg %p30
    %p37 = scmp.eq.s32.totalorder %s21, 1
    %p38 = por %p36, %p37
    %p39 = scmp.ne.s32.totalorder %s31, %s34
    %p40 = scmp.eq.s32.totalorder %s21, 0
    %p41 = por %p39, %p40
    %p42 = scmp.ne.s32.totalorder %s31, %s34
    %p43 = scmp.eq.s32.totalorder %s26, 1
    %p44 = por %p42, %p43
    %p45 = scmp.ne.s32.totalorder %s34, %s35
    %p46 = scmp.eq.s32.totalorder %s26, 0
    %p47 = por %p45, %p46
    %p48 = scmp.ne.s32.totalorder %s34, %s35
    %p49 = scmp.eq.s32.totalorder %s27, 1
    %p50 = por %p48, %p49
    %p52 = scmp.ne.s32.totalorder %s35, %s51
    %p53 = scmp.eq.s32.totalorder %s27, 0
    %p54 = por %p52, %p53
    %s56 = sadd.s32 %s55, 1
    %p59 = scmp.eq.s32.totalorder %s21, 1
    %p60 = scmp.ne.s32.totalorder %s55, %s57
    %p61 = scmp.eq.s32.totalorder %s21, 0
    %p62 = por %p60, %p61
    %p63 = scmp.ne.s32.totalorder %s55, %s57
    %p64 = scmp.eq.s32.totalorder %s26, 1
    %p65 = por %p63, %p64
    %p66 = scmp.ne.s32.totalorder %s57, %s58
    %p67 = scmp.eq.s32.totalorder %s26, 0
    %p68 = por %p66, %p67
    %p69 = scmp.ne.s32.totalorder %s57, %s58
    %p70 = scmp.eq.s32.totalorder %s27, 1
    %p71 = por %p69, %p70
    %p73 = scmp.ne.s32.totalorder %s58, %s72
    %p74 = scmp.eq.s32.totalorder %s27, 0
    %p75 = por %p73, %p74
    %s77 = sadd.s32 %s76, 1
    %p80 = scmp.eq.s32.totalorder %s21, 1
    %p81 = scmp.ne.s32.totalorder %s76, %s78
    %p82 = scmp.eq.s32.totalorder %s21, 0
    %p83 = por %p81, %p82
    %p84 = scmp.ne.s32.totalorder %s76, %s78
    %p85 = scmp.eq.s32.totalorder %s26, 1
    %p86 = por %p84, %p85
    %p87 = scmp.ne.s32.totalorder %s78, %s79
    %p88 = scmp.eq.s32.totalorder %s26, 0
    %p89 = por %p87, %p88
    %p90 = scmp.ne.s32.totalorder %s78, %s79
    %p91 = scmp.eq.s32.totalorder %s27, 1
    %p92 = por %p90, %p91
    %p94 = scmp.ne.s32.totalorder %s79, %s93
    %p95 = scmp.eq.s32.totalorder %s27, 0
    %p96 = por %p94, %p95
    %s98 = sadd.s32 %s97, 1
    %p101 = scmp.eq.s32.totalorder %s21, 1
    %p102 = scmp.ne.s32.totalorder %s97, %s99
    %p103 = scmp.eq.s32.totalorder %s21, 0
    %p104 = por %p102, %p103
    %p105 = scmp.ne.s32.totalorder %s97, %s99
    %p106 = scmp.eq.s32.totalorder %s26, 1
    %p107 = por %p105, %p106
    %p108 = scmp.ne.s32.totalorder %s99, %s100
    %p109 = scmp.eq.s32.totalorder %s26, 0
    %p110 = por %p108, %p109
    %p111 = scmp.ne.s32.totalorder %s99, %s100
    %p112 = scmp.eq.s32.totalorder %s27, 1
    %p113 = por %p111, %p112
    %p115 = scmp.ne.s32.totalorder %s100, %s114
    %p116 = scmp.eq.s32.totalorder %s27, 0
    %p117 = por %p115, %p116
    %s119 = sadd.s32 %s118, 1
    %p122 = scmp.eq.s32.totalorder %s21, 1
    %p123 = scmp.ne.s32.totalorder %s118, %s120
    %p124 = scmp.eq.s32.totalorder %s21, 0
    %p125 = por %p123, %p124
    %p126 = scmp.ne.s32.totalorder %s118, %s120
    %p127 = scmp.eq.s32.totalorder %s26, 1
    %p128 = por %p126, %p127
    %p129 = scmp.ne.s32.totalorder %s120, %s121
    %p130 = scmp.eq.s32.totalorder %s26, 0
    %p131 = por %p129, %p130
    %p132 = scmp.ne.s32.totalorder %s120, %s121
    %p133 = scmp.eq.s32.totalorder %s27, 1
    %p134 = por %p132, %p133
    %p136 = scmp.ne.s32.totalorder %s121, %s135
    %p137 = scmp.eq.s32.totalorder %s27, 0
    %p138 = por %p136, %p137
    %s140 = sadd.s32 %s139, 1
    %p143 = scmp.eq.s32.totalorder %s21, 1
    %p144 = scmp.ne.s32.totalorder %s139, %s141
    %p145 = scmp.eq.s32.totalorder %s21, 0
    %p146 = por %p144, %p145
    %p147 = scmp.ne.s32.totalorder %s139, %s141
    %p148 = scmp.eq.s32.totalorder %s26, 1
    %p149 = por %p147, %p148
    %p150 = scmp.ne.s32.totalorder %s141, %s142
    %p151 = scmp.eq.s32.totalorder %s26, 0
    %p152 = por %p150, %p151
    %p153 = scmp.ne.s32.totalorder %s141, %s142
    %p154 = scmp.eq.s32.totalorder %s27, 1
    %p155 = por %p153, %p154
    %p157 = scmp.ne.s32.totalorder %s142, %s156
    %p158 = scmp.eq.s32.totalorder %s27, 0
    %p159 = por %p157, %p158
    %s161 = sadd.s32 %s160, 1
    %p164 = scmp.eq.s32.totalorder %s21, 1
    %p165 = scmp.ne.s32.totalorder %s160, %s162
    %p166 = scmp.eq.s32.totalorder %s21, 0
    %p167 = por %p165, %p166
    %p168 = scmp.ne.s32.totalorder %s160, %s162
    %p169 = scmp.eq.s32.totalorder %s26, 1
    %p170 = por %p168, %p169
    %p171 = scmp.ne.s32.totalorder %s162, %s163
    %p172 = scmp.eq.s32.totalorder %s26, 0
    %p173 = por %p171, %p172
    %p174 = scmp.ne.s32.totalorder %s162, %s163
    %p175 = scmp.eq.s32.totalorder %s27, 1
    %p176 = por %p174, %p175
    %p178 = scmp.ne.s32.totalorder %s163, %s177
    %p179 = scmp.eq.s32.totalorder %s27, 0
    %p180 = por %p178, %p179
    %s182 = sadd.s32 %s181, 1
    %p185 = scmp.eq.s32.totalorder %s21, 1
    %p186 = scmp.ne.s32.totalorder %s181, %s183
    %p187 = scmp.eq.s32.totalorder %s21, 0
    %p188 = por %p186, %p187
    %p189 = scmp.ne.s32.totalorder %s181, %s183
    %p190 = scmp.eq.s32.totalorder %s26, 1
    %p191 = por %p189, %p190
    %p192 = scmp.ne.s32.totalorder %s183, %s184
    %p193 = scmp.eq.s32.totalorder %s26, 0
    %p194 = por %p192, %p193
    %p195 = scmp.ne.s32.totalorder %s183, %s184
    %p196 = scmp.eq.s32.totalorder %s27, 1
    %p197 = por %p195, %p196
    %p199 = scmp.ne.s32.totalorder %s184, %s198
    %p200 = scmp.eq.s32.totalorder %s27, 0
    %p201 = por %p199, %p200
    %s203 = sadd.s32 %s202, 1
    %p206 = scmp.eq.s32.totalorder %s21, 1
    %p207 = scmp.ne.s32.totalorder %s202, %s204
    %p208 = scmp.eq.s32.totalorder %s21, 0
    %p209 = por %p207, %p208
    %p210 = scmp.ne.s32.totalorder %s202, %s204
    %p211 = scmp.eq.s32.totalorder %s26, 1
    %p212 = por %p210, %p211
    %p213 = scmp.ne.s32.totalorder %s204, %s205
    %p214 = scmp.eq.s32.totalorder %s26, 0
    %p215 = por %p213, %p214
    %p216 = scmp.ne.s32.totalorder %s204, %s205
    %p217 = scmp.eq.s32.totalorder %s27, 1
    %p218 = por %p216, %p217
    %p220 = scmp.ne.s32.totalorder %s205, %s219
    %p221 = scmp.eq.s32.totalorder %s27, 0
    %p222 = por %p220, %p221
    %s224 = sadd.s32 %s223, 1
    %p227 = scmp.eq.s32.totalorder %s21, 1
    %p228 = scmp.ne.s32.totalorder %s223, %s225
    %p229 = scmp.eq.s32.totalorder %s21, 0
    %p230 = por %p228, %p229
    %p231 = scmp.ne.s32.totalorder %s223, %s225
    %p232 = scmp.eq.s32.totalorder %s26, 1
    %p233 = por %p231, %p232
    %p234 = scmp.ne.s32.totalorder %s225, %s226
    %p235 = scmp.eq.s32.totalorder %s26, 0
    %p236 = por %p234, %p235
    %p237 = scmp.ne.s32.totalorder %s225, %s226
    %p238 = scmp.eq.s32.totalorder %s27, 1
    %p239 = por %p237, %p238
    %p241 = scmp.ne.s32.totalorder %s226, %s240
    %p242 = scmp.eq.s32.totalorder %s27, 0
    %p243 = por %p241, %p242
    %s245 = sadd.s32 %s244, 1
    %p248 = scmp.eq.s32.totalorder %s21, 1
    %p249 = scmp.ne.s32.totalorder %s244, %s246
    %p250 = scmp.eq.s32.totalorder %s21, 0
    %p251 = por %p249, %p250
    %p252 = scmp.ne.s32.totalorder %s244, %s246
    %p253 = scmp.eq.s32.totalorder %s26, 1
    %p254 = por %p252, %p253
    %p255 = scmp.ne.s32.totalorder %s246, %s247
    %p256 = scmp.eq.s32.totalorder %s26, 0
    %p257 = por %p255, %p256
    %p258 = scmp.ne.s32.totalorder %s246, %s247
    %p259 = scmp.eq.s32.totalorder %s27, 1
    %p260 = por %p258, %p259
    %p262 = scmp.ne.s32.totalorder %s247, %s261
    %p263 = scmp.eq.s32.totalorder %s27, 0
    %p264 = por %p262, %p263
    %s266 = sadd.s32 %s265, 1
    %p269 = scmp.eq.s32.totalorder %s21, 1
    %p270 = scmp.ne.s32.totalorder %s265, %s267
    %p271 = scmp.eq.s32.totalorder %s21, 0
    %p272 = por %p270, %p271
    %p273 = scmp.ne.s32.totalorder %s265, %s267
    %p274 = scmp.eq.s32.totalorder %s26, 1
    %p275 = por %p273, %p274
    %p276 = scmp.ne.s32.totalorder %s267, %s268
    %p277 = scmp.eq.s32.totalorder %s26, 0
    %p278 = por %p276, %p277
    %p279 = scmp.ne.s32.totalorder %s267, %s268
    %p280 = scmp.eq.s32.totalorder %s27, 1
    %p281 = por %p279, %p280
    %p283 = scmp.ne.s32.totalorder %s268, %s282
    %p284 = scmp.eq.s32.totalorder %s27, 0
    %p285 = por %p283, %p284
    %s287 = sadd.s32 %s286, 1
    %p290 = scmp.eq.s32.totalorder %s21, 1
    %p291 = scmp.ne.s32.totalorder %s286, %s288
    %p292 = scmp.eq.s32.totalorder %s21, 0
    %p293 = por %p291, %p292
    %p294 = scmp.ne.s32.totalorder %s286, %s288
    %p295 = scmp.eq.s32.totalorder %s26, 1
    %p296 = por %p294, %p295
    %p297 = scmp.ne.s32.totalorder %s288, %s289
    %p298 = scmp.eq.s32.totalorder %s26, 0
    %p299 = por %p297, %p298
    %p300 = scmp.ne.s32.totalorder %s288, %s289
    %p301 = scmp.eq.s32.totalorder %s27, 1
    %p302 = por %p300, %p301
    %p304 = scmp.ne.s32.totalorder %s289, %s303
    %p305 = scmp.eq.s32.totalorder %s27, 0
    %p306 = por %p304, %p305
    %s308 = sadd.s32 %s307, 1
    %p311 = scmp.eq.s32.totalorder %s21, 1
    %p312 = scmp.ne.s32.totalorder %s307, %s309
    %p313 = scmp.eq.s32.totalorder %s21, 0
    %p314 = por %p312, %p313
    %p315 = scmp.ne.s32.totalorder %s307, %s309
    %p316 = scmp.eq.s32.totalorder %s26, 1
    %p317 = por %p315, %p316
    %p318 = scmp.ne.s32.totalorder %s309, %s310
    %p319 = scmp.eq.s32.totalorder %s26, 0
    %p320 = por %p318, %p319
    %p321 = scmp.ne.s32.totalorder %s309, %s310
    %p322 = scmp.eq.s32.totalorder %s27, 1
    %p323 = por %p321, %p322
    %p325 = scmp.ne.s32.totalorder %s310, %s324
    %p326 = scmp.eq.s32.totalorder %s27, 0
    %p327 = por %p325, %p326
    %s329 = sadd.s32 %s328, 1
    %p332 = scmp.eq.s32.totalorder %s21, 1
    %p333 = scmp.ne.s32.totalorder %s328, %s330
    %p334 = scmp.eq.s32.totalorder %s21, 0
    %p335 = por %p333, %p334
    %p336 = scmp.ne.s32.totalorder %s328, %s330
    %p337 = scmp.eq.s32.totalorder %s26, 1
    %p338 = por %p336, %p337
    %p339 = scmp.ne.s32.totalorder %s330, %s331
    %p340 = scmp.eq.s32.totalorder %s26, 0
    %p341 = por %p339, %p340
    %p342 = scmp.ne.s32.totalorder %s330, %s331
    %p343 = scmp.eq.s32.totalorder %s27, 1
    %p344 = por %p342, %p343
    %p346 = scmp.ne.s32.totalorder %s331, %s345
    %p347 = scmp.eq.s32.totalorder %s27, 0
    %p348 = por %p346, %p347
    %s349 = ssub.s32 %s21, %s28
    %p350 = scmp.eq.s32.totalorder %s349, 0
    %s352 = sadd.s32 %s351, 1
    %s353 = scalar_select %p350, %s351, %s352
    %p356 = pneg %p350
    %p357 = scmp.eq.s32.totalorder %s21, 1
    %p358 = por %p356, %p357
    %p359 = scmp.ne.s32.totalorder %s351, %s354
    %p360 = scmp.eq.s32.totalorder %s21, 0
    %p361 = por %p359, %p360
    %p362 = scmp.ne.s32.totalorder %s351, %s354
    %p363 = scmp.eq.s32.totalorder %s26, 1
    %p364 = por %p362, %p363
    %p365 = scmp.ne.s32.totalorder %s354, %s355
    %p366 = scmp.eq.s32.totalorder %s26, 0
    %p367 = por %p365, %p366
    %p368 = scmp.ne.s32.totalorder %s354, %s355
    %p369 = scmp.eq.s32.totalorder %s27, 1
    %p370 = por %p368, %p369
    %p372 = scmp.ne.s32.totalorder %s355, %s371
    %p373 = scmp.eq.s32.totalorder %s27, 0
    %p374 = por %p372, %p373
    %p375 = scmp.le.s32.totalorder 1, %s21
    %p376 = scmp.lt.s32.totalorder %s21, 3
    %p377 = pnand %p375, %p376
    %p378 = pneg %p377
    // Predicated region
    $region9: #{inception_b_forward.1} parent=5 // pred_check
      _
    $region10: #{inception_b_forward.1} parent=5 // pred_check_branch
      %380 = sbr.rel (%p377) target = $region12
    $region11: #{inception_b_forward.1} parent=5 // pred_region
      %s381 = ssub.s32 %s21, 1
      // Predicated region
      $region13: #{inception_b_forward.1} parent=11 // pred_check
        %p382 = pneg %p68
      $region14: #{inception_b_forward.1} parent=11 // pred_check_branch
        %384 = sbr.rel (%p382) target = $region16
      $region15: #{inception_b_forward.1} parent=11 // pred_region
        _
      $region16: #{inception_b_forward.1} parent=11 // pred_fallthru
        _
      // Predicated region
      $region17: #{inception_b_forward.1} parent=11 // pred_check
        %p385 = pneg %p89
      $region18: #{inception_b_forward.1} parent=11 // pred_check_branch
        %387 = sbr.rel (%p385) target = $region20
      $region19: #{inception_b_forward.1} parent=11 // pred_region
        _
      $region20: #{inception_b_forward.1} parent=11 // pred_fallthru
        _
      // Predicated region
      $region21: #{inception_b_forward.1} parent=11 // pred_check
        %p388 = pneg %p110
      $region22: #{inception_b_forward.1} parent=11 // pred_check_branch
        %390 = sbr.rel (%p388) target = $region24
      $region23: #{inception_b_forward.1} parent=11 // pred_region
        _
      $region24: #{inception_b_forward.1} parent=11 // pred_fallthru
        _
      // Predicated region
      $region25: #{inception_b_forward.1} parent=11 // pred_check
        %p391 = pneg %p131
      $region26: #{inception_b_forward.1} parent=11 // pred_check_branch
        %393 = sbr.rel (%p391) target = $region28
      $region27: #{inception_b_forward.1} parent=11 // pred_region
        _
      $region28: #{inception_b_forward.1} parent=11 // pred_fallthru
        _
      // Predicated region
      $region29: #{inception_b_forward.1} parent=11 // pred_check
        %p394 = pneg %p152
      $region30: #{inception_b_forward.1} parent=11 // pred_check_branch
        %396 = sbr.rel (%p394) target = $region32
      $region31: #{inception_b_forward.1} parent=11 // pred_region
        _
      $region32: #{inception_b_forward.1} parent=11 // pred_fallthru
        _
      // Predicated region
      $region33: #{inception_b_forward.1} parent=11 // pred_check
        %p397 = pneg %p173
      $region34: #{inception_b_forward.1} parent=11 // pred_check_branch
        %399 = sbr.rel (%p397) target = $region36
      $region35: #{inception_b_forward.1} parent=11 // pred_region
        _
      $region36: #{inception_b_forward.1} parent=11 // pred_fallthru
        _
      // Predicated region
      $region37: #{inception_b_forward.1} parent=11 // pred_check
        %p400 = pneg %p194
      $region38: #{inception_b_forward.1} parent=11 // pred_check_branch
        %402 = sbr.rel (%p400) target = $region40
      $region39: #{inception_b_forward.1} parent=11 // pred_region
        _
      $region40: #{inception_b_forward.1} parent=11 // pred_fallthru
        _
      // Predicated region
      $region41: #{inception_b_forward.1} parent=11 // pred_check
        %p403 = pneg %p215
      $region42: #{inception_b_forward.1} parent=11 // pred_check_branch
        %405 = sbr.rel (%p403) target = $region44
      $region43: #{inception_b_forward.1} parent=11 // pred_region
        _
      $region44: #{inception_b_forward.1} parent=11 // pred_fallthru
        _
      // Predicated region
      $region45: #{inception_b_forward.1} parent=11 // pred_check
        %p406 = pneg %p236
      $region46: #{inception_b_forward.1} parent=11 // pred_check_branch
        %408 = sbr.rel (%p406) target = $region48
      $region47: #{inception_b_forward.1} parent=11 // pred_region
        _
      $region48: #{inception_b_forward.1} parent=11 // pred_fallthru
        _
      // Predicated region
      $region49: #{inception_b_forward.1} parent=11 // pred_check
        %p409 = pneg %p257
      $region50: #{inception_b_forward.1} parent=11 // pred_check_branch
        %411 = sbr.rel (%p409) target = $region52
      $region51: #{inception_b_forward.1} parent=11 // pred_region
        _
      $region52: #{inception_b_forward.1} parent=11 // pred_fallthru
        _
      // Predicated region
      $region53: #{inception_b_forward.1} parent=11 // pred_check
        %p412 = pneg %p278
      $region54: #{inception_b_forward.1} parent=11 // pred_check_branch
        %414 = sbr.rel (%p412) target = $region56
      $region55: #{inception_b_forward.1} parent=11 // pred_region
        _
      $region56: #{inception_b_forward.1} parent=11 // pred_fallthru
        _
      // Predicated region
      $region57: #{inception_b_forward.1} parent=11 // pred_check
        %p415 = pneg %p299
      $region58: #{inception_b_forward.1} parent=11 // pred_check_branch
        %417 = sbr.rel (%p415) target = $region60
      $region59: #{inception_b_forward.1} parent=11 // pred_region
        _
      $region60: #{inception_b_forward.1} parent=11 // pred_fallthru
        _
      // Predicated region
      $region61: #{inception_b_forward.1} parent=11 // pred_check
        %p418 = pneg %p320
      $region62: #{inception_b_forward.1} parent=11 // pred_check_branch
        %420 = sbr.rel (%p418) target = $region64
      $region63: #{inception_b_forward.1} parent=11 // pred_region
        _
      $region64: #{inception_b_forward.1} parent=11 // pred_fallthru
        _
      // Predicated region
      $region65: #{inception_b_forward.1} parent=11 // pred_check
        %p421 = pneg %p341
      $region66: #{inception_b_forward.1} parent=11 // pred_check_branch
        %423 = sbr.rel (%p421) target = $region68
      $region67: #{inception_b_forward.1} parent=11 // pred_region
        _
      $region68: #{inception_b_forward.1} parent=11 // pred_fallthru
        _
    $region12: #{inception_b_forward.1} parent=5 // pred_fallthru
      _
    %p424 = scmp.lt.s32.totalorder %s21, 2
    // Predicated region
    $region69: #{inception_b_forward.1} parent=5 // pred_check
      %p425 = pneg %p424
    $region70: #{inception_b_forward.1} parent=5 // pred_check_branch
      %427 = sbr.rel (%p425) target = $region72
    $region71: #{inception_b_forward.1} parent=5 // pred_region
      // Predicated region
      $region73: #{inception_b_forward.1} parent=71 // pred_check
        %p428 = pneg %p41
      $region74: #{inception_b_forward.1} parent=71 // pred_check_branch
        %430 = sbr.rel (%p428) target = $region76
      $region75: #{inception_b_forward.1} parent=71 // pred_region
        %p431 = scmp.lt.s32.totalorder %s21, 1
        %s432 = scalar_select %p431, %s21, 1
        %s433 = smul.addr %s432, 4
        %s434 = smul.addr %s433, 8
        %s435 = scalar_lea.vmem %s0, %s434
      $region76: #{inception_b_forward.1} parent=71 // pred_fallthru
        _
    $region72: #{inception_b_forward.1} parent=5 // pred_fallthru
      _
    %p436 = scmp.le.s32.totalorder 1, %s21
    %p437 = scmp.lt.s32.totalorder %s21, 3
    %p438 = pnand %p436, %p437
    %p439 = pneg %p438
    // Predicated region
    $region77: #{inception_b_forward.1} parent=5 // pred_check
      _
    $region78: #{inception_b_forward.1} parent=5 // pred_check_branch
      %441 = sbr.rel (%p438) target = $region80
    $region79: #{inception_b_forward.1} parent=5 // pred_region
      %s442 = ssub.s32 %s21, 1
      %p443 = scmp.lt.s32.totalorder %s26, 1
      %s444 = scalar_select %p443, %s26, 1
      %s445 = smul.addr %s444, 4
      %s446 = smul.addr %s445, 8
      %s447 = scalar_lea.vmem %s0, %s446
      %p448 = pneg %p47
      %p449 = pneg %p44
      %p450 = pneg %p68
      %p451 = pneg %p65
      %p452 = pneg %p89
      %p453 = pneg %p86
      %p454 = pneg %p110
      %p455 = pneg %p107
      %p456 = pneg %p131
      %p457 = pneg %p128
      %p458 = pneg %p152
      %p459 = pneg %p149
      %p460 = pneg %p173
      %p461 = pneg %p170
      %p462 = pneg %p194
      %p463 = pneg %p191
      %p464 = pneg %p215
      %p465 = pneg %p212
      %p466 = pneg %p236
      %p467 = pneg %p233
      %p468 = pneg %p257
      %p469 = pneg %p254
      %p470 = pneg %p278
      %p471 = pneg %p275
      %p472 = pneg %p299
      %p473 = pneg %p296
      %p474 = pneg %p320
      %p475 = pneg %p317
      %p476 = pneg %p341
      %p477 = pneg %p338
      %p478 = pneg %p367
      %p479 = pneg %p364
      %p480 = scmp.lt.s32.totalorder %s26, 1
      %s481 = scalar_select %p480, %s26, 1
      %s482 = smul.addr %s481, 4
      %s483 = smul.addr %s482, 8
      %s484 = scalar_lea.vmem %s15, %s483
      %p485 = scmp.lt.s32.totalorder %s26, 1
      %s486 = scalar_select %p485, %s26, 1
      %s487 = smul.addr %s486, 4
      %s488 = smul.addr %s487, 8
      %s489 = scalar_lea.vmem %s0, %s488
      %p490 = scmp.lt.s32.totalorder %s26, 1
      %s491 = scalar_select %p490, %s26, 1
      %s492 = smul.addr %s491, 4
      %s493 = smul.addr %s492, 8
      %s494 = scalar_lea.vmem %s15, %s493
      %v495 = vld [vmem:[%s489] sm:$0xff]
      %v496 = vld [vmem:[%s489 + $0x8] sm:$0xff]
      %v497 = vld [vmem:[%s489 + $0x10] sm:$0xff]
      %v498 = vld [vmem:[%s489 + $0x18] sm:$0xff]
      %v499 = vld [vmem:[%s13] sm:$0xff]
      %v500 = vld [vmem:[%s13 + $0x8] sm:$0xff]
      %v501 = vld [vmem:[%s13 + $0x10] sm:$0xff]
      %v502 = vld [vmem:[%s13 + $0x18] sm:$0xff]
      %v503 = vld [vmem:[%s13 + $0x20] sm:$0xff]
      %v504 = vld [vmem:[%s13 + $0x28] sm:$0xff]
      %v505 = vld [vmem:[%s13 + $0x30] sm:$0xff]
      %v506 = vld [vmem:[%s13 + $0x38] sm:$0xff]
      %v507 = vld [vmem:[%s13 + $0x40] sm:$0xff]
      %v508 = vld [vmem:[%s13 + $0x48] sm:$0xff]
      %v509 = vld [vmem:[%s13 + $0x50] sm:$0xff]
      %v510 = vld [vmem:[%s13 + $0x58] sm:$0xff]
      %v511 = vld [vmem:[%s13 + $0x60] sm:$0xff]
      %v512 = vld [vmem:[%s13 + $0x68] sm:$0xff]
      %v513 = vld [vmem:[%s13 + $0x70] sm:$0xff]
      %v514 = vld [vmem:[%s13 + $0x78] sm:$0xff]
      %v515 = vld [vmem:[%s13 + $0x80] sm:$0xff]
      %v516 = vld [vmem:[%s13 + $0x88] sm:$0xff]
      %v517 = vld [vmem:[%s13 + $0x90] sm:$0xff]
      %v518 = vld [vmem:[%s13 + $0x98] sm:$0xff]
      %v519 = vld [vmem:[%s13 + $0xa0] sm:$0xff]
      %v520 = vld [vmem:[%s13 + $0xa8] sm:$0xff]
      %v521 = vld [vmem:[%s13 + $0xb0] sm:$0xff]
      %v522 = vld [vmem:[%s13 + $0xb8] sm:$0xff]
      %v523 = vld [vmem:[%s13 + $0xc0] sm:$0xff]
      %v524 = vld [vmem:[%s13 + $0xc8] sm:$0xff]
      %v525 = vld [vmem:[%s13 + $0xd0] sm:$0xff]
      %v526 = vld [vmem:[%s13 + $0xd8] sm:$0xff]
      %v527 = vld [vmem:[%s13 + $0xe0] sm:$0xff]
      %v528 = vld [vmem:[%s13 + $0xe8] sm:$0xff]
      %v529 = vld [vmem:[%s13 + $0xf0] sm:$0xff]
      %v530 = vld [vmem:[%s13 + $0xf8] sm:$0xff]
      %v531 = vld [vmem:[%s1] sm:$0xff]
      %v532 = vld [vmem:[%s2] sm:$0xff]
      %534 = vset.pattern.permute.xlu0 0
      %535 = vperm.xlu0 %534, %v532
      %v536 = vpop.permute.xlu0 %535
      %vm538 = vcmask 130048
      %v540 = vsel %vm538, %v531, 0
      %542 = vmatprep.subr.mxu0 0.0
      %543 = vmatpush1.msra.mxu0 0.0
      %544 = vmatprep.subr.mxu0 0.0
      %545 = vmatpush1.msra.mxu0 0.0
      %546 = vmatprep.subr.mxu0 0.0
      %547 = vmatpush1.msra.mxu0 0.0
      %548 = vmatprep.subr.mxu0 0.0
      %549 = vmatpush1.msra.mxu0 0.0
      %550 = vmatprep.subr.mxu0 0.0
      %551 = vmatpush1.msra.mxu0 0.0
      %552 = vmatprep.subr.mxu0 0.0
      %553 = vmatpush1.msra.mxu0 0.0
      %554 = vmatprep.subr.mxu0 0.0
      %555 = vmatpush1.msra.mxu0 0.0
      %556 = vmatprep.subr.mxu0 0.0
      %557 = vmatpush1.msra.mxu0 0.0
      %558 = vmatprep.subr.mxu0 0.0
      %559 = vmatpush1.msra.mxu0 0.0
      %560 = vmatprep.subr.mxu0 0.0
      %561 = vmatpush1.msra.mxu0 0.0
      %562 = vmatprep.subr.mxu0 0.0
      %563 = vmatpush1.msra.mxu0 0.0
      %564 = vmatprep.subr.mxu0 0.0
      %565 = vmatpush1.msra.mxu0 0.0
      %566 = vmatprep.subr.mxu0 0.0
      %567 = vmatpush1.msra.mxu0 0.0
      %568 = vmatprep.subr.mxu0 0.0
      %569 = vmatpush1.msra.mxu0 0.0
      %570 = vmatprep.subr.mxu0 %v498
      %571 = vmatpush1.msra.mxu0 %v497
      %572 = vmatprep.subr.mxu0 %v496
      %573 = vmatpush1.msra.mxu0 %v495
      %574 = vmatprep.subr.mxu0 0.0
      %575 = vmatpush2.msra.mxu0 0.0
      %576 = vmatprep.subr.mxu0 0.0
      %577 = vmatpush2.msra.mxu0 0.0
      %578 = vmatprep.subr.mxu0 0.0
      %579 = vmatpush2.msra.mxu0 0.0
      %580 = vmatprep.subr.mxu0 0.0
      %581 = vmatpush2.msra.mxu0 0.0
      %582 = vmatprep.subr.mxu0 0.0
      %583 = vmatpush2.msra.mxu0 0.0
      %584 = vmatprep.subr.mxu0 0.0
      %585 = vmatpush2.msra.mxu0 0.0
      %586 = vmatprep.subr.mxu0 0.0
      %587 = vmatpush2.msra.mxu0 0.0
      %588 = vmatprep.subr.mxu0 0.0
      %589 = vmatpush2.msra.mxu0 0.0
      %590 = vmatprep.subr.mxu0 0.0
      %591 = vmatpush2.msra.mxu0 0.0
      %592 = vmatprep.subr.mxu0 0.0
      %593 = vmatpush2.msra.mxu0 0.0
      %594 = vmatprep.subr.mxu0 0.0
      %595 = vmatpush2.msra.mxu0 0.0
      %596 = vmatprep.subr.mxu0 0.0
      %597 = vmatpush2.msra.mxu0 0.0
      %598 = vmatprep.subr.mxu0 0.0
      %599 = vmatpush2.msra.mxu0 0.0
      %600 = vmatprep.subr.mxu0 0.0
      %601 = vmatpush2.msra.mxu0 0.0
      %602 = vmatprep.subr.mxu0 0.0
      %603 = vmatpush2.msra.mxu0 0.0
      %604 = vmatprep.subr.mxu0 0.0
      %605 = vmatpush2.msra.mxu0 0.0
      %606 = vmatprep.mubr.f32.mxu0 0.0
      %607 = vmatmul.mubr.f32.gmra.mxu0 %v540
      %v608 = vpop.f32.mrf.mxu0
      %v609 = vadd.f32 %v536, %v608
      %v610 = vpop.f32.mrf.mxu0
      %v611 = vadd.f32 %v536, %v610
      %612 = vdwg.mxu0
      %v613 = vmax.f32 %v609, 0.0
      %v614 = vmax.f32 %v611, 0.0
      %v615 = vmin.f32 %v613, 6.0
      %v616 = vmin.f32 %v614, 6.0
      %v617 = vld [vmem:[%s14] sm:$0x3]
      %620 = vrot.lane.b32.xlu0 %v615, 17
      %v621 = vpop.permute.xlu0 %620
      %622 = vrot.lane.b32.xlu0 %v616, 17
      %v623 = vpop.permute.xlu0 %622
      %vm624 = vcmask 138240
      %v625 = vsel %vm624, %v621, %v623
      %v628 = vsel %vm624, 0.0, %v621
      %v629 = vld [vmem:[%s3] sm:$0xff]
      %v631 = vlaneseq
      %v632 = vshrl.u32 %v631, 7
      %v633 = vsub.s32 0, %v632
      %v634 = vrot.slane %v617, %v633
      %v635 = vlaneseq
      %v636 = vshrl.u32 %v635, 7
      %v637 = vsub.s32 1, %v636
      %v638 = vrot.slane %v617, %v637
      %v641 = vmul.f32 %v628, %v634
      %v642 = vmul.f32 %v625, %v638
      %s643 = scalar_lea.vmem %s14, 2
      %v644 = vld [vmem:[%s643] sm:$0x3]
      %645 = vrot.lane.b32.xlu0 %v615, 16
      %v646 = vpop.permute.xlu0 %645
      %647 = vrot.lane.b32.xlu0 %v616, 16
      %v648 = vpop.permute.xlu0 %647
      %v649 = vsel %vm538, %v646, %v648
      %v652 = vsel %vm538, 0.0, %v646
      %s653 = scalar_lea.vmem %s3, 8
      %v654 = vld [vmem:[%s653] sm:$0xff]
      %v656 = vlaneseq
      %v657 = vshrl.u32 %v656, 7
      %v658 = vsub.s32 0, %v657
      %v659 = vrot.slane %v644, %v658
      %v660 = vlaneseq
      %v661 = vshrl.u32 %v660, 7
      %v662 = vsub.s32 1, %v661
      %v663 = vrot.slane %v644, %v662
      %v666 = vmul.f32 %v652, %v659
      %v667 = vmul.f32 %v649, %v663
      %vm668 = vcmask 64512
      %v670 = vsel %vm668, %v654, 0
      %672 = vmatprep.subr.mxu0 0.0
      %673 = vmatpush1.msra.mxu0 0.0
      %674 = vmatprep.subr.mxu0 0.0
      %675 = vmatpush1.msra.mxu0 0.0
      %676 = vmatprep.subr.mxu0 0.0
      %677 = vmatpush1.msra.mxu0 0.0
      %678 = vmatprep.subr.mxu0 0.0
      %679 = vmatpush1.msra.mxu0 0.0
      %680 = vmatprep.subr.mxu0 0.0
      %681 = vmatpush1.msra.mxu0 0.0
      %682 = vmatprep.subr.mxu0 0.0
      %683 = vmatpush1.msra.mxu0 0.0
      %684 = vmatprep.subr.mxu0 0.0
      %685 = vmatpush1.msra.mxu0 0.0
      %686 = vmatprep.subr.mxu0 0.0
      %687 = vmatpush1.msra.mxu0 0.0
      %688 = vmatprep.subr.mxu0 0.0
      %689 = vmatpush1.msra.mxu0 0.0
      %690 = vmatprep.subr.mxu0 0.0
      %691 = vmatpush1.msra.mxu0 0.0
      %692 = vmatprep.subr.mxu0 0.0
      %693 = vmatpush1.msra.mxu0 0.0
      %694 = vmatprep.subr.mxu0 0.0
      %695 = vmatpush1.msra.mxu0 0.0
      %696 = vmatprep.subr.mxu0 0.0
      %697 = vmatpush1.msra.mxu0 0.0
      %698 = vmatprep.subr.mxu0 0.0
      %699 = vmatpush1.msra.mxu0 0.0
      %700 = vmatprep.subr.mxu0 0.0
      %701 = vmatpush1.msra.mxu0 0.0
      %702 = vmatprep.subr.mxu0 %v667
      %703 = vmatpush1.msra.mxu0 %v666
      %704 = vmatprep.subr.mxu0 0.0
      %705 = vmatpush2.msra.mxu0 0.0
      %706 = vmatprep.subr.mxu0 0.0
      %707 = vmatpush2.msra.mxu0 0.0
      %708 = vmatprep.subr.mxu0 0.0
      %709 = vmatpush2.msra.mxu0 0.0
      %710 = vmatprep.subr.mxu0 0.0
      %711 = vmatpush2.msra.mxu0 0.0
      %712 = vmatprep.subr.mxu0 0.0
      %713 = vmatpush2.msra.mxu0 0.0
      %714 = vmatprep.subr.mxu0 0.0
      %715 = vmatpush2.msra.mxu0 0.0
      %716 = vmatprep.subr.mxu0 0.0
      %717 = vmatpush2.msra.mxu0 0.0
      %718 = vmatprep.subr.mxu0 0.0
      %719 = vmatpush2.msra.mxu0 0.0
      %720 = vmatprep.subr.mxu0 0.0
      %721 = vmatpush2.msra.mxu0 0.0
      %722 = vmatprep.subr.mxu0 0.0
      %723 = vmatpush2.msra.mxu0 0.0
      %724 = vmatprep.subr.mxu0 0.0
      %725 = vmatpush2.msra.mxu0 0.0
      %726 = vmatprep.subr.mxu0 0.0
      %727 = vmatpush2.msra.mxu0 0.0
      %728 = vmatprep.subr.mxu0 0.0
      %729 = vmatpush2.msra.mxu0 0.0
      %730 = vmatprep.subr.mxu0 0.0
      %731 = vmatpush2.msra.mxu0 0.0
      %732 = vmatprep.subr.mxu0 0.0
      %733 = vmatpush2.msra.mxu0 0.0
      %734 = vmatprep.subr.mxu0 0.0
      %735 = vmatpush2.msra.mxu0 0.0
      %736 = vmatprep.mubr.f32.mxu0 0.0
      %737 = vmatmul.mubr.f32.gmra.mxu0 %v670
      %v738 = vpop.f32.mrf.mxu0
      %v739 = vadd.f32 0.0, %v738
      %v740 = vpop.f32.mrf.mxu0
      %v741 = vadd.f32 0.0, %v740
      %742 = vdwg.mxu0
      %v744 = vsel %vm668, %v629, 0
      %746 = vmatprep.subr.mxu0 0.0
      %747 = vmatpush1.msra.mxu0 0.0
      %748 = vmatprep.subr.mxu0 0.0
      %749 = vmatpush1.msra.mxu0 0.0
      %750 = vmatprep.subr.mxu0 0.0
      %751 = vmatpush1.msra.mxu0 0.0
      %752 = vmatprep.subr.mxu0 0.0
      %753 = vmatpush1.msra.mxu0 0.0
      %754 = vmatprep.subr.mxu0 0.0
      %755 = vmatpush1.msra.mxu0 0.0
      %756 = vmatprep.subr.mxu0 0.0
      %757 = vmatpush1.msra.mxu0 0.0
      %758 = vmatprep.subr.mxu0 0.0
      %759 = vmatpush1.msra.mxu0 0.0
      %760 = vmatprep.subr.mxu0 0.0
      %761 = vmatpush1.msra.mxu0 0.0
      %762 = vmatprep.subr.mxu0 0.0
      %763 = vmatpush1.msra.mxu0 0.0
      %764 = vmatprep.subr.mxu0 0.0
      %765 = vmatpush1.msra.mxu0 0.0
      %766 = vmatprep.subr.mxu0 0.0
      %767 = vmatpush1.msra.mxu0 0.0
      %768 = vmatprep.subr.mxu0 0.0
      %769 = vmatpush1.msra.mxu0 0.0
      %770 = vmatprep.subr.mxu0 0.0
      %771 = vmatpush1.msra.mxu0 0.0
      %772 = vmatprep.subr.mxu0 0.0
      %773 = vmatpush1.msra.mxu0 0.0
      %774 = vmatprep.subr.mxu0 0.0
      %775 = vmatpush1.msra.mxu0 0.0
      %776 = vmatprep.subr.mxu0 %v642
      %777 = vmatpush1.msra.mxu0 %v641
      %778 = vmatprep.subr.mxu0 0.0
      %779 = vmatpush2.msra.mxu0 0.0
      %780 = vmatprep.subr.mxu0 0.0
      %781 = vmatpush2.msra.mxu0 0.0
      %782 = vmatprep.subr.mxu0 0.0
      %783 = vmatpush2.msra.mxu0 0.0
      %784 = vmatprep.subr.mxu0 0.0
      %785 = vmatpush2.msra.mxu0 0.0
      %786 = vmatprep.subr.mxu0 0.0
      %787 = vmatpush2.msra.mxu0 0.0
      %788 = vmatprep.subr.mxu0 0.0
      %789 = vmatpush2.msra.mxu0 0.0
      %790 = vmatprep.subr.mxu0 0.0
      %791 = vmatpush2.msra.mxu0 0.0
      %792 = vmatprep.subr.mxu0 0.0
      %793 = vmatpush2.msra.mxu0 0.0
      %794 = vmatprep.subr.mxu0 0.0
      %795 = vmatpush2.msra.mxu0 0.0
      %796 = vmatprep.subr.mxu0 0.0
      %797 = vmatpush2.msra.mxu0 0.0
      %798 = vmatprep.subr.mxu0 0.0
      %799 = vmatpush2.msra.mxu0 0.0
      %800 = vmatprep.subr.mxu0 0.0
      %801 = vmatpush2.msra.mxu0 0.0
      %802 = vmatprep.subr.mxu0 0.0
      %803 = vmatpush2.msra.mxu0 0.0
      %804 = vmatprep.subr.mxu0 0.0
      %805 = vmatpush2.msra.mxu0 0.0
      %806 = vmatprep.subr.mxu0 0.0
      %807 = vmatpush2.msra.mxu0 0.0
      %808 = vmatprep.subr.mxu0 0.0
      %809 = vmatpush2.msra.mxu0 0.0
      %810 = vmatprep.mubr.f32.mxu0 0.0
      %811 = vmatmul.mubr.f32.gmra.mxu0 %v744
      %v812 = vpop.f32.mrf.mxu0
      %v813 = vadd.f32 %v739, %v812
      %v814 = vpop.f32.mrf.mxu0
      %v815 = vadd.f32 %v741, %v814
      %816 = vdwg.mxu0
      %s817 = scalar_lea.vmem %s14, 4
      %v818 = vld [vmem:[%s817] sm:$0x3]
      %819 = vrot.lane.b32.xlu0 %v615, 15
      %v820 = vpop.permute.xlu0 %819
      %821 = vrot.lane.b32.xlu0 %v616, 15
      %v822 = vpop.permute.xlu0 %821
      %vm823 = vcmask 121856
      %v824 = vsel %vm823, %v820, %v822
      %v827 = vsel %vm823, 0.0, %v820
      %s828 = scalar_lea.vmem %s3, 16
      %v829 = vld [vmem:[%s828] sm:$0xff]
      %v831 = vlaneseq
      %v832 = vshrl.u32 %v831, 7
      %v833 = vsub.s32 0, %v832
      %v834 = vrot.slane %v818, %v833
      %v835 = vlaneseq
      %v836 = vshrl.u32 %v835, 7
      %v837 = vsub.s32 1, %v836
      %v838 = vrot.slane %v818, %v837
      %v841 = vmul.f32 %v827, %v834
      %v842 = vmul.f32 %v824, %v838
      %v844 = vsel %vm668, %v829, 0
      %846 = vmatprep.subr.mxu0 0.0
      %847 = vmatpush1.msra.mxu0 0.0
      %848 = vmatprep.subr.mxu0 0.0
      %849 = vmatpush1.msra.mxu0 0.0
      %850 = vmatprep.subr.mxu0 0.0
      %851 = vmatpush1.msra.mxu0 0.0
      %852 = vmatprep.subr.mxu0 0.0
      %853 = vmatpush1.msra.mxu0 0.0
      %854 = vmatprep.subr.mxu0 0.0
      %855 = vmatpush1.msra.mxu0 0.0
      %856 = vmatprep.subr.mxu0 0.0
      %857 = vmatpush1.msra.mxu0 0.0
      %858 = vmatprep.subr.mxu0 0.0
      %859 = vmatpush1.msra.mxu0 0.0
      %860 = vmatprep.subr.mxu0 0.0
      %861 = vmatpush1.msra.mxu0 0.0
      %862 = vmatprep.subr.mxu0 0.0
      %863 = vmatpush1.msra.mxu0 0.0
      %864 = vmatprep.subr.mxu0 0.0
      %865 = vmatpush1.msra.mxu0 0.0
      %866 = vmatprep.subr.mxu0 0.0
      %867 = vmatpush1.msra.mxu0 0.0
      %868 = vmatprep.subr.mxu0 0.0
      %869 = vmatpush1.msra.mxu0 0.0
      %870 = vmatprep.subr.mxu0 0.0
      %871 = vmatpush1.msra.mxu0 0.0
      %872 = vmatprep.subr.mxu0 0.0
      %873 = vmatpush1.msra.mxu0 0.0
      %874 = vmatprep.subr.mxu0 0.0
      %875 = vmatpush1.msra.mxu0 0.0
      %876 = vmatprep.subr.mxu0 %v842
      %877 = vmatpush1.msra.mxu0 %v841
      %878 = vmatprep.subr.mxu0 0.0
      %879 = vmatpush2.msra.mxu0 0.0
      %880 = vmatprep.subr.mxu0 0.0
      %881 = vmatpush2.msra.mxu0 0.0
      %882 = vmatprep.subr.mxu0 0.0
      %883 = vmatpush2.msra.mxu0 0.0
      %884 = vmatprep.subr.mxu0 0.0
      %885 = vmatpush2.msra.mxu0 0.0
      %886 = vmatprep.subr.mxu0 0.0
      %887 = vmatpush2.msra.mxu0 0.0
      %888 = vmatprep.subr.mxu0 0.0
      %889 = vmatpush2.msra.mxu0 0.0
      %890 = vmatprep.subr.mxu0 0.0
      %891 = vmatpush2.msra.mxu0 0.0
      %892 = vmatprep.subr.mxu0 0.0
      %893 = vmatpush2.msra.mxu0 0.0
      %894 = vmatprep.subr.mxu0 0.0
      %895 = vmatpush2.msra.mxu0 0.0
      %896 = vmatprep.subr.mxu0 0.0
      %897 = vmatpush2.msra.mxu0 0.0
      %898 = vmatprep.subr.mxu0 0.0
      %899 = vmatpush2.msra.mxu0 0.0
      %900 = vmatprep.subr.mxu0 0.0
      %901 = vmatpush2.msra.mxu0 0.0
      %902 = vmatprep.subr.mxu0 0.0
      %903 = vmatpush2.msra.mxu0 0.0
      %904 = vmatprep.subr.mxu0 0.0
      %905 = vmatpush2.msra.mxu0 0.0
      %906 = vmatprep.subr.mxu0 0.0
      %907 = vmatpush2.msra.mxu0 0.0
      %908 = vmatprep.subr.mxu0 0.0
      %909 = vmatpush2.msra.mxu0 0.0
      %910 = vmatprep.mubr.f32.mxu0 0.0
      %911 = vmatmul.mubr.f32.gmra.mxu0 %v844
      %v912 = vpop.f32.mrf.mxu0
      %v913 = vadd.f32 0.0, %v912
      %v914 = vpop.f32.mrf.mxu0
      %v915 = vadd.f32 0.0, %v914
      %916 = vdwg.mxu0
      %v917 = vadd.f32 %v813, %v913
      %v918 = vadd.f32 %v815, %v915
      %s919 = scalar_lea.vmem %s14, 6
      %v920 = vld [vmem:[%s919] sm:$0x3]
      %921 = vrot.lane.b32.xlu0 %v615, 1
      %v922 = vpop.permute.xlu0 %921
      %923 = vrot.lane.b32.xlu0 %v616, 1
      %v924 = vpop.permute.xlu0 %923
      %vm925 = vcmask 7168
      %v926 = vsel %vm925, %v922, %v924
      %v929 = vsel %vm925, 0.0, %v922
      %s930 = scalar_lea.vmem %s3, 24
      %v931 = vld [vmem:[%s930] sm:$0xff]
      %v933 = vlaneseq
      %v934 = vshrl.u32 %v933, 7
      %v935 = vsub.s32 0, %v934
      %v936 = vrot.slane %v920, %v935
      %v937 = vlaneseq
      %v938 = vshrl.u32 %v937, 7
      %v939 = vsub.s32 1, %v938
      %v940 = vrot.slane %v920, %v939
      %v943 = vmul.f32 %v929, %v936
      %v944 = vmul.f32 %v926, %v940
      %v946 = vsel %vm668, %v931, 0
      %948 = vmatprep.subr.mxu0 0.0
      %949 = vmatpush1.msra.mxu0 0.0
      %950 = vmatprep.subr.mxu0 0.0
      %951 = vmatpush1.msra.mxu0 0.0
      %952 = vmatprep.subr.mxu0 0.0
      %953 = vmatpush1.msra.mxu0 0.0
      %954 = vmatprep.subr.mxu0 0.0
      %955 = vmatpush1.msra.mxu0 0.0
      %956 = vmatprep.subr.mxu0 0.0
      %957 = vmatpush1.msra.mxu0 0.0
      %958 = vmatprep.subr.mxu0 0.0
      %959 = vmatpush1.msra.mxu0 0.0
      %960 = vmatprep.subr.mxu0 0.0
      %961 = vmatpush1.msra.mxu0 0.0
      %962 = vmatprep.subr.mxu0 0.0
      %963 = vmatpush1.msra.mxu0 0.0
      %964 = vmatprep.subr.mxu0 0.0
      %965 = vmatpush1.msra.mxu0 0.0
      %966 = vmatprep.subr.mxu0 0.0
      %967 = vmatpush1.msra.mxu0 0.0
      %968 = vmatprep.subr.mxu0 0.0
      %969 = vmatpush1.msra.mxu0 0.0
      %970 = vmatprep.subr.mxu0 0.0
      %971 = vmatpush1.msra.mxu0 0.0
      %972 = vmatprep.subr.mxu0 0.0
      %973 = vmatpush1.msra.mxu0 0.0
      %974 = vmatprep.subr.mxu0 0.0
      %975 = vmatpush1.msra.mxu0 0.0
      %976 = vmatprep.subr.mxu0 0.0
      %977 = vmatpush1.msra.mxu0 0.0
      %978 = vmatprep.subr.mxu0 %v944
      %979 = vmatpush1.msra.mxu0 %v943
      %980 = vmatprep.subr.mxu0 0.0
      %981 = vmatpush2.msra.mxu0 0.0
      %982 = vmatprep.subr.mxu0 0.0
      %983 = vmatpush2.msra.mxu0 0.0
      %984 = vmatprep.subr.mxu0 0.0
      %985 = vmatpush2.msra.mxu0 0.0
      %986 = vmatprep.subr.mxu0 0.0
      %987 = vmatpush2.msra.mxu0 0.0
      %988 = vmatprep.subr.mxu0 0.0
      %989 = vmatpush2.msra.mxu0 0.0
      %990 = vmatprep.subr.mxu0 0.0
      %991 = vmatpush2.msra.mxu0 0.0
      %992 = vmatprep.subr.mxu0 0.0
      %993 = vmatpush2.msra.mxu0 0.0
      %994 = vmatprep.subr.mxu0 0.0
      %995 = vmatpush2.msra.mxu0 0.0
      %996 = vmatprep.subr.mxu0 0.0
      %997 = vmatpush2.msra.mxu0 0.0
      %998 = vmatprep.subr.mxu0 0.0
      %999 = vmatpush2.msra.mxu0 0.0
      %1000 = vmatprep.subr.mxu0 0.0
      %1001 = vmatpush2.msra.mxu0 0.0
      %1002 = vmatprep.subr.mxu0 0.0
      %1003 = vmatpush2.msra.mxu0 0.0
      %1004 = vmatprep.subr.mxu0 0.0
      %1005 = vmatpush2.msra.mxu0 0.0
      %1006 = vmatprep.subr.mxu0 0.0
      %1007 = vmatpush2.msra.mxu0 0.0
      %1008 = vmatprep.subr.mxu0 0.0
      %1009 = vmatpush2.msra.mxu0 0.0
      %1010 = vmatprep.subr.mxu0 0.0
      %1011 = vmatpush2.msra.mxu0 0.0
      %1012 = vmatprep.mubr.f32.mxu0 0.0
      %1013 = vmatmul.mubr.f32.gmra.mxu0 %v946
      %v1014 = vpop.f32.mrf.mxu0
      %v1015 = vadd.f32 0.0, %v1014
      %v1016 = vpop.f32.mrf.mxu0
      %v1017 = vadd.f32 0.0, %v1016
      %1018 = vdwg.mxu0
      %v1019 = vadd.f32 %v917, %v1015
      %v1020 = vadd.f32 %v918, %v1017
      %s1021 = scalar_lea.vmem %s14, 8
      %v1022 = vld [vmem:[%s1021] sm:$0x3]
      %s1023 = scalar_lea.vmem %s3, 32
      %v1024 = vld [vmem:[%s1023] sm:$0xff]
      %v1026 = vlaneseq
      %v1027 = vshrl.u32 %v1026, 7
      %v1028 = vsub.s32 0, %v1027
      %v1029 = vrot.slane %v1022, %v1028
      %v1030 = vlaneseq
      %v1031 = vshrl.u32 %v1030, 7
      %v1032 = vsub.s32 1, %v1031
      %v1033 = vrot.slane %v1022, %v1032
      %v1036 = vmul.f32 %v615, %v1029
      %v1037 = vmul.f32 %v616, %v1033
      %v1039 = vsel %vm668, %v1024, 0
      %1041 = vmatprep.subr.mxu0 0.0
      %1042 = vmatpush1.msra.mxu0 0.0
      %1043 = vmatprep.subr.mxu0 0.0
      %1044 = vmatpush1.msra.mxu0 0.0
      %1045 = vmatprep.subr.mxu0 0.0
      %1046 = vmatpush1.msra.mxu0 0.0
      %1047 = vmatprep.subr.mxu0 0.0
      %1048 = vmatpush1.msra.mxu0 0.0
      %1049 = vmatprep.subr.mxu0 0.0
      %1050 = vmatpush1.msra.mxu0 0.0
      %1051 = vmatprep.subr.mxu0 0.0
      %1052 = vmatpush1.msra.mxu0 0.0
      %1053 = vmatprep.subr.mxu0 0.0
      %1054 = vmatpush1.msra.mxu0 0.0
      %1055 = vmatprep.subr.mxu0 0.0
      %1056 = vmatpush1.msra.mxu0 0.0
      %1057 = vmatprep.subr.mxu0 0.0
      %1058 = vmatpush1.msra.mxu0 0.0
      %1059 = vmatprep.subr.mxu0 0.0
      %1060 = vmatpush1.msra.mxu0 0.0
      %1061 = vmatprep.subr.mxu0 0.0
      %1062 = vmatpush1.msra.mxu0 0.0
      %1063 = vmatprep.subr.mxu0 0.0
      %1064 = vmatpush1.msra.mxu0 0.0
      %1065 = vmatprep.subr.mxu0 0.0
      %1066 = vmatpush1.msra.mxu0 0.0
      %1067 = vmatprep.subr.mxu0 0.0
      %1068 = vmatpush1.msra.mxu0 0.0
      %1069 = vmatprep.subr.mxu0 0.0
      %1070 = vmatpush1.msra.mxu0 0.0
      %1071 = vmatprep.subr.mxu0 %v1037
      %1072 = vmatpush1.msra.mxu0 %v1036
      %1073 = vmatprep.subr.mxu0 0.0
      %1074 = vmatpush2.msra.mxu0 0.0
      %1075 = vmatprep.subr.mxu0 0.0
      %1076 = vmatpush2.msra.mxu0 0.0
      %1077 = vmatprep.subr.mxu0 0.0
      %1078 = vmatpush2.msra.mxu0 0.0
      %1079 = vmatprep.subr.mxu0 0.0
      %1080 = vmatpush2.msra.mxu0 0.0
      %1081 = vmatprep.subr.mxu0 0.0
      %1082 = vmatpush2.msra.mxu0 0.0
      %1083 = vmatprep.subr.mxu0 0.0
      %1084 = vmatpush2.msra.mxu0 0.0
      %1085 = vmatprep.subr.mxu0 0.0
      %1086 = vmatpush2.msra.mxu0 0.0
      %1087 = vmatprep.subr.mxu0 0.0
      %1088 = vmatpush2.msra.mxu0 0.0
      %1089 = vmatprep.subr.mxu0 0.0
      %1090 = vmatpush2.msra.mxu0 0.0
      %1091 = vmatprep.subr.mxu0 0.0
      %1092 = vmatpush2.msra.mxu0 0.0
      %1093 = vmatprep.subr.mxu0 0.0
      %1094 = vmatpush2.msra.mxu0 0.0
      %1095 = vmatprep.subr.mxu0 0.0
      %1096 = vmatpush2.msra.mxu0 0.0
      %1097 = vmatprep.subr.mxu0 0.0
      %1098 = vmatpush2.msra.mxu0 0.0
      %1099 = vmatprep.subr.mxu0 0.0
      %1100 = vmatpush2.msra.mxu0 0.0
      %1101 = vmatprep.subr.mxu0 0.0
      %1102 = vmatpush2.msra.mxu0 0.0
      %1103 = vmatprep.subr.mxu0 0.0
      %1104 = vmatpush2.msra.mxu0 0.0
      %1105 = vmatprep.mubr.f32.mxu0 0.0
      %1106 = vmatmul.mubr.f32.gmra.mxu0 %v1039
      %v1107 = vpop.f32.mrf.mxu0
      %v1108 = vadd.f32 0.0, %v1107
      %v1109 = vpop.f32.mrf.mxu0
      %v1110 = vadd.f32 0.0, %v1109
      %1111 = vdwg.mxu0
      %v1112 = vadd.f32 %v1019, %v1108
      %v1113 = vadd.f32 %v1020, %v1110
      %s1114 = scalar_lea.vmem %s14, 10
      %v1115 = vld [vmem:[%s1114] sm:$0x3]
      %1116 = vrot.lane.b32.xlu0 %v615, 127
      %v1117 = vpop.permute.xlu0 %1116
      %1118 = vrot.lane.b32.xlu0 %v616, 127
      %v1119 = vpop.permute.xlu0 %1118
      %vm1120 = vcmask 1039360
      %v1121 = vsel %vm1120, %v1117, %v1119
      %v1124 = vsel %vm1120, %v1119, 0.0
      %s1125 = scalar_lea.vmem %s3, 40
      %v1126 = vld [vmem:[%s1125] sm:$0xff]
      %v1128 = vlaneseq
      %v1129 = vshrl.u32 %v1128, 7
      %v1130 = vsub.s32 0, %v1129
      %v1131 = vrot.slane %v1115, %v1130
      %v1132 = vlaneseq
      %v1133 = vshrl.u32 %v1132, 7
      %v1134 = vsub.s32 1, %v1133
      %v1135 = vrot.slane %v1115, %v1134
      %v1138 = vmul.f32 %v1121, %v1131
      %v1139 = vmul.f32 %v1124, %v1135
      %v1141 = vsel %vm668, %v1126, 0
      %1143 = vmatprep.subr.mxu0 0.0
      %1144 = vmatpush1.msra.mxu0 0.0
      %1145 = vmatprep.subr.mxu0 0.0
      %1146 = vmatpush1.msra.mxu0 0.0
      %1147 = vmatprep.subr.mxu0 0.0
      %1148 = vmatpush1.msra.mxu0 0.0
      %1149 = vmatprep.subr.mxu0 0.0
      %1150 = vmatpush1.msra.mxu0 0.0
      %1151 = vmatprep.subr.mxu0 0.0
      %1152 = vmatpush1.msra.mxu0 0.0
      %1153 = vmatprep.subr.mxu0 0.0
      %1154 = vmatpush1.msra.mxu0 0.0
      %1155 = vmatprep.subr.mxu0 0.0
      %1156 = vmatpush1.msra.mxu0 0.0
      %1157 = vmatprep.subr.mxu0 0.0
      %1158 = vmatpush1.msra.mxu0 0.0
      %1159 = vmatprep.subr.mxu0 0.0
      %1160 = vmatpush1.msra.mxu0 0.0
      %1161 = vmatprep.subr.mxu0 0.0
      %1162 = vmatpush1.msra.mxu0 0.0
      %1163 = vmatprep.subr.mxu0 0.0
      %1164 = vmatpush1.msra.mxu0 0.0
      %1165 = vmatprep.subr.mxu0 0.0
      %1166 = vmatpush1.msra.mxu0 0.0
      %1167 = vmatprep.subr.mxu0 0.0
      %1168 = vmatpush1.msra.mxu0 0.0
      %1169 = vmatprep.subr.mxu0 0.0
      %1170 = vmatpush1.msra.mxu0 0.0
      %1171 = vmatprep.subr.mxu0 0.0
      %1172 = vmatpush1.msra.mxu0 0.0
      %1173 = vmatprep.subr.mxu0 %v1139
      %1174 = vmatpush1.msra.mxu0 %v1138
      %1175 = vmatprep.subr.mxu0 0.0
      %1176 = vmatpush2.msra.mxu0 0.0
      %1177 = vmatprep.subr.mxu0 0.0
      %1178 = vmatpush2.msra.mxu0 0.0
      %1179 = vmatprep.subr.mxu0 0.0
      %1180 = vmatpush2.msra.mxu0 0.0
      %1181 = vmatprep.subr.mxu0 0.0
      %1182 = vmatpush2.msra.mxu0 0.0
      %1183 = vmatprep.subr.mxu0 0.0
      %1184 = vmatpush2.msra.mxu0 0.0
      %1185 = vmatprep.subr.mxu0 0.0
      %1186 = vmatpush2.msra.mxu0 0.0
      %1187 = vmatprep.subr.mxu0 0.0
      %1188 = vmatpush2.msra.mxu0 0.0
      %1189 = vmatprep.subr.mxu0 0.0
      %1190 = vmatpush2.msra.mxu0 0.0
      %1191 = vmatprep.subr.mxu0 0.0
      %1192 = vmatpush2.msra.mxu0 0.0
      %1193 = vmatprep.subr.mxu0 0.0
      %1194 = vmatpush2.msra.mxu0 0.0
      %1195 = vmatprep.subr.mxu0 0.0
      %1196 = vmatpush2.msra.mxu0 0.0
      %1197 = vmatprep.subr.mxu0 0.0
      %1198 = vmatpush2.msra.mxu0 0.0
      %1199 = vmatprep.subr.mxu0 0.0
      %1200 = vmatpush2.msra.mxu0 0.0
      %1201 = vmatprep.subr.mxu0 0.0
      %1202 = vmatpush2.msra.mxu0 0.0
      %1203 = vmatprep.subr.mxu0 0.0
      %1204 = vmatpush2.msra.mxu0 0.0
      %1205 = vmatprep.subr.mxu0 0.0
      %1206 = vmatpush2.msra.mxu0 0.0
      %1207 = vmatprep.mubr.f32.mxu0 0.0
      %1208 = vmatmul.mubr.f32.gmra.mxu0 %v1141
      %v1209 = vpop.f32.mrf.mxu0
      %v1210 = vadd.f32 0.0, %v1209
      %v1211 = vpop.f32.mrf.mxu0
      %v1212 = vadd.f32 0.0, %v1211
      %1213 = vdwg.mxu0
      %v1214 = vadd.f32 %v1112, %v1210
      %v1215 = vadd.f32 %v1113, %v1212
      %s1216 = scalar_lea.vmem %s14, 12
      %v1217 = vld [vmem:[%s1216] sm:$0x3]
      %1218 = vrot.lane.b32.xlu0 %v615, 113
      %v1219 = vpop.permute.xlu0 %1218
      %1220 = vrot.lane.b32.xlu0 %v616, 113
      %v1221 = vpop.permute.xlu0 %1220
      %vm1222 = vcmask 924672
      %v1223 = vsel %vm1222, %v1219, %v1221
      %v1226 = vsel %vm1222, %v1221, 0.0
      %s1227 = scalar_lea.vmem %s3, 48
      %v1228 = vld [vmem:[%s1227] sm:$0xff]
      %v1230 = vlaneseq
      %v1231 = vshrl.u32 %v1230, 7
      %v1232 = vsub.s32 0, %v1231
      %v1233 = vrot.slane %v1217, %v1232
      %v1234 = vlaneseq
      %v1235 = vshrl.u32 %v1234, 7
      %v1236 = vsub.s32 1, %v1235
      %v1237 = vrot.slane %v1217, %v1236
      %v1240 = vmul.f32 %v1223, %v1233
      %v1241 = vmul.f32 %v1226, %v1237
      %v1243 = vsel %vm668, %v1228, 0
      %1245 = vmatprep.subr.mxu0 0.0
      %1246 = vmatpush1.msra.mxu0 0.0
      %1247 = vmatprep.subr.mxu0 0.0
      %1248 = vmatpush1.msra.mxu0 0.0
      %1249 = vmatprep.subr.mxu0 0.0
      %1250 = vmatpush1.msra.mxu0 0.0
      %1251 = vmatprep.subr.mxu0 0.0
      %1252 = vmatpush1.msra.mxu0 0.0
      %1253 = vmatprep.subr.mxu0 0.0
      %1254 = vmatpush1.msra.mxu0 0.0
      %1255 = vmatprep.subr.mxu0 0.0
      %1256 = vmatpush1.msra.mxu0 0.0
      %1257 = vmatprep.subr.mxu0 0.0
      %1258 = vmatpush1.msra.mxu0 0.0
      %1259 = vmatprep.subr.mxu0 0.0
      %1260 = vmatpush1.msra.mxu0 0.0
      %1261 = vmatprep.subr.mxu0 0.0
      %1262 = vmatpush1.msra.mxu0 0.0
      %1263 = vmatprep.subr.mxu0 0.0
      %1264 = vmatpush1.msra.mxu0 0.0
      %1265 = vmatprep.subr.mxu0 0.0
      %1266 = vmatpush1.msra.mxu0 0.0
      %1267 = vmatprep.subr.mxu0 0.0
      %1268 = vmatpush1.msra.mxu0 0.0
      %1269 = vmatprep.subr.mxu0 0.0
      %1270 = vmatpush1.msra.mxu0 0.0
      %1271 = vmatprep.subr.mxu0 0.0
      %1272 = vmatpush1.msra.mxu0 0.0
      %1273 = vmatprep.subr.mxu0 0.0
      %1274 = vmatpush1.msra.mxu0 0.0
      %1275 = vmatprep.subr.mxu0 %v1241
      %1276 = vmatpush1.msra.mxu0 %v1240
      %1277 = vmatprep.subr.mxu0 0.0
      %1278 = vmatpush2.msra.mxu0 0.0
      %1279 = vmatprep.subr.mxu0 0.0
      %1280 = vmatpush2.msra.mxu0 0.0
      %1281 = vmatprep.subr.mxu0 0.0
      %1282 = vmatpush2.msra.mxu0 0.0
      %1283 = vmatprep.subr.mxu0 0.0
      %1284 = vmatpush2.msra.mxu0 0.0
      %1285 = vmatprep.subr.mxu0 0.0
      %1286 = vmatpush2.msra.mxu0 0.0
      %1287 = vmatprep.subr.mxu0 0.0
      %1288 = vmatpush2.msra.mxu0 0.0
      %1289 = vmatprep.subr.mxu0 0.0
      %1290 = vmatpush2.msra.mxu0 0.0
      %1291 = vmatprep.subr.mxu0 0.0
      %1292 = vmatpush2.msra.mxu0 0.0
      %1293 = vmatprep.subr.mxu0 0.0
      %1294 = vmatpush2.msra.mxu0 0.0
      %1295 = vmatprep.subr.mxu0 0.0
      %1296 = vmatpush2.msra.mxu0 0.0
      %1297 = vmatprep.subr.mxu0 0.0
      %1298 = vmatpush2.msra.mxu0 0.0
      %1299 = vmatprep.subr.mxu0 0.0
      %1300 = vmatpush2.msra.mxu0 0.0
      %1301 = vmatprep.subr.mxu0 0.0
      %1302 = vmatpush2.msra.mxu0 0.0
      %1303 = vmatprep.subr.mxu0 0.0
      %1304 = vmatpush2.msra.mxu0 0.0
      %1305 = vmatprep.subr.mxu0 0.0
      %1306 = vmatpush2.msra.mxu0 0.0
      %1307 = vmatprep.subr.mxu0 0.0
      %1308 = vmatpush2.msra.mxu0 0.0
      %1309 = vmatprep.mubr.f32.mxu0 0.0
      %1310 = vmatmul.mubr.f32.gmra.mxu0 %v1243
      %v1311 = vpop.f32.mrf.mxu0
      %v1312 = vadd.f32 0.0, %v1311
      %v1313 = vpop.f32.mrf.mxu0
      %v1314 = vadd.f32 0.0, %v1313
      %1315 = vdwg.mxu0
      %v1316 = vadd.f32 %v1214, %v1312
      %v1317 = vadd.f32 %v1215, %v1314
      %s1318 = scalar_lea.vmem %s14, 14
      %v1319 = vld [vmem:[%s1318] sm:$0x3]
      %1320 = vrot.lane.b32.xlu0 %v615, 112
      %v1321 = vpop.permute.xlu0 %1320
      %1322 = vrot.lane.b32.xlu0 %v616, 112
      %v1323 = vpop.permute.xlu0 %1322
      %vm1324 = vcmask 916480
      %v1325 = vsel %vm1324, %v1321, %v1323
      %v1328 = vsel %vm1324, %v1323, 0.0
      %s1329 = scalar_lea.vmem %s3, 56
      %v1330 = vld [vmem:[%s1329] sm:$0xff]
      %v1332 = vlaneseq
      %v1333 = vshrl.u32 %v1332, 7
      %v1334 = vsub.s32 0, %v1333
      %v1335 = vrot.slane %v1319, %v1334
      %v1336 = vlaneseq
      %v1337 = vshrl.u32 %v1336, 7
      %v1338 = vsub.s32 1, %v1337
      %v1339 = vrot.slane %v1319, %v1338
      %v1342 = vmul.f32 %v1325, %v1335
      %v1343 = vmul.f32 %v1328, %v1339
      %v1345 = vsel %vm668, %v1330, 0
      %1347 = vmatprep.subr.mxu0 0.0
      %1348 = vmatpush1.msra.mxu0 0.0
      %1349 = vmatprep.subr.mxu0 0.0
      %1350 = vmatpush1.msra.mxu0 0.0
      %1351 = vmatprep.subr.mxu0 0.0
      %1352 = vmatpush1.msra.mxu0 0.0
      %1353 = vmatprep.subr.mxu0 0.0
      %1354 = vmatpush1.msra.mxu0 0.0
      %1355 = vmatprep.subr.mxu0 0.0
      %1356 = vmatpush1.msra.mxu0 0.0
      %1357 = vmatprep.subr.mxu0 0.0
      %1358 = vmatpush1.msra.mxu0 0.0
      %1359 = vmatprep.subr.mxu0 0.0
      %1360 = vmatpush1.msra.mxu0 0.0
      %1361 = vmatprep.subr.mxu0 0.0
      %1362 = vmatpush1.msra.mxu0 0.0
      %1363 = vmatprep.subr.mxu0 0.0
      %1364 = vmatpush1.msra.mxu0 0.0
      %1365 = vmatprep.subr.mxu0 0.0
      %1366 = vmatpush1.msra.mxu0 0.0
      %1367 = vmatprep.subr.mxu0 0.0
      %1368 = vmatpush1.msra.mxu0 0.0
      %1369 = vmatprep.subr.mxu0 0.0
      %1370 = vmatpush1.msra.mxu0 0.0
      %1371 = vmatprep.subr.mxu0 0.0
      %1372 = vmatpush1.msra.mxu0 0.0
      %1373 = vmatprep.subr.mxu0 0.0
      %1374 = vmatpush1.msra.mxu0 0.0
      %1375 = vmatprep.subr.mxu0 0.0
      %1376 = vmatpush1.msra.mxu0 0.0
      %1377 = vmatprep.subr.mxu0 %v1343
      %1378 = vmatpush1.msra.mxu0 %v1342
      %1379 = vmatprep.subr.mxu0 0.0
      %1380 = vmatpush2.msra.mxu0 0.0
      %1381 = vmatprep.subr.mxu0 0.0
      %1382 = vmatpush2.msra.mxu0 0.0
      %1383 = vmatprep.subr.mxu0 0.0
      %1384 = vmatpush2.msra.mxu0 0.0
      %1385 = vmatprep.subr.mxu0 0.0
      %1386 = vmatpush2.msra.mxu0 0.0
      %1387 = vmatprep.subr.mxu0 0.0
      %1388 = vmatpush2.msra.mxu0 0.0
      %1389 = vmatprep.subr.mxu0 0.0
      %1390 = vmatpush2.msra.mxu0 0.0
      %1391 = vmatprep.subr.mxu0 0.0
      %1392 = vmatpush2.msra.mxu0 0.0
      %1393 = vmatprep.subr.mxu0 0.0
      %1394 = vmatpush2.msra.mxu0 0.0
      %1395 = vmatprep.subr.mxu0 0.0
      %1396 = vmatpush2.msra.mxu0 0.0
      %1397 = vmatprep.subr.mxu0 0.0
      %1398 = vmatpush2.msra.mxu0 0.0
      %1399 = vmatprep.subr.mxu0 0.0
      %1400 = vmatpush2.msra.mxu0 0.0
      %1401 = vmatprep.subr.mxu0 0.0
      %1402 = vmatpush2.msra.mxu0 0.0
      %1403 = vmatprep.subr.mxu0 0.0
      %1404 = vmatpush2.msra.mxu0 0.0
      %1405 = vmatprep.subr.mxu0 0.0
      %1406 = vmatpush2.msra.mxu0 0.0
      %1407 = vmatprep.subr.mxu0 0.0
      %1408 = vmatpush2.msra.mxu0 0.0
      %1409 = vmatprep.subr.mxu0 0.0
      %1410 = vmatpush2.msra.mxu0 0.0
      %1411 = vmatprep.mubr.f32.mxu0 0.0
      %1412 = vmatmul.mubr.f32.gmra.mxu0 %v1345
      %v1413 = vpop.f32.mrf.mxu0
      %v1414 = vadd.f32 0.0, %v1413
      %v1415 = vpop.f32.mrf.mxu0
      %v1416 = vadd.f32 0.0, %v1415
      %1417 = vdwg.mxu0
      %v1418 = vadd.f32 %v1316, %v1414
      %v1419 = vadd.f32 %v1317, %v1416
      %s1420 = scalar_lea.vmem %s14, 16
      %v1421 = vld [vmem:[%s1420] sm:$0x3]
      %1422 = vrot.lane.b32.xlu0 %v615, 111
      %v1423 = vpop.permute.xlu0 %1422
      %1424 = vrot.lane.b32.xlu0 %v616, 111
      %v1425 = vpop.permute.xlu0 %1424
      %vm1426 = vcmask 908288
      %v1427 = vsel %vm1426, %v1423, %v1425
      %v1430 = vsel %vm1426, %v1425, 0.0
      %s1431 = scalar_lea.vmem %s3, 64
      %v1432 = vld [vmem:[%s1431] sm:$0xff]
      %v1434 = vlaneseq
      %v1435 = vshrl.u32 %v1434, 7
      %v1436 = vsub.s32 0, %v1435
      %v1437 = vrot.slane %v1421, %v1436
      %v1438 = vlaneseq
      %v1439 = vshrl.u32 %v1438, 7
      %v1440 = vsub.s32 1, %v1439
      %v1441 = vrot.slane %v1421, %v1440
      %v1444 = vmul.f32 %v1427, %v1437
      %v1445 = vmul.f32 %v1430, %v1441
      %v1447 = vsel %vm668, %v1432, 0
      %1449 = vmatprep.subr.mxu0 0.0
      %1450 = vmatpush1.msra.mxu0 0.0
      %1451 = vmatprep.subr.mxu0 0.0
      %1452 = vmatpush1.msra.mxu0 0.0
      %1453 = vmatprep.subr.mxu0 0.0
      %1454 = vmatpush1.msra.mxu0 0.0
      %1455 = vmatprep.subr.mxu0 0.0
      %1456 = vmatpush1.msra.mxu0 0.0
      %1457 = vmatprep.subr.mxu0 0.0
      %1458 = vmatpush1.msra.mxu0 0.0
      %1459 = vmatprep.subr.mxu0 0.0
      %1460 = vmatpush1.msra.mxu0 0.0
      %1461 = vmatprep.subr.mxu0 0.0
      %1462 = vmatpush1.msra.mxu0 0.0
      %1463 = vmatprep.subr.mxu0 0.0
      %1464 = vmatpush1.msra.mxu0 0.0
      %1465 = vmatprep.subr.mxu0 0.0
      %1466 = vmatpush1.msra.mxu0 0.0
      %1467 = vmatprep.subr.mxu0 0.0
      %1468 = vmatpush1.msra.mxu0 0.0
      %1469 = vmatprep.subr.mxu0 0.0
      %1470 = vmatpush1.msra.mxu0 0.0
      %1471 = vmatprep.subr.mxu0 0.0
      %1472 = vmatpush1.msra.mxu0 0.0
      %1473 = vmatprep.subr.mxu0 0.0
      %1474 = vmatpush1.msra.mxu0 0.0
      %1475 = vmatprep.subr.mxu0 0.0
      %1476 = vmatpush1.msra.mxu0 0.0
      %1477 = vmatprep.subr.mxu0 0.0
      %1478 = vmatpush1.msra.mxu0 0.0
      %1479 = vmatprep.subr.mxu0 %v1445
      %1480 = vmatpush1.msra.mxu0 %v1444
      %1481 = vmatprep.subr.mxu0 0.0
      %1482 = vmatpush2.msra.mxu0 0.0
      %1483 = vmatprep.subr.mxu0 0.0
      %1484 = vmatpush2.msra.mxu0 0.0
      %1485 = vmatprep.subr.mxu0 0.0
      %1486 = vmatpush2.msra.mxu0 0.0
      %1487 = vmatprep.subr.mxu0 0.0
      %1488 = vmatpush2.msra.mxu0 0.0
      %1489 = vmatprep.subr.mxu0 0.0
      %1490 = vmatpush2.msra.mxu0 0.0
      %1491 = vmatprep.subr.mxu0 0.0
      %1492 = vmatpush2.msra.mxu0 0.0
      %1493 = vmatprep.subr.mxu0 0.0
      %1494 = vmatpush2.msra.mxu0 0.0
      %1495 = vmatprep.subr.mxu0 0.0
      %1496 = vmatpush2.msra.mxu0 0.0
      %1497 = vmatprep.subr.mxu0 0.0
      %1498 = vmatpush2.msra.mxu0 0.0
      %1499 = vmatprep.subr.mxu0 0.0
      %1500 = vmatpush2.msra.mxu0 0.0
      %1501 = vmatprep.subr.mxu0 0.0
      %1502 = vmatpush2.msra.mxu0 0.0
      %1503 = vmatprep.subr.mxu0 0.0
      %1504 = vmatpush2.msra.mxu0 0.0
      %1505 = vmatprep.subr.mxu0 0.0
      %1506 = vmatpush2.msra.mxu0 0.0
      %1507 = vmatprep.subr.mxu0 0.0
      %1508 = vmatpush2.msra.mxu0 0.0
      %1509 = vmatprep.subr.mxu0 0.0
      %1510 = vmatpush2.msra.mxu0 0.0
      %1511 = vmatprep.subr.mxu0 0.0
      %1512 = vmatpush2.msra.mxu0 0.0
      %1513 = vmatprep.mubr.f32.mxu0 0.0
      %1514 = vmatmul.mubr.f32.gmra.mxu0 %v1447
      %v1515 = vpop.f32.mrf.mxu0
      %v1516 = vadd.f32 0.0, %v1515
      %v1517 = vpop.f32.mrf.mxu0
      %v1518 = vadd.f32 0.0, %v1517
      %1519 = vdwg.mxu0
      %v1520 = vadd.f32 %v1418, %v1516
      %v1521 = vadd.f32 %v1419, %v1518
      %v1522 = vld [vmem:[%s4] sm:$0xff]
      %1524 = vset.pattern.permute.xlu0 0
      %1525 = vperm.xlu0 %1524, %v1522
      %v1526 = vpop.permute.xlu0 %1525
      %1528 = vmatprep.subr.mxu0 0.0
      %1529 = vmatpush1.msra.mxu0 %v514
      %1530 = vmatprep.subr.mxu0 0.0
      %1531 = vmatpush1.msra.mxu0 %v513
      %1532 = vmatprep.subr.mxu0 0.0
      %1533 = vmatpush1.msra.mxu0 %v512
      %1534 = vmatprep.subr.mxu0 0.0
      %1535 = vmatpush1.msra.mxu0 %v511
      %1536 = vmatprep.subr.mxu0 0.0
      %1537 = vmatpush1.msra.mxu0 %v510
      %1538 = vmatprep.subr.mxu0 0.0
      %1539 = vmatpush1.msra.mxu0 %v509
      %1540 = vmatprep.subr.mxu0 0.0
      %1541 = vmatpush1.msra.mxu0 %v508
      %1542 = vmatprep.subr.mxu0 0.0
      %1543 = vmatpush1.msra.mxu0 %v507
      %1544 = vmatprep.subr.mxu0 0.0
      %1545 = vmatpush1.msra.mxu0 %v506
      %1546 = vmatprep.subr.mxu0 0.0
      %1547 = vmatpush1.msra.mxu0 %v505
      %1548 = vmatprep.subr.mxu0 0.0
      %1549 = vmatpush1.msra.mxu0 %v504
      %1550 = vmatprep.subr.mxu0 0.0
      %1551 = vmatpush1.msra.mxu0 %v503
      %1552 = vmatprep.subr.mxu0 0.0
      %1553 = vmatpush1.msra.mxu0 %v502
      %1554 = vmatprep.subr.mxu0 0.0
      %1555 = vmatpush1.msra.mxu0 %v501
      %1556 = vmatprep.subr.mxu0 0.0
      %1557 = vmatpush1.msra.mxu0 %v500
      %1558 = vmatprep.subr.mxu0 0.0
      %1559 = vmatpush1.msra.mxu0 %v499
      %1560 = vmatprep.subr.mxu0 0.0
      %1561 = vmatpush2.msra.mxu0 %v530
      %1562 = vmatprep.subr.mxu0 0.0
      %1563 = vmatpush2.msra.mxu0 %v529
      %1564 = vmatprep.subr.mxu0 0.0
      %1565 = vmatpush2.msra.mxu0 %v528
      %1566 = vmatprep.subr.mxu0 0.0
      %1567 = vmatpush2.msra.mxu0 %v527
      %1568 = vmatprep.subr.mxu0 0.0
      %1569 = vmatpush2.msra.mxu0 %v526
      %1570 = vmatprep.subr.mxu0 0.0
      %1571 = vmatpush2.msra.mxu0 %v525
      %1572 = vmatprep.subr.mxu0 0.0
      %1573 = vmatpush2.msra.mxu0 %v524
      %1574 = vmatprep.subr.mxu0 0.0
      %1575 = vmatpush2.msra.mxu0 %v523
      %1576 = vmatprep.subr.mxu0 0.0
      %1577 = vmatpush2.msra.mxu0 %v522
      %1578 = vmatprep.subr.mxu0 0.0
      %1579 = vmatpush2.msra.mxu0 %v521
      %1580 = vmatprep.subr.mxu0 0.0
      %1581 = vmatpush2.msra.mxu0 %v520
      %1582 = vmatprep.subr.mxu0 0.0
      %1583 = vmatpush2.msra.mxu0 %v519
      %1584 = vmatprep.subr.mxu0 0.0
      %1585 = vmatpush2.msra.mxu0 %v518
      %1586 = vmatprep.subr.mxu0 0.0
      %1587 = vmatpush2.msra.mxu0 %v517
      %1588 = vmatprep.subr.mxu0 0.0
      %1589 = vmatpush2.msra.mxu0 %v516
      %1590 = vmatprep.subr.mxu0 0.0
      %1591 = vmatpush2.msra.mxu0 %v515
      %1592 = vmatprep.mubr.f32.mxu0 %v1521
      %1593 = vmatmul.mubr.f32.gmra.mxu0 %v1520
      %v1594 = vpop.f32.mrf.mxu0
      %v1595 = vadd.f32 %v1526, %v1594
      %v1596 = vpop.f32.mrf.mxu0
      %1597 = vdwg.mxu0
      %v1598 = vmax.f32 %v1595, 0.0
      %v1599 = vmin.f32 %v1598, 6.0
      %v1600 = vld [vmem:[%s5] sm:$0xff]
      %v1601 = vld [vmem:[%s6] sm:$0xff]
      %1603 = vset.pattern.permute.xlu0 0
      %1604 = vperm.xlu0 %1603, %v1601
      %v1605 = vpop.permute.xlu0 %1604
      %v1608 = vsel %vm538, %v1600, 0
      %1610 = vmatprep.subr.mxu0 0.0
      %1611 = vmatpush1.msra.mxu0 0.0
      %1612 = vmatprep.subr.mxu0 0.0
      %1613 = vmatpush1.msra.mxu0 0.0
      %1614 = vmatprep.subr.mxu0 0.0
      %1615 = vmatpush1.msra.mxu0 0.0
      %1616 = vmatprep.subr.mxu0 0.0
      %1617 = vmatpush1.msra.mxu0 0.0
      %1618 = vmatprep.subr.mxu0 0.0
      %1619 = vmatpush1.msra.mxu0 0.0
      %1620 = vmatprep.subr.mxu0 0.0
      %1621 = vmatpush1.msra.mxu0 0.0
      %1622 = vmatprep.subr.mxu0 0.0
      %1623 = vmatpush1.msra.mxu0 0.0
      %1624 = vmatprep.subr.mxu0 0.0
      %1625 = vmatpush1.msra.mxu0 0.0
      %1626 = vmatprep.subr.mxu0 0.0
      %1627 = vmatpush1.msra.mxu0 0.0
      %1628 = vmatprep.subr.mxu0 0.0
      %1629 = vmatpush1.msra.mxu0 0.0
      %1630 = vmatprep.subr.mxu0 0.0
      %1631 = vmatpush1.msra.mxu0 0.0
      %1632 = vmatprep.subr.mxu0 0.0
      %1633 = vmatpush1.msra.mxu0 0.0
      %1634 = vmatprep.subr.mxu0 0.0
      %1635 = vmatpush1.msra.mxu0 0.0
      %1636 = vmatprep.subr.mxu0 0.0
      %1637 = vmatpush1.msra.mxu0 0.0
      %1638 = vmatprep.subr.mxu0 %v498
      %1639 = vmatpush1.msra.mxu0 %v497
      %1640 = vmatprep.subr.mxu0 %v496
      %1641 = vmatpush1.msra.mxu0 %v495
      %1642 = vmatprep.subr.mxu0 0.0
      %1643 = vmatpush2.msra.mxu0 0.0
      %1644 = vmatprep.subr.mxu0 0.0
      %1645 = vmatpush2.msra.mxu0 0.0
      %1646 = vmatprep.subr.mxu0 0.0
      %1647 = vmatpush2.msra.mxu0 0.0
      %1648 = vmatprep.subr.mxu0 0.0
      %1649 = vmatpush2.msra.mxu0 0.0
      %1650 = vmatprep.subr.mxu0 0.0
      %1651 = vmatpush2.msra.mxu0 0.0
      %1652 = vmatprep.subr.mxu0 0.0
      %1653 = vmatpush2.msra.mxu0 0.0
      %1654 = vmatprep.subr.mxu0 0.0
      %1655 = vmatpush2.msra.mxu0 0.0
      %1656 = vmatprep.subr.mxu0 0.0
      %1657 = vmatpush2.msra.mxu0 0.0
      %1658 = vmatprep.subr.mxu0 0.0
      %1659 = vmatpush2.msra.mxu0 0.0
      %1660 = vmatprep.subr.mxu0 0.0
      %1661 = vmatpush2.msra.mxu0 0.0
      %1662 = vmatprep.subr.mxu0 0.0
      %1663 = vmatpush2.msra.mxu0 0.0
      %1664 = vmatprep.subr.mxu0 0.0
      %1665 = vmatpush2.msra.mxu0 0.0
      %1666 = vmatprep.subr.mxu0 0.0
      %1667 = vmatpush2.msra.mxu0 0.0
      %1668 = vmatprep.subr.mxu0 0.0
      %1669 = vmatpush2.msra.mxu0 0.0
      %1670 = vmatprep.subr.mxu0 0.0
      %1671 = vmatpush2.msra.mxu0 0.0
      %1672 = vmatprep.subr.mxu0 0.0
      %1673 = vmatpush2.msra.mxu0 0.0
      %1674 = vmatprep.mubr.f32.mxu0 0.0
      %1675 = vmatmul.mubr.f32.gmra.mxu0 %v1608
      %v1676 = vpop.f32.mrf.mxu0
      %v1677 = vadd.f32 %v1605, %v1676
      %v1678 = vpop.f32.mrf.mxu0
      %v1679 = vadd.f32 %v1605, %v1678
      %1680 = vdwg.mxu0
      %v1681 = vmax.f32 %v1677, 0.0
      %v1682 = vmax.f32 %v1679, 0.0
      %v1683 = vmin.f32 %v1681, 6.0
      %v1684 = vmin.f32 %v1682, 6.0
      %1687 = vrot.lane.b32.xlu0 %v1683, 17
      %v1688 = vpop.permute.xlu0 %1687
      %1689 = vrot.lane.b32.xlu0 %v1684, 17
      %v1690 = vpop.permute.xlu0 %1689
      %v1691 = vsel %vm624, %v1688, %v1690
      %v1694 = vsel %vm624, 0.0, %v1688
      %v1695 = vld [vmem:[%s7] sm:$0xff]
      %v1696 = vmul.f32 %v1694, %v634
      %v1697 = vmul.f32 %v1691, %v638
      %1698 = vrot.lane.b32.xlu0 %v1683, 16
      %v1699 = vpop.permute.xlu0 %1698
      %1700 = vrot.lane.b32.xlu0 %v1684, 16
      %v1701 = vpop.permute.xlu0 %1700
      %v1702 = vsel %vm538, %v1699, %v1701
      %v1705 = vsel %vm538, 0.0, %v1699
      %s1706 = scalar_lea.vmem %s7, 8
      %v1707 = vld [vmem:[%s1706] sm:$0xff]
      %v1708 = vmul.f32 %v1705, %v659
      %v1709 = vmul.f32 %v1702, %v663
      %v1711 = vsel %vm668, %v1707, 0
      %1713 = vmatprep.subr.mxu0 0.0
      %1714 = vmatpush1.msra.mxu0 0.0
      %1715 = vmatprep.subr.mxu0 0.0
      %1716 = vmatpush1.msra.mxu0 0.0
      %1717 = vmatprep.subr.mxu0 0.0
      %1718 = vmatpush1.msra.mxu0 0.0
      %1719 = vmatprep.subr.mxu0 0.0
      %1720 = vmatpush1.msra.mxu0 0.0
      %1721 = vmatprep.subr.mxu0 0.0
      %1722 = vmatpush1.msra.mxu0 0.0
      %1723 = vmatprep.subr.mxu0 0.0
      %1724 = vmatpush1.msra.mxu0 0.0
      %1725 = vmatprep.subr.mxu0 0.0
      %1726 = vmatpush1.msra.mxu0 0.0
      %1727 = vmatprep.subr.mxu0 0.0
      %1728 = vmatpush1.msra.mxu0 0.0
      %1729 = vmatprep.subr.mxu0 0.0
      %1730 = vmatpush1.msra.mxu0 0.0
      %1731 = vmatprep.subr.mxu0 0.0
      %1732 = vmatpush1.msra.mxu0 0.0
      %1733 = vmatprep.subr.mxu0 0.0
      %1734 = vmatpush1.msra.mxu0 0.0
      %1735 = vmatprep.subr.mxu0 0.0
      %1736 = vmatpush1.msra.mxu0 0.0
      %1737 = vmatprep.subr.mxu0 0.0
      %1738 = vmatpush1.msra.mxu0 0.0
      %1739 = vmatprep.subr.mxu0 0.0
      %1740 = vmatpush1.msra.mxu0 0.0
      %1741 = vmatprep.subr.mxu0 0.0
      %1742 = vmatpush1.msra.mxu0 0.0
      %1743 = vmatprep.subr.mxu0 %v1709
      %1744 = vmatpush1.msra.mxu0 %v1708
      %1745 = vmatprep.subr.mxu0 0.0
      %1746 = vmatpush2.msra.mxu0 0.0
      %1747 = vmatprep.subr.mxu0 0.0
      %1748 = vmatpush2.msra.mxu0 0.0
      %1749 = vmatprep.subr.mxu0 0.0
      %1750 = vmatpush2.msra.mxu0 0.0
      %1751 = vmatprep.subr.mxu0 0.0
      %1752 = vmatpush2.msra.mxu0 0.0
      %1753 = vmatprep.subr.mxu0 0.0
      %1754 = vmatpush2.msra.mxu0 0.0
      %1755 = vmatprep.subr.mxu0 0.0
      %1756 = vmatpush2.msra.mxu0 0.0
      %1757 = vmatprep.subr.mxu0 0.0
      %1758 = vmatpush2.msra.mxu0 0.0
      %1759 = vmatprep.subr.mxu0 0.0
      %1760 = vmatpush2.msra.mxu0 0.0
      %1761 = vmatprep.subr.mxu0 0.0
      %1762 = vmatpush2.msra.mxu0 0.0
      %1763 = vmatprep.subr.mxu0 0.0
      %1764 = vmatpush2.msra.mxu0 0.0
      %1765 = vmatprep.subr.mxu0 0.0
      %1766 = vmatpush2.msra.mxu0 0.0
      %1767 = vmatprep.subr.mxu0 0.0
      %1768 = vmatpush2.msra.mxu0 0.0
      %1769 = vmatprep.subr.mxu0 0.0
      %1770 = vmatpush2.msra.mxu0 0.0
      %1771 = vmatprep.subr.mxu0 0.0
      %1772 = vmatpush2.msra.mxu0 0.0
      %1773 = vmatprep.subr.mxu0 0.0
      %1774 = vmatpush2.msra.mxu0 0.0
      %1775 = vmatprep.subr.mxu0 0.0
      %1776 = vmatpush2.msra.mxu0 0.0
      %1777 = vmatprep.mubr.f32.mxu0 0.0
      %1778 = vmatmul.mubr.f32.gmra.mxu0 %v1711
      %v1779 = vpop.f32.mrf.mxu0
      %v1780 = vadd.f32 0.0, %v1779
      %v1781 = vpop.f32.mrf.mxu0
      %v1782 = vadd.f32 0.0, %v1781
      %1783 = vdwg.mxu0
      %v1785 = vsel %vm668, %v1695, 0
      %1787 = vmatprep.subr.mxu0 0.0
      %1788 = vmatpush1.msra.mxu0 0.0
      %1789 = vmatprep.subr.mxu0 0.0
      %1790 = vmatpush1.msra.mxu0 0.0
      %1791 = vmatprep.subr.mxu0 0.0
      %1792 = vmatpush1.msra.mxu0 0.0
      %1793 = vmatprep.subr.mxu0 0.0
      %1794 = vmatpush1.msra.mxu0 0.0
      %1795 = vmatprep.subr.mxu0 0.0
      %1796 = vmatpush1.msra.mxu0 0.0
      %1797 = vmatprep.subr.mxu0 0.0
      %1798 = vmatpush1.msra.mxu0 0.0
      %1799 = vmatprep.subr.mxu0 0.0
      %1800 = vmatpush1.msra.mxu0 0.0
      %1801 = vmatprep.subr.mxu0 0.0
      %1802 = vmatpush1.msra.mxu0 0.0
      %1803 = vmatprep.subr.mxu0 0.0
      %1804 = vmatpush1.msra.mxu0 0.0
      %1805 = vmatprep.subr.mxu0 0.0
      %1806 = vmatpush1.msra.mxu0 0.0
      %1807 = vmatprep.subr.mxu0 0.0
      %1808 = vmatpush1.msra.mxu0 0.0
      %1809 = vmatprep.subr.mxu0 0.0
      %1810 = vmatpush1.msra.mxu0 0.0
      %1811 = vmatprep.subr.mxu0 0.0
      %1812 = vmatpush1.msra.mxu0 0.0
      %1813 = vmatprep.subr.mxu0 0.0
      %1814 = vmatpush1.msra.mxu0 0.0
      %1815 = vmatprep.subr.mxu0 0.0
      %1816 = vmatpush1.msra.mxu0 0.0
      %1817 = vmatprep.subr.mxu0 %v1697
      %1818 = vmatpush1.msra.mxu0 %v1696
      %1819 = vmatprep.subr.mxu0 0.0
      %1820 = vmatpush2.msra.mxu0 0.0
      %1821 = vmatprep.subr.mxu0 0.0
      %1822 = vmatpush2.msra.mxu0 0.0
      %1823 = vmatprep.subr.mxu0 0.0
      %1824 = vmatpush2.msra.mxu0 0.0
      %1825 = vmatprep.subr.mxu0 0.0
      %1826 = vmatpush2.msra.mxu0 0.0
      %1827 = vmatprep.subr.mxu0 0.0
      %1828 = vmatpush2.msra.mxu0 0.0
      %1829 = vmatprep.subr.mxu0 0.0
      %1830 = vmatpush2.msra.mxu0 0.0
      %1831 = vmatprep.subr.mxu0 0.0
      %1832 = vmatpush2.msra.mxu0 0.0
      %1833 = vmatprep.subr.mxu0 0.0
      %1834 = vmatpush2.msra.mxu0 0.0
      %1835 = vmatprep.subr.mxu0 0.0
      %1836 = vmatpush2.msra.mxu0 0.0
      %1837 = vmatprep.subr.mxu0 0.0
      %1838 = vmatpush2.msra.mxu0 0.0
      %1839 = vmatprep.subr.mxu0 0.0
      %1840 = vmatpush2.msra.mxu0 0.0
      %1841 = vmatprep.subr.mxu0 0.0
      %1842 = vmatpush2.msra.mxu0 0.0
      %1843 = vmatprep.subr.mxu0 0.0
      %1844 = vmatpush2.msra.mxu0 0.0
      %1845 = vmatprep.subr.mxu0 0.0
      %1846 = vmatpush2.msra.mxu0 0.0
      %1847 = vmatprep.subr.mxu0 0.0
      %1848 = vmatpush2.msra.mxu0 0.0
      %1849 = vmatprep.subr.mxu0 0.0
      %1850 = vmatpush2.msra.mxu0 0.0
      %1851 = vmatprep.mubr.f32.mxu0 0.0
      %1852 = vmatmul.mubr.f32.gmra.mxu0 %v1785
      %v1853 = vpop.f32.mrf.mxu0
      %v1854 = vadd.f32 %v1780, %v1853
      %v1855 = vpop.f32.mrf.mxu0
      %v1856 = vadd.f32 %v1782, %v1855
      %1857 = vdwg.mxu0
      %1858 = vrot.lane.b32.xlu0 %v1683, 15
      %v1859 = vpop.permute.xlu0 %1858
      %1860 = vrot.lane.b32.xlu0 %v1684, 15
      %v1861 = vpop.permute.xlu0 %1860
      %v1862 = vsel %vm823, %v1859, %v1861
      %v1865 = vsel %vm823, 0.0, %v1859
      %s1866 = scalar_lea.vmem %s7, 16
      %v1867 = vld [vmem:[%s1866] sm:$0xff]
      %v1868 = vmul.f32 %v1865, %v834
      %v1869 = vmul.f32 %v1862, %v838
      %v1871 = vsel %vm668, %v1867, 0
      %1873 = vmatprep.subr.mxu0 0.0
      %1874 = vmatpush1.msra.mxu0 0.0
      %1875 = vmatprep.subr.mxu0 0.0
      %1876 = vmatpush1.msra.mxu0 0.0
      %1877 = vmatprep.subr.mxu0 0.0
      %1878 = vmatpush1.msra.mxu0 0.0
      %1879 = vmatprep.subr.mxu0 0.0
      %1880 = vmatpush1.msra.mxu0 0.0
      %1881 = vmatprep.subr.mxu0 0.0
      %1882 = vmatpush1.msra.mxu0 0.0
      %1883 = vmatprep.subr.mxu0 0.0
      %1884 = vmatpush1.msra.mxu0 0.0
      %1885 = vmatprep.subr.mxu0 0.0
      %1886 = vmatpush1.msra.mxu0 0.0
      %1887 = vmatprep.subr.mxu0 0.0
      %1888 = vmatpush1.msra.mxu0 0.0
      %1889 = vmatprep.subr.mxu0 0.0
      %1890 = vmatpush1.msra.mxu0 0.0
      %1891 = vmatprep.subr.mxu0 0.0
      %1892 = vmatpush1.msra.mxu0 0.0
      %1893 = vmatprep.subr.mxu0 0.0
      %1894 = vmatpush1.msra.mxu0 0.0
      %1895 = vmatprep.subr.mxu0 0.0
      %1896 = vmatpush1.msra.mxu0 0.0
      %1897 = vmatprep.subr.mxu0 0.0
      %1898 = vmatpush1.msra.mxu0 0.0
      %1899 = vmatprep.subr.mxu0 0.0
      %1900 = vmatpush1.msra.mxu0 0.0
      %1901 = vmatprep.subr.mxu0 0.0
      %1902 = vmatpush1.msra.mxu0 0.0
      %1903 = vmatprep.subr.mxu0 %v1869
      %1904 = vmatpush1.msra.mxu0 %v1868
      %1905 = vmatprep.subr.mxu0 0.0
      %1906 = vmatpush2.msra.mxu0 0.0
      %1907 = vmatprep.subr.mxu0 0.0
      %1908 = vmatpush2.msra.mxu0 0.0
      %1909 = vmatprep.subr.mxu0 0.0
      %1910 = vmatpush2.msra.mxu0 0.0
      %1911 = vmatprep.subr.mxu0 0.0
      %1912 = vmatpush2.msra.mxu0 0.0
      %1913 = vmatprep.subr.mxu0 0.0
      %1914 = vmatpush2.msra.mxu0 0.0
      %1915 = vmatprep.subr.mxu0 0.0
      %1916 = vmatpush2.msra.mxu0 0.0
      %1917 = vmatprep.subr.mxu0 0.0
      %1918 = vmatpush2.msra.mxu0 0.0
      %1919 = vmatprep.subr.mxu0 0.0
      %1920 = vmatpush2.msra.mxu0 0.0
      %1921 = vmatprep.subr.mxu0 0.0
      %1922 = vmatpush2.msra.mxu0 0.0
      %1923 = vmatprep.subr.mxu0 0.0
      %1924 = vmatpush2.msra.mxu0 0.0
      %1925 = vmatprep.subr.mxu0 0.0
      %1926 = vmatpush2.msra.mxu0 0.0
      %1927 = vmatprep.subr.mxu0 0.0
      %1928 = vmatpush2.msra.mxu0 0.0
      %1929 = vmatprep.subr.mxu0 0.0
      %1930 = vmatpush2.msra.mxu0 0.0
      %1931 = vmatprep.subr.mxu0 0.0
      %1932 = vmatpush2.msra.mxu0 0.0
      %1933 = vmatprep.subr.mxu0 0.0
      %1934 = vmatpush2.msra.mxu0 0.0
      %1935 = vmatprep.subr.mxu0 0.0
      %1936 = vmatpush2.msra.mxu0 0.0
      %1937 = vmatprep.mubr.f32.mxu0 0.0
      %1938 = vmatmul.mubr.f32.gmra.mxu0 %v1871
      %v1939 = vpop.f32.mrf.mxu0
      %v1940 = vadd.f32 0.0, %v1939
      %v1941 = vpop.f32.mrf.mxu0
      %v1942 = vadd.f32 0.0, %v1941
      %1943 = vdwg.mxu0
      %v1944 = vadd.f32 %v1854, %v1940
      %v1945 = vadd.f32 %v1856, %v1942
      %1946 = vrot.lane.b32.xlu0 %v1683, 1
      %v1947 = vpop.permute.xlu0 %1946
      %1948 = vrot.lane.b32.xlu0 %v1684, 1
      %v1949 = vpop.permute.xlu0 %1948
      %v1950 = vsel %vm925, %v1947, %v1949
      %v1953 = vsel %vm925, 0.0, %v1947
      %s1954 = scalar_lea.vmem %s7, 24
      %v1955 = vld [vmem:[%s1954] sm:$0xff]
      %v1956 = vmul.f32 %v1953, %v936
      %v1957 = vmul.f32 %v1950, %v940
      %v1959 = vsel %vm668, %v1955, 0
      %1961 = vmatprep.subr.mxu0 0.0
      %1962 = vmatpush1.msra.mxu0 0.0
      %1963 = vmatprep.subr.mxu0 0.0
      %1964 = vmatpush1.msra.mxu0 0.0
      %1965 = vmatprep.subr.mxu0 0.0
      %1966 = vmatpush1.msra.mxu0 0.0
      %1967 = vmatprep.subr.mxu0 0.0
      %1968 = vmatpush1.msra.mxu0 0.0
      %1969 = vmatprep.subr.mxu0 0.0
      %1970 = vmatpush1.msra.mxu0 0.0
      %1971 = vmatprep.subr.mxu0 0.0
      %1972 = vmatpush1.msra.mxu0 0.0
      %1973 = vmatprep.subr.mxu0 0.0
      %1974 = vmatpush1.msra.mxu0 0.0
      %1975 = vmatprep.subr.mxu0 0.0
      %1976 = vmatpush1.msra.mxu0 0.0
      %1977 = vmatprep.subr.mxu0 0.0
      %1978 = vmatpush1.msra.mxu0 0.0
      %1979 = vmatprep.subr.mxu0 0.0
      %1980 = vmatpush1.msra.mxu0 0.0
      %1981 = vmatprep.subr.mxu0 0.0
      %1982 = vmatpush1.msra.mxu0 0.0
      %1983 = vmatprep.subr.mxu0 0.0
      %1984 = vmatpush1.msra.mxu0 0.0
      %1985 = vmatprep.subr.mxu0 0.0
      %1986 = vmatpush1.msra.mxu0 0.0
      %1987 = vmatprep.subr.mxu0 0.0
      %1988 = vmatpush1.msra.mxu0 0.0
      %1989 = vmatprep.subr.mxu0 0.0
      %1990 = vmatpush1.msra.mxu0 0.0
      %1991 = vmatprep.subr.mxu0 %v1957
      %1992 = vmatpush1.msra.mxu0 %v1956
      %1993 = vmatprep.subr.mxu0 0.0
      %1994 = vmatpush2.msra.mxu0 0.0
      %1995 = vmatprep.subr.mxu0 0.0
      %1996 = vmatpush2.msra.mxu0 0.0
      %1997 = vmatprep.subr.mxu0 0.0
      %1998 = vmatpush2.msra.mxu0 0.0
      %1999 = vmatprep.subr.mxu0 0.0
      %2000 = vmatpush2.msra.mxu0 0.0
      %2001 = vmatprep.subr.mxu0 0.0
      %2002 = vmatpush2.msra.mxu0 0.0
      %2003 = vmatprep.subr.mxu0 0.0
      %2004 = vmatpush2.msra.mxu0 0.0
      %2005 = vmatprep.subr.mxu0 0.0
      %2006 = vmatpush2.msra.mxu0 0.0
      %2007 = vmatprep.subr.mxu0 0.0
      %2008 = vmatpush2.msra.mxu0 0.0
      %2009 = vmatprep.subr.mxu0 0.0
      %2010 = vmatpush2.msra.mxu0 0.0
      %2011 = vmatprep.subr.mxu0 0.0
      %2012 = vmatpush2.msra.mxu0 0.0
      %2013 = vmatprep.subr.mxu0 0.0
      %2014 = vmatpush2.msra.mxu0 0.0
      %2015 = vmatprep.subr.mxu0 0.0
      %2016 = vmatpush2.msra.mxu0 0.0
      %2017 = vmatprep.subr.mxu0 0.0
      %2018 = vmatpush2.msra.mxu0 0.0
      %2019 = vmatprep.subr.mxu0 0.0
      %2020 = vmatpush2.msra.mxu0 0.0
      %2021 = vmatprep.subr.mxu0 0.0
      %2022 = vmatpush2.msra.mxu0 0.0
      %2023 = vmatprep.subr.mxu0 0.0
      %2024 = vmatpush2.msra.mxu0 0.0
      %2025 = vmatprep.mubr.f32.mxu0 0.0
      %2026 = vmatmul.mubr.f32.gmra.mxu0 %v1959
      %v2027 = vpop.f32.mrf.mxu0
      %v2028 = vadd.f32 0.0, %v2027
      %v2029 = vpop.f32.mrf.mxu0
      %v2030 = vadd.f32 0.0, %v2029
      %2031 = vdwg.mxu0
      %v2032 = vadd.f32 %v1944, %v2028
      %v2033 = vadd.f32 %v1945, %v2030
      %s2034 = scalar_lea.vmem %s7, 32
      %v2035 = vld [vmem:[%s2034] sm:$0xff]
      %v2036 = vmul.f32 %v1683, %v1029
      %v2037 = vmul.f32 %v1684, %v1033
      %v2039 = vsel %vm668, %v2035, 0
      %2041 = vmatprep.subr.mxu0 0.0
      %2042 = vmatpush1.msra.mxu0 0.0
      %2043 = vmatprep.subr.mxu0 0.0
      %2044 = vmatpush1.msra.mxu0 0.0
      %2045 = vmatprep.subr.mxu0 0.0
      %2046 = vmatpush1.msra.mxu0 0.0
      %2047 = vmatprep.subr.mxu0 0.0
      %2048 = vmatpush1.msra.mxu0 0.0
      %2049 = vmatprep.subr.mxu0 0.0
      %2050 = vmatpush1.msra.mxu0 0.0
      %2051 = vmatprep.subr.mxu0 0.0
      %2052 = vmatpush1.msra.mxu0 0.0
      %2053 = vmatprep.subr.mxu0 0.0
      %2054 = vmatpush1.msra.mxu0 0.0
      %2055 = vmatprep.subr.mxu0 0.0
      %2056 = vmatpush1.msra.mxu0 0.0
      %2057 = vmatprep.subr.mxu0 0.0
      %2058 = vmatpush1.msra.mxu0 0.0
      %2059 = vmatprep.subr.mxu0 0.0
      %2060 = vmatpush1.msra.mxu0 0.0
      %2061 = vmatprep.subr.mxu0 0.0
      %2062 = vmatpush1.msra.mxu0 0.0
      %2063 = vmatprep.subr.mxu0 0.0
      %2064 = vmatpush1.msra.mxu0 0.0
      %2065 = vmatprep.subr.mxu0 0.0
      %2066 = vmatpush1.msra.mxu0 0.0
      %2067 = vmatprep.subr.mxu0 0.0
      %2068 = vmatpush1.msra.mxu0 0.0
      %2069 = vmatprep.subr.mxu0 0.0
      %2070 = vmatpush1.msra.mxu0 0.0
      %2071 = vmatprep.subr.mxu0 %v2037
      %2072 = vmatpush1.msra.mxu0 %v2036
      %2073 = vmatprep.subr.mxu0 0.0
      %2074 = vmatpush2.msra.mxu0 0.0
      %2075 = vmatprep.subr.mxu0 0.0
      %2076 = vmatpush2.msra.mxu0 0.0
      %2077 = vmatprep.subr.mxu0 0.0
      %2078 = vmatpush2.msra.mxu0 0.0
      %2079 = vmatprep.subr.mxu0 0.0
      %2080 = vmatpush2.msra.mxu0 0.0
      %2081 = vmatprep.subr.mxu0 0.0
      %2082 = vmatpush2.msra.mxu0 0.0
      %2083 = vmatprep.subr.mxu0 0.0
      %2084 = vmatpush2.msra.mxu0 0.0
      %2085 = vmatprep.subr.mxu0 0.0
      %2086 = vmatpush2.msra.mxu0 0.0
      %2087 = vmatprep.subr.mxu0 0.0
      %2088 = vmatpush2.msra.mxu0 0.0
      %2089 = vmatprep.subr.mxu0 0.0
      %2090 = vmatpush2.msra.mxu0 0.0
      %2091 = vmatprep.subr.mxu0 0.0
      %2092 = vmatpush2.msra.mxu0 0.0
      %2093 = vmatprep.subr.mxu0 0.0
      %2094 = vmatpush2.msra.mxu0 0.0
      %2095 = vmatprep.subr.mxu0 0.0
      %2096 = vmatpush2.msra.mxu0 0.0
      %2097 = vmatprep.subr.mxu0 0.0
      %2098 = vmatpush2.msra.mxu0 0.0
      %2099 = vmatprep.subr.mxu0 0.0
      %2100 = vmatpush2.msra.mxu0 0.0
      %2101 = vmatprep.subr.mxu0 0.0
      %2102 = vmatpush2.msra.mxu0 0.0
      %2103 = vmatprep.subr.mxu0 0.0
      %2104 = vmatpush2.msra.mxu0 0.0
      %2105 = vmatprep.mubr.f32.mxu0 0.0
      %2106 = vmatmul.mubr.f32.gmra.mxu0 %v2039
      %v2107 = vpop.f32.mrf.mxu0
      %v2108 = vadd.f32 0.0, %v2107
      %v2109 = vpop.f32.mrf.mxu0
      %v2110 = vadd.f32 0.0, %v2109
      %2111 = vdwg.mxu0
      %v2112 = vadd.f32 %v2032, %v2108
      %v2113 = vadd.f32 %v2033, %v2110
      %2114 = vrot.lane.b32.xlu0 %v1683, 127
      %v2115 = vpop.permute.xlu0 %2114
      %2116 = vrot.lane.b32.xlu0 %v1684, 127
      %v2117 = vpop.permute.xlu0 %2116
      %v2118 = vsel %vm1120, %v2115, %v2117
      %v2121 = vsel %vm1120, %v2117, 0.0
      %s2122 = scalar_lea.vmem %s7, 40
      %v2123 = vld [vmem:[%s2122] sm:$0xff]
      %v2124 = vmul.f32 %v2118, %v1131
      %v2125 = vmul.f32 %v2121, %v1135
      %v2127 = vsel %vm668, %v2123, 0
      %2129 = vmatprep.subr.mxu0 0.0
      %2130 = vmatpush1.msra.mxu0 0.0
      %2131 = vmatprep.subr.mxu0 0.0
      %2132 = vmatpush1.msra.mxu0 0.0
      %2133 = vmatprep.subr.mxu0 0.0
      %2134 = vmatpush1.msra.mxu0 0.0
      %2135 = vmatprep.subr.mxu0 0.0
      %2136 = vmatpush1.msra.mxu0 0.0
      %2137 = vmatprep.subr.mxu0 0.0
      %2138 = vmatpush1.msra.mxu0 0.0
      %2139 = vmatprep.subr.mxu0 0.0
      %2140 = vmatpush1.msra.mxu0 0.0
      %2141 = vmatprep.subr.mxu0 0.0
      %2142 = vmatpush1.msra.mxu0 0.0
      %2143 = vmatprep.subr.mxu0 0.0
      %2144 = vmatpush1.msra.mxu0 0.0
      %2145 = vmatprep.subr.mxu0 0.0
      %2146 = vmatpush1.msra.mxu0 0.0
      %2147 = vmatprep.subr.mxu0 0.0
      %2148 = vmatpush1.msra.mxu0 0.0
      %2149 = vmatprep.subr.mxu0 0.0
      %2150 = vmatpush1.msra.mxu0 0.0
      %2151 = vmatprep.subr.mxu0 0.0
      %2152 = vmatpush1.msra.mxu0 0.0
      %2153 = vmatprep.subr.mxu0 0.0
      %2154 = vmatpush1.msra.mxu0 0.0
      %2155 = vmatprep.subr.mxu0 0.0
      %2156 = vmatpush1.msra.mxu0 0.0
      %2157 = vmatprep.subr.mxu0 0.0
      %2158 = vmatpush1.msra.mxu0 0.0
      %2159 = vmatprep.subr.mxu0 %v2125
      %2160 = vmatpush1.msra.mxu0 %v2124
      %2161 = vmatprep.subr.mxu0 0.0
      %2162 = vmatpush2.msra.mxu0 0.0
      %2163 = vmatprep.subr.mxu0 0.0
      %2164 = vmatpush2.msra.mxu0 0.0
      %2165 = vmatprep.subr.mxu0 0.0
      %2166 = vmatpush2.msra.mxu0 0.0
      %2167 = vmatprep.subr.mxu0 0.0
      %2168 = vmatpush2.msra.mxu0 0.0
      %2169 = vmatprep.subr.mxu0 0.0
      %2170 = vmatpush2.msra.mxu0 0.0
      %2171 = vmatprep.subr.mxu0 0.0
      %2172 = vmatpush2.msra.mxu0 0.0
      %2173 = vmatprep.subr.mxu0 0.0
      %2174 = vmatpush2.msra.mxu0 0.0
      %2175 = vmatprep.subr.mxu0 0.0
      %2176 = vmatpush2.msra.mxu0 0.0
      %2177 = vmatprep.subr.mxu0 0.0
      %2178 = vmatpush2.msra.mxu0 0.0
      %2179 = vmatprep.subr.mxu0 0.0
      %2180 = vmatpush2.msra.mxu0 0.0
      %2181 = vmatprep.subr.mxu0 0.0
      %2182 = vmatpush2.msra.mxu0 0.0
      %2183 = vmatprep.subr.mxu0 0.0
      %2184 = vmatpush2.msra.mxu0 0.0
      %2185 = vmatprep.subr.mxu0 0.0
      %2186 = vmatpush2.msra.mxu0 0.0
      %2187 = vmatprep.subr.mxu0 0.0
      %2188 = vmatpush2.msra.mxu0 0.0
      %2189 = vmatprep.subr.mxu0 0.0
      %2190 = vmatpush2.msra.mxu0 0.0
      %2191 = vmatprep.subr.mxu0 0.0
      %2192 = vmatpush2.msra.mxu0 0.0
      %2193 = vmatprep.mubr.f32.mxu0 0.0
      %2194 = vmatmul.mubr.f32.gmra.mxu0 %v2127
      %v2195 = vpop.f32.mrf.mxu0
      %v2196 = vadd.f32 0.0, %v2195
      %v2197 = vpop.f32.mrf.mxu0
      %v2198 = vadd.f32 0.0, %v2197
      %2199 = vdwg.mxu0
      %v2200 = vadd.f32 %v2112, %v2196
      %v2201 = vadd.f32 %v2113, %v2198
      %2202 = vrot.lane.b32.xlu0 %v1683, 113
      %v2203 = vpop.permute.xlu0 %2202
      %2204 = vrot.lane.b32.xlu0 %v1684, 113
      %v2205 = vpop.permute.xlu0 %2204
      %v2206 = vsel %vm1222, %v2203, %v2205
      %v2209 = vsel %vm1222, %v2205, 0.0
      %s2210 = scalar_lea.vmem %s7, 48
      %v2211 = vld [vmem:[%s2210] sm:$0xff]
      %v2212 = vmul.f32 %v2206, %v1233
      %v2213 = vmul.f32 %v2209, %v1237
      %v2215 = vsel %vm668, %v2211, 0
      %2217 = vmatprep.subr.mxu0 0.0
      %2218 = vmatpush1.msra.mxu0 0.0
      %2219 = vmatprep.subr.mxu0 0.0
      %2220 = vmatpush1.msra.mxu0 0.0
      %2221 = vmatprep.subr.mxu0 0.0
      %2222 = vmatpush1.msra.mxu0 0.0
      %2223 = vmatprep.subr.mxu0 0.0
      %2224 = vmatpush1.msra.mxu0 0.0
      %2225 = vmatprep.subr.mxu0 0.0
      %2226 = vmatpush1.msra.mxu0 0.0
      %2227 = vmatprep.subr.mxu0 0.0
      %2228 = vmatpush1.msra.mxu0 0.0
      %2229 = vmatprep.subr.mxu0 0.0
      %2230 = vmatpush1.msra.mxu0 0.0
      %2231 = vmatprep.subr.mxu0 0.0
      %2232 = vmatpush1.msra.mxu0 0.0
      %2233 = vmatprep.subr.mxu0 0.0
      %2234 = vmatpush1.msra.mxu0 0.0
      %2235 = vmatprep.subr.mxu0 0.0
      %2236 = vmatpush1.msra.mxu0 0.0
      %2237 = vmatprep.subr.mxu0 0.0
      %2238 = vmatpush1.msra.mxu0 0.0
      %2239 = vmatprep.subr.mxu0 0.0
      %2240 = vmatpush1.msra.mxu0 0.0
      %2241 = vmatprep.subr.mxu0 0.0
      %2242 = vmatpush1.msra.mxu0 0.0
      %2243 = vmatprep.subr.mxu0 0.0
      %2244 = vmatpush1.msra.mxu0 0.0
      %2245 = vmatprep.subr.mxu0 0.0
      %2246 = vmatpush1.msra.mxu0 0.0
      %2247 = vmatprep.subr.mxu0 %v2213
      %2248 = vmatpush1.msra.mxu0 %v2212
      %2249 = vmatprep.subr.mxu0 0.0
      %2250 = vmatpush2.msra.mxu0 0.0
      %2251 = vmatprep.subr.mxu0 0.0
      %2252 = vmatpush2.msra.mxu0 0.0
      %2253 = vmatprep.subr.mxu0 0.0
      %2254 = vmatpush2.msra.mxu0 0.0
      %2255 = vmatprep.subr.mxu0 0.0
      %2256 = vmatpush2.msra.mxu0 0.0
      %2257 = vmatprep.subr.mxu0 0.0
      %2258 = vmatpush2.msra.mxu0 0.0
      %2259 = vmatprep.subr.mxu0 0.0
      %2260 = vmatpush2.msra.mxu0 0.0
      %2261 = vmatprep.subr.mxu0 0.0
      %2262 = vmatpush2.msra.mxu0 0.0
      %2263 = vmatprep.subr.mxu0 0.0
      %2264 = vmatpush2.msra.mxu0 0.0
      %2265 = vmatprep.subr.mxu0 0.0
      %2266 = vmatpush2.msra.mxu0 0.0
      %2267 = vmatprep.subr.mxu0 0.0
      %2268 = vmatpush2.msra.mxu0 0.0
      %2269 = vmatprep.subr.mxu0 0.0
      %2270 = vmatpush2.msra.mxu0 0.0
      %2271 = vmatprep.subr.mxu0 0.0
      %2272 = vmatpush2.msra.mxu0 0.0
      %2273 = vmatprep.subr.mxu0 0.0
      %2274 = vmatpush2.msra.mxu0 0.0
      %2275 = vmatprep.subr.mxu0 0.0
      %2276 = vmatpush2.msra.mxu0 0.0
      %2277 = vmatprep.subr.mxu0 0.0
      %2278 = vmatpush2.msra.mxu0 0.0
      %2279 = vmatprep.subr.mxu0 0.0
      %2280 = vmatpush2.msra.mxu0 0.0
      %2281 = vmatprep.mubr.f32.mxu0 0.0
      %2282 = vmatmul.mubr.f32.gmra.mxu0 %v2215
      %v2283 = vpop.f32.mrf.mxu0
      %v2284 = vadd.f32 0.0, %v2283
      %v2285 = vpop.f32.mrf.mxu0
      %v2286 = vadd.f32 0.0, %v2285
      %2287 = vdwg.mxu0
      %v2288 = vadd.f32 %v2200, %v2284
      %v2289 = vadd.f32 %v2201, %v2286
      %2290 = vrot.lane.b32.xlu0 %v1683, 112
      %v2291 = vpop.permute.xlu0 %2290
      %2292 = vrot.lane.b32.xlu0 %v1684, 112
      %v2293 = vpop.permute.xlu0 %2292
      %v2294 = vsel %vm1324, %v2291, %v2293
      %v2297 = vsel %vm1324, %v2293, 0.0
      %s2298 = scalar_lea.vmem %s7, 56
      %v2299 = vld [vmem:[%s2298] sm:$0xff]
      %v2300 = vmul.f32 %v2294, %v1335
      %v2301 = vmul.f32 %v2297, %v1339
      %v2303 = vsel %vm668, %v2299, 0
      %2305 = vmatprep.subr.mxu0 0.0
      %2306 = vmatpush1.msra.mxu0 0.0
      %2307 = vmatprep.subr.mxu0 0.0
      %2308 = vmatpush1.msra.mxu0 0.0
      %2309 = vmatprep.subr.mxu0 0.0
      %2310 = vmatpush1.msra.mxu0 0.0
      %2311 = vmatprep.subr.mxu0 0.0
      %2312 = vmatpush1.msra.mxu0 0.0
      %2313 = vmatprep.subr.mxu0 0.0
      %2314 = vmatpush1.msra.mxu0 0.0
      %2315 = vmatprep.subr.mxu0 0.0
      %2316 = vmatpush1.msra.mxu0 0.0
      %2317 = vmatprep.subr.mxu0 0.0
      %2318 = vmatpush1.msra.mxu0 0.0
      %2319 = vmatprep.subr.mxu0 0.0
      %2320 = vmatpush1.msra.mxu0 0.0
      %2321 = vmatprep.subr.mxu0 0.0
      %2322 = vmatpush1.msra.mxu0 0.0
      %2323 = vmatprep.subr.mxu0 0.0
      %2324 = vmatpush1.msra.mxu0 0.0
      %2325 = vmatprep.subr.mxu0 0.0
      %2326 = vmatpush1.msra.mxu0 0.0
      %2327 = vmatprep.subr.mxu0 0.0
      %2328 = vmatpush1.msra.mxu0 0.0
      %2329 = vmatprep.subr.mxu0 0.0
      %2330 = vmatpush1.msra.mxu0 0.0
      %2331 = vmatprep.subr.mxu0 0.0
      %2332 = vmatpush1.msra.mxu0 0.0
      %2333 = vmatprep.subr.mxu0 0.0
      %2334 = vmatpush1.msra.mxu0 0.0
      %2335 = vmatprep.subr.mxu0 %v2301
      %2336 = vmatpush1.msra.mxu0 %v2300
      %2337 = vmatprep.subr.mxu0 0.0
      %2338 = vmatpush2.msra.mxu0 0.0
      %2339 = vmatprep.subr.mxu0 0.0
      %2340 = vmatpush2.msra.mxu0 0.0
      %2341 = vmatprep.subr.mxu0 0.0
      %2342 = vmatpush2.msra.mxu0 0.0
      %2343 = vmatprep.subr.mxu0 0.0
      %2344 = vmatpush2.msra.mxu0 0.0
      %2345 = vmatprep.subr.mxu0 0.0
      %2346 = vmatpush2.msra.mxu0 0.0
      %2347 = vmatprep.subr.mxu0 0.0
      %2348 = vmatpush2.msra.mxu0 0.0
      %2349 = vmatprep.subr.mxu0 0.0
      %2350 = vmatpush2.msra.mxu0 0.0
      %2351 = vmatprep.subr.mxu0 0.0
      %2352 = vmatpush2.msra.mxu0 0.0
      %2353 = vmatprep.subr.mxu0 0.0
      %2354 = vmatpush2.msra.mxu0 0.0
      %2355 = vmatprep.subr.mxu0 0.0
      %2356 = vmatpush2.msra.mxu0 0.0
      %2357 = vmatprep.subr.mxu0 0.0
      %2358 = vmatpush2.msra.mxu0 0.0
      %2359 = vmatprep.subr.mxu0 0.0
      %2360 = vmatpush2.msra.mxu0 0.0
      %2361 = vmatprep.subr.mxu0 0.0
      %2362 = vmatpush2.msra.mxu0 0.0
      %2363 = vmatprep.subr.mxu0 0.0
      %2364 = vmatpush2.msra.mxu0 0.0
      %2365 = vmatprep.subr.mxu0 0.0
      %2366 = vmatpush2.msra.mxu0 0.0
      %2367 = vmatprep.subr.mxu0 0.0
      %2368 = vmatpush2.msra.mxu0 0.0
      %2369 = vmatprep.mubr.f32.mxu0 0.0
      %2370 = vmatmul.mubr.f32.gmra.mxu0 %v2303
      %v2371 = vpop.f32.mrf.mxu0
      %v2372 = vadd.f32 0.0, %v2371
      %v2373 = vpop.f32.mrf.mxu0
      %v2374 = vadd.f32 0.0, %v2373
      %2375 = vdwg.mxu0
      %v2376 = vadd.f32 %v2288, %v2372
      %v2377 = vadd.f32 %v2289, %v2374
      %2378 = vrot.lane.b32.xlu0 %v1683, 111
      %v2379 = vpop.permute.xlu0 %2378
      %2380 = vrot.lane.b32.xlu0 %v1684, 111
      %v2381 = vpop.permute.xlu0 %2380
      %v2382 = vsel %vm1426, %v2379, %v2381
      %v2385 = vsel %vm1426, %v2381, 0.0
      %s2386 = scalar_lea.vmem %s7, 64
      %v2387 = vld [vmem:[%s2386] sm:$0xff]
      %v2388 = vmul.f32 %v2382, %v1437
      %v2389 = vmul.f32 %v2385, %v1441
      %v2391 = vsel %vm668, %v2387, 0
      %2393 = vmatprep.subr.mxu0 0.0
      %2394 = vmatpush1.msra.mxu0 0.0
      %2395 = vmatprep.subr.mxu0 0.0
      %2396 = vmatpush1.msra.mxu0 0.0
      %2397 = vmatprep.subr.mxu0 0.0
      %2398 = vmatpush1.msra.mxu0 0.0
      %2399 = vmatprep.subr.mxu0 0.0
      %2400 = vmatpush1.msra.mxu0 0.0
      %2401 = vmatprep.subr.mxu0 0.0
      %2402 = vmatpush1.msra.mxu0 0.0
      %2403 = vmatprep.subr.mxu0 0.0
      %2404 = vmatpush1.msra.mxu0 0.0
      %2405 = vmatprep.subr.mxu0 0.0
      %2406 = vmatpush1.msra.mxu0 0.0
      %2407 = vmatprep.subr.mxu0 0.0
      %2408 = vmatpush1.msra.mxu0 0.0
      %2409 = vmatprep.subr.mxu0 0.0
      %2410 = vmatpush1.msra.mxu0 0.0
      %2411 = vmatprep.subr.mxu0 0.0
      %2412 = vmatpush1.msra.mxu0 0.0
      %2413 = vmatprep.subr.mxu0 0.0
      %2414 = vmatpush1.msra.mxu0 0.0
      %2415 = vmatprep.subr.mxu0 0.0
      %2416 = vmatpush1.msra.mxu0 0.0
      %2417 = vmatprep.subr.mxu0 0.0
      %2418 = vmatpush1.msra.mxu0 0.0
      %2419 = vmatprep.subr.mxu0 0.0
      %2420 = vmatpush1.msra.mxu0 0.0
      %2421 = vmatprep.subr.mxu0 0.0
      %2422 = vmatpush1.msra.mxu0 0.0
      %2423 = vmatprep.subr.mxu0 %v2389
      %2424 = vmatpush1.msra.mxu0 %v2388
      %2425 = vmatprep.subr.mxu0 0.0
      %2426 = vmatpush2.msra.mxu0 0.0
      %2427 = vmatprep.subr.mxu0 0.0
      %2428 = vmatpush2.msra.mxu0 0.0
      %2429 = vmatprep.subr.mxu0 0.0
      %2430 = vmatpush2.msra.mxu0 0.0
      %2431 = vmatprep.subr.mxu0 0.0
      %2432 = vmatpush2.msra.mxu0 0.0
      %2433 = vmatprep.subr.mxu0 0.0
      %2434 = vmatpush2.msra.mxu0 0.0
      %2435 = vmatprep.subr.mxu0 0.0
      %2436 = vmatpush2.msra.mxu0 0.0
      %2437 = vmatprep.subr.mxu0 0.0
      %2438 = vmatpush2.msra.mxu0 0.0
      %2439 = vmatprep.subr.mxu0 0.0
      %2440 = vmatpush2.msra.mxu0 0.0
      %2441 = vmatprep.subr.mxu0 0.0
      %2442 = vmatpush2.msra.mxu0 0.0
      %2443 = vmatprep.subr.mxu0 0.0
      %2444 = vmatpush2.msra.mxu0 0.0
      %2445 = vmatprep.subr.mxu0 0.0
      %2446 = vmatpush2.msra.mxu0 0.0
      %2447 = vmatprep.subr.mxu0 0.0
      %2448 = vmatpush2.msra.mxu0 0.0
      %2449 = vmatprep.subr.mxu0 0.0
      %2450 = vmatpush2.msra.mxu0 0.0
      %2451 = vmatprep.subr.mxu0 0.0
      %2452 = vmatpush2.msra.mxu0 0.0
      %2453 = vmatprep.subr.mxu0 0.0
      %2454 = vmatpush2.msra.mxu0 0.0
      %2455 = vmatprep.subr.mxu0 0.0
      %2456 = vmatpush2.msra.mxu0 0.0
      %2457 = vmatprep.mubr.f32.mxu0 0.0
      %2458 = vmatmul.mubr.f32.gmra.mxu0 %v2391
      %v2459 = vpop.f32.mrf.mxu0
      %v2460 = vadd.f32 0.0, %v2459
      %v2461 = vpop.f32.mrf.mxu0
      %v2462 = vadd.f32 0.0, %v2461
      %2463 = vdwg.mxu0
      %v2464 = vadd.f32 %v2376, %v2460
      %v2465 = vadd.f32 %v2377, %v2462
      %v2466 = vld [vmem:[%s8] sm:$0xff]
      %2468 = vset.pattern.permute.xlu0 0
      %2469 = vperm.xlu0 %2468, %v2466
      %v2470 = vpop.permute.xlu0 %2469
      %v2472 = vadd.f32 %v2464, %v2470
      %v2473 = vadd.f32 %v2465, %v2470
      %v2474 = vmax.f32 %v2472, 0.0
      %v2475 = vmax.f32 %v2473, 0.0
      %v2476 = vmin.f32 %v2474, 6.0
      %v2477 = vmin.f32 %v2475, 6.0
      %2480 = vrot.lane.b32.xlu0 %v2476, 17
      %v2481 = vpop.permute.xlu0 %2480
      %2482 = vrot.lane.b32.xlu0 %v2477, 17
      %v2483 = vpop.permute.xlu0 %2482
      %v2484 = vsel %vm624, %v2481, %v2483
      %v2487 = vsel %vm624, 0.0, %v2481
      %v2488 = vld [vmem:[%s9] sm:$0xff]
      %v2489 = vmul.f32 %v2487, %v634
      %v2490 = vmul.f32 %v2484, %v638
      %2491 = vrot.lane.b32.xlu0 %v2476, 16
      %v2492 = vpop.permute.xlu0 %2491
      %2493 = vrot.lane.b32.xlu0 %v2477, 16
      %v2494 = vpop.permute.xlu0 %2493
      %v2495 = vsel %vm538, %v2492, %v2494
      %v2498 = vsel %vm538, 0.0, %v2492
      %s2499 = scalar_lea.vmem %s9, 8
      %v2500 = vld [vmem:[%s2499] sm:$0xff]
      %v2501 = vmul.f32 %v2498, %v659
      %v2502 = vmul.f32 %v2495, %v663
      %v2504 = vsel %vm668, %v2500, 0
      %2506 = vmatprep.subr.mxu0 0.0
      %2507 = vmatpush1.msra.mxu0 0.0
      %2508 = vmatprep.subr.mxu0 0.0
      %2509 = vmatpush1.msra.mxu0 0.0
      %2510 = vmatprep.subr.mxu0 0.0
      %2511 = vmatpush1.msra.mxu0 0.0
      %2512 = vmatprep.subr.mxu0 0.0
      %2513 = vmatpush1.msra.mxu0 0.0
      %2514 = vmatprep.subr.mxu0 0.0
      %2515 = vmatpush1.msra.mxu0 0.0
      %2516 = vmatprep.subr.mxu0 0.0
      %2517 = vmatpush1.msra.mxu0 0.0
      %2518 = vmatprep.subr.mxu0 0.0
      %2519 = vmatpush1.msra.mxu0 0.0
      %2520 = vmatprep.subr.mxu0 0.0
      %2521 = vmatpush1.msra.mxu0 0.0
      %2522 = vmatprep.subr.mxu0 0.0
      %2523 = vmatpush1.msra.mxu0 0.0
      %2524 = vmatprep.subr.mxu0 0.0
      %2525 = vmatpush1.msra.mxu0 0.0
      %2526 = vmatprep.subr.mxu0 0.0
      %2527 = vmatpush1.msra.mxu0 0.0
      %2528 = vmatprep.subr.mxu0 0.0
      %2529 = vmatpush1.msra.mxu0 0.0
      %2530 = vmatprep.subr.mxu0 0.0
      %2531 = vmatpush1.msra.mxu0 0.0
      %2532 = vmatprep.subr.mxu0 0.0
      %2533 = vmatpush1.msra.mxu0 0.0
      %2534 = vmatprep.subr.mxu0 0.0
      %2535 = vmatpush1.msra.mxu0 0.0
      %2536 = vmatprep.subr.mxu0 %v2502
      %2537 = vmatpush1.msra.mxu0 %v2501
      %2538 = vmatprep.subr.mxu0 0.0
      %2539 = vmatpush2.msra.mxu0 0.0
      %2540 = vmatprep.subr.mxu0 0.0
      %2541 = vmatpush2.msra.mxu0 0.0
      %2542 = vmatprep.subr.mxu0 0.0
      %2543 = vmatpush2.msra.mxu0 0.0
      %2544 = vmatprep.subr.mxu0 0.0
      %2545 = vmatpush2.msra.mxu0 0.0
      %2546 = vmatprep.subr.mxu0 0.0
      %2547 = vmatpush2.msra.mxu0 0.0
      %2548 = vmatprep.subr.mxu0 0.0
      %2549 = vmatpush2.msra.mxu0 0.0
      %2550 = vmatprep.subr.mxu0 0.0
      %2551 = vmatpush2.msra.mxu0 0.0
      %2552 = vmatprep.subr.mxu0 0.0
      %2553 = vmatpush2.msra.mxu0 0.0
      %2554 = vmatprep.subr.mxu0 0.0
      %2555 = vmatpush2.msra.mxu0 0.0
      %2556 = vmatprep.subr.mxu0 0.0
      %2557 = vmatpush2.msra.mxu0 0.0
      %2558 = vmatprep.subr.mxu0 0.0
      %2559 = vmatpush2.msra.mxu0 0.0
      %2560 = vmatprep.subr.mxu0 0.0
      %2561 = vmatpush2.msra.mxu0 0.0
      %2562 = vmatprep.subr.mxu0 0.0
      %2563 = vmatpush2.msra.mxu0 0.0
      %2564 = vmatprep.subr.mxu0 0.0
      %2565 = vmatpush2.msra.mxu0 0.0
      %2566 = vmatprep.subr.mxu0 0.0
      %2567 = vmatpush2.msra.mxu0 0.0
      %2568 = vmatprep.subr.mxu0 0.0
      %2569 = vmatpush2.msra.mxu0 0.0
      %2570 = vmatprep.mubr.f32.mxu0 0.0
      %2571 = vmatmul.mubr.f32.gmra.mxu0 %v2504
      %v2572 = vpop.f32.mrf.mxu0
      %v2573 = vadd.f32 0.0, %v2572
      %v2574 = vpop.f32.mrf.mxu0
      %v2575 = vadd.f32 0.0, %v2574
      %2576 = vdwg.mxu0
      %v2578 = vsel %vm668, %v2488, 0
      %2580 = vmatprep.subr.mxu0 0.0
      %2581 = vmatpush1.msra.mxu0 0.0
      %2582 = vmatprep.subr.mxu0 0.0
      %2583 = vmatpush1.msra.mxu0 0.0
      %2584 = vmatprep.subr.mxu0 0.0
      %2585 = vmatpush1.msra.mxu0 0.0
      %2586 = vmatprep.subr.mxu0 0.0
      %2587 = vmatpush1.msra.mxu0 0.0
      %2588 = vmatprep.subr.mxu0 0.0
      %2589 = vmatpush1.msra.mxu0 0.0
      %2590 = vmatprep.subr.mxu0 0.0
      %2591 = vmatpush1.msra.mxu0 0.0
      %2592 = vmatprep.subr.mxu0 0.0
      %2593 = vmatpush1.msra.mxu0 0.0
      %2594 = vmatprep.subr.mxu0 0.0
      %2595 = vmatpush1.msra.mxu0 0.0
      %2596 = vmatprep.subr.mxu0 0.0
      %2597 = vmatpush1.msra.mxu0 0.0
      %2598 = vmatprep.subr.mxu0 0.0
      %2599 = vmatpush1.msra.mxu0 0.0
      %2600 = vmatprep.subr.mxu0 0.0
      %2601 = vmatpush1.msra.mxu0 0.0
      %2602 = vmatprep.subr.mxu0 0.0
      %2603 = vmatpush1.msra.mxu0 0.0
      %2604 = vmatprep.subr.mxu0 0.0
      %2605 = vmatpush1.msra.mxu0 0.0
      %2606 = vmatprep.subr.mxu0 0.0
      %2607 = vmatpush1.msra.mxu0 0.0
      %2608 = vmatprep.subr.mxu0 0.0
      %2609 = vmatpush1.msra.mxu0 0.0
      %2610 = vmatprep.subr.mxu0 %v2490
      %2611 = vmatpush1.msra.mxu0 %v2489
      %2612 = vmatprep.subr.mxu0 0.0
      %2613 = vmatpush2.msra.mxu0 0.0
      %2614 = vmatprep.subr.mxu0 0.0
      %2615 = vmatpush2.msra.mxu0 0.0
      %2616 = vmatprep.subr.mxu0 0.0
      %2617 = vmatpush2.msra.mxu0 0.0
      %2618 = vmatprep.subr.mxu0 0.0
      %2619 = vmatpush2.msra.mxu0 0.0
      %2620 = vmatprep.subr.mxu0 0.0
      %2621 = vmatpush2.msra.mxu0 0.0
      %2622 = vmatprep.subr.mxu0 0.0
      %2623 = vmatpush2.msra.mxu0 0.0
      %2624 = vmatprep.subr.mxu0 0.0
      %2625 = vmatpush2.msra.mxu0 0.0
      %2626 = vmatprep.subr.mxu0 0.0
      %2627 = vmatpush2.msra.mxu0 0.0
      %2628 = vmatprep.subr.mxu0 0.0
      %2629 = vmatpush2.msra.mxu0 0.0
      %2630 = vmatprep.subr.mxu0 0.0
      %2631 = vmatpush2.msra.mxu0 0.0
      %2632 = vmatprep.subr.mxu0 0.0
      %2633 = vmatpush2.msra.mxu0 0.0
      %2634 = vmatprep.subr.mxu0 0.0
      %2635 = vmatpush2.msra.mxu0 0.0
      %2636 = vmatprep.subr.mxu0 0.0
      %2637 = vmatpush2.msra.mxu0 0.0
      %2638 = vmatprep.subr.mxu0 0.0
      %2639 = vmatpush2.msra.mxu0 0.0
      %2640 = vmatprep.subr.mxu0 0.0
      %2641 = vmatpush2.msra.mxu0 0.0
      %2642 = vmatprep.subr.mxu0 0.0
      %2643 = vmatpush2.msra.mxu0 0.0
      %2644 = vmatprep.mubr.f32.mxu0 0.0
      %2645 = vmatmul.mubr.f32.gmra.mxu0 %v2578
      %v2646 = vpop.f32.mrf.mxu0
      %v2647 = vadd.f32 %v2573, %v2646
      %v2648 = vpop.f32.mrf.mxu0
      %v2649 = vadd.f32 %v2575, %v2648
      %2650 = vdwg.mxu0
      %2651 = vrot.lane.b32.xlu0 %v2476, 15
      %v2652 = vpop.permute.xlu0 %2651
      %2653 = vrot.lane.b32.xlu0 %v2477, 15
      %v2654 = vpop.permute.xlu0 %2653
      %v2655 = vsel %vm823, %v2652, %v2654
      %v2658 = vsel %vm823, 0.0, %v2652
      %s2659 = scalar_lea.vmem %s9, 16
      %v2660 = vld [vmem:[%s2659] sm:$0xff]
      %v2661 = vmul.f32 %v2658, %v834
      %v2662 = vmul.f32 %v2655, %v838
      %v2664 = vsel %vm668, %v2660, 0
      %2666 = vmatprep.subr.mxu0 0.0
      %2667 = vmatpush1.msra.mxu0 0.0
      %2668 = vmatprep.subr.mxu0 0.0
      %2669 = vmatpush1.msra.mxu0 0.0
      %2670 = vmatprep.subr.mxu0 0.0
      %2671 = vmatpush1.msra.mxu0 0.0
      %2672 = vmatprep.subr.mxu0 0.0
      %2673 = vmatpush1.msra.mxu0 0.0
      %2674 = vmatprep.subr.mxu0 0.0
      %2675 = vmatpush1.msra.mxu0 0.0
      %2676 = vmatprep.subr.mxu0 0.0
      %2677 = vmatpush1.msra.mxu0 0.0
      %2678 = vmatprep.subr.mxu0 0.0
      %2679 = vmatpush1.msra.mxu0 0.0
      %2680 = vmatprep.subr.mxu0 0.0
      %2681 = vmatpush1.msra.mxu0 0.0
      %2682 = vmatprep.subr.mxu0 0.0
      %2683 = vmatpush1.msra.mxu0 0.0
      %2684 = vmatprep.subr.mxu0 0.0
      %2685 = vmatpush1.msra.mxu0 0.0
      %2686 = vmatprep.subr.mxu0 0.0
      %2687 = vmatpush1.msra.mxu0 0.0
      %2688 = vmatprep.subr.mxu0 0.0
      %2689 = vmatpush1.msra.mxu0 0.0
      %2690 = vmatprep.subr.mxu0 0.0
      %2691 = vmatpush1.msra.mxu0 0.0
      %2692 = vmatprep.subr.mxu0 0.0
      %2693 = vmatpush1.msra.mxu0 0.0
      %2694 = vmatprep.subr.mxu0 0.0
      %2695 = vmatpush1.msra.mxu0 0.0
      %2696 = vmatprep.subr.mxu0 %v2662
      %2697 = vmatpush1.msra.mxu0 %v2661
      %2698 = vmatprep.subr.mxu0 0.0
      %2699 = vmatpush2.msra.mxu0 0.0
      %2700 = vmatprep.subr.mxu0 0.0
      %2701 = vmatpush2.msra.mxu0 0.0
      %2702 = vmatprep.subr.mxu0 0.0
      %2703 = vmatpush2.msra.mxu0 0.0
      %2704 = vmatprep.subr.mxu0 0.0
      %2705 = vmatpush2.msra.mxu0 0.0
      %2706 = vmatprep.subr.mxu0 0.0
      %2707 = vmatpush2.msra.mxu0 0.0
      %2708 = vmatprep.subr.mxu0 0.0
      %2709 = vmatpush2.msra.mxu0 0.0
      %2710 = vmatprep.subr.mxu0 0.0
      %2711 = vmatpush2.msra.mxu0 0.0
      %2712 = vmatprep.subr.mxu0 0.0
      %2713 = vmatpush2.msra.mxu0 0.0
      %2714 = vmatprep.subr.mxu0 0.0
      %2715 = vmatpush2.msra.mxu0 0.0
      %2716 = vmatprep.subr.mxu0 0.0
      %2717 = vmatpush2.msra.mxu0 0.0
      %2718 = vmatprep.subr.mxu0 0.0
      %2719 = vmatpush2.msra.mxu0 0.0
      %2720 = vmatprep.subr.mxu0 0.0
      %2721 = vmatpush2.msra.mxu0 0.0
      %2722 = vmatprep.subr.mxu0 0.0
      %2723 = vmatpush2.msra.mxu0 0.0
      %2724 = vmatprep.subr.mxu0 0.0
      %2725 = vmatpush2.msra.mxu0 0.0
      %2726 = vmatprep.subr.mxu0 0.0
      %2727 = vmatpush2.msra.mxu0 0.0
      %2728 = vmatprep.subr.mxu0 0.0
      %2729 = vmatpush2.msra.mxu0 0.0
      %2730 = vmatprep.mubr.f32.mxu0 0.0
      %2731 = vmatmul.mubr.f32.gmra.mxu0 %v2664
      %v2732 = vpop.f32.mrf.mxu0
      %v2733 = vadd.f32 0.0, %v2732
      %v2734 = vpop.f32.mrf.mxu0
      %v2735 = vadd.f32 0.0, %v2734
      %2736 = vdwg.mxu0
      %v2737 = vadd.f32 %v2647, %v2733
      %v2738 = vadd.f32 %v2649, %v2735
      %2739 = vrot.lane.b32.xlu0 %v2476, 1
      %v2740 = vpop.permute.xlu0 %2739
      %2741 = vrot.lane.b32.xlu0 %v2477, 1
      %v2742 = vpop.permute.xlu0 %2741
      %v2743 = vsel %vm925, %v2740, %v2742
      %v2746 = vsel %vm925, 0.0, %v2740
      %s2747 = scalar_lea.vmem %s9, 24
      %v2748 = vld [vmem:[%s2747] sm:$0xff]
      %v2749 = vmul.f32 %v2746, %v936
      %v2750 = vmul.f32 %v2743, %v940
      %v2752 = vsel %vm668, %v2748, 0
      %2754 = vmatprep.subr.mxu0 0.0
      %2755 = vmatpush1.msra.mxu0 0.0
      %2756 = vmatprep.subr.mxu0 0.0
      %2757 = vmatpush1.msra.mxu0 0.0
      %2758 = vmatprep.subr.mxu0 0.0
      %2759 = vmatpush1.msra.mxu0 0.0
      %2760 = vmatprep.subr.mxu0 0.0
      %2761 = vmatpush1.msra.mxu0 0.0
      %2762 = vmatprep.subr.mxu0 0.0
      %2763 = vmatpush1.msra.mxu0 0.0
      %2764 = vmatprep.subr.mxu0 0.0
      %2765 = vmatpush1.msra.mxu0 0.0
      %2766 = vmatprep.subr.mxu0 0.0
      %2767 = vmatpush1.msra.mxu0 0.0
      %2768 = vmatprep.subr.mxu0 0.0
      %2769 = vmatpush1.msra.mxu0 0.0
      %2770 = vmatprep.subr.mxu0 0.0
      %2771 = vmatpush1.msra.mxu0 0.0
      %2772 = vmatprep.subr.mxu0 0.0
      %2773 = vmatpush1.msra.mxu0 0.0
      %2774 = vmatprep.subr.mxu0 0.0
      %2775 = vmatpush1.msra.mxu0 0.0
      %2776 = vmatprep.subr.mxu0 0.0
      %2777 = vmatpush1.msra.mxu0 0.0
      %2778 = vmatprep.subr.mxu0 0.0
      %2779 = vmatpush1.msra.mxu0 0.0
      %2780 = vmatprep.subr.mxu0 0.0
      %2781 = vmatpush1.msra.mxu0 0.0
      %2782 = vmatprep.subr.mxu0 0.0
      %2783 = vmatpush1.msra.mxu0 0.0
      %2784 = vmatprep.subr.mxu0 %v2750
      %2785 = vmatpush1.msra.mxu0 %v2749
      %2786 = vmatprep.subr.mxu0 0.0
      %2787 = vmatpush2.msra.mxu0 0.0
      %2788 = vmatprep.subr.mxu0 0.0
      %2789 = vmatpush2.msra.mxu0 0.0
      %2790 = vmatprep.subr.mxu0 0.0
      %2791 = vmatpush2.msra.mxu0 0.0
      %2792 = vmatprep.subr.mxu0 0.0
      %2793 = vmatpush2.msra.mxu0 0.0
      %2794 = vmatprep.subr.mxu0 0.0
      %2795 = vmatpush2.msra.mxu0 0.0
      %2796 = vmatprep.subr.mxu0 0.0
      %2797 = vmatpush2.msra.mxu0 0.0
      %2798 = vmatprep.subr.mxu0 0.0
      %2799 = vmatpush2.msra.mxu0 0.0
      %2800 = vmatprep.subr.mxu0 0.0
      %2801 = vmatpush2.msra.mxu0 0.0
      %2802 = vmatprep.subr.mxu0 0.0
      %2803 = vmatpush2.msra.mxu0 0.0
      %2804 = vmatprep.subr.mxu0 0.0
      %2805 = vmatpush2.msra.mxu0 0.0
      %2806 = vmatprep.subr.mxu0 0.0
      %2807 = vmatpush2.msra.mxu0 0.0
      %2808 = vmatprep.subr.mxu0 0.0
      %2809 = vmatpush2.msra.mxu0 0.0
      %2810 = vmatprep.subr.mxu0 0.0
      %2811 = vmatpush2.msra.mxu0 0.0
      %2812 = vmatprep.subr.mxu0 0.0
      %2813 = vmatpush2.msra.mxu0 0.0
      %2814 = vmatprep.subr.mxu0 0.0
      %2815 = vmatpush2.msra.mxu0 0.0
      %2816 = vmatprep.subr.mxu0 0.0
      %2817 = vmatpush2.msra.mxu0 0.0
      %2818 = vmatprep.mubr.f32.mxu0 0.0
      %2819 = vmatmul.mubr.f32.gmra.mxu0 %v2752
      %v2820 = vpop.f32.mrf.mxu0
      %v2821 = vadd.f32 0.0, %v2820
      %v2822 = vpop.f32.mrf.mxu0
      %v2823 = vadd.f32 0.0, %v2822
      %2824 = vdwg.mxu0
      %v2825 = vadd.f32 %v2737, %v2821
      %v2826 = vadd.f32 %v2738, %v2823
      %s2827 = scalar_lea.vmem %s9, 32
      %v2828 = vld [vmem:[%s2827] sm:$0xff]
      %v2829 = vmul.f32 %v2476, %v1029
      %v2830 = vmul.f32 %v2477, %v1033
      %v2832 = vsel %vm668, %v2828, 0
      %2834 = vmatprep.subr.mxu0 0.0
      %2835 = vmatpush1.msra.mxu0 0.0
      %2836 = vmatprep.subr.mxu0 0.0
      %2837 = vmatpush1.msra.mxu0 0.0
      %2838 = vmatprep.subr.mxu0 0.0
      %2839 = vmatpush1.msra.mxu0 0.0
      %2840 = vmatprep.subr.mxu0 0.0
      %2841 = vmatpush1.msra.mxu0 0.0
      %2842 = vmatprep.subr.mxu0 0.0
      %2843 = vmatpush1.msra.mxu0 0.0
      %2844 = vmatprep.subr.mxu0 0.0
      %2845 = vmatpush1.msra.mxu0 0.0
      %2846 = vmatprep.subr.mxu0 0.0
      %2847 = vmatpush1.msra.mxu0 0.0
      %2848 = vmatprep.subr.mxu0 0.0
      %2849 = vmatpush1.msra.mxu0 0.0
      %2850 = vmatprep.subr.mxu0 0.0
      %2851 = vmatpush1.msra.mxu0 0.0
      %2852 = vmatprep.subr.mxu0 0.0
      %2853 = vmatpush1.msra.mxu0 0.0
      %2854 = vmatprep.subr.mxu0 0.0
      %2855 = vmatpush1.msra.mxu0 0.0
      %2856 = vmatprep.subr.mxu0 0.0
      %2857 = vmatpush1.msra.mxu0 0.0
      %2858 = vmatprep.subr.mxu0 0.0
      %2859 = vmatpush1.msra.mxu0 0.0
      %2860 = vmatprep.subr.mxu0 0.0
      %2861 = vmatpush1.msra.mxu0 0.0
      %2862 = vmatprep.subr.mxu0 0.0
      %2863 = vmatpush1.msra.mxu0 0.0
      %2864 = vmatprep.subr.mxu0 %v2830
      %2865 = vmatpush1.msra.mxu0 %v2829
      %2866 = vmatprep.subr.mxu0 0.0
      %2867 = vmatpush2.msra.mxu0 0.0
      %2868 = vmatprep.subr.mxu0 0.0
      %2869 = vmatpush2.msra.mxu0 0.0
      %2870 = vmatprep.subr.mxu0 0.0
      %2871 = vmatpush2.msra.mxu0 0.0
      %2872 = vmatprep.subr.mxu0 0.0
      %2873 = vmatpush2.msra.mxu0 0.0
      %2874 = vmatprep.subr.mxu0 0.0
      %2875 = vmatpush2.msra.mxu0 0.0
      %2876 = vmatprep.subr.mxu0 0.0
      %2877 = vmatpush2.msra.mxu0 0.0
      %2878 = vmatprep.subr.mxu0 0.0
      %2879 = vmatpush2.msra.mxu0 0.0
      %2880 = vmatprep.subr.mxu0 0.0
      %2881 = vmatpush2.msra.mxu0 0.0
      %2882 = vmatprep.subr.mxu0 0.0
      %2883 = vmatpush2.msra.mxu0 0.0
      %2884 = vmatprep.subr.mxu0 0.0
      %2885 = vmatpush2.msra.mxu0 0.0
      %2886 = vmatprep.subr.mxu0 0.0
      %2887 = vmatpush2.msra.mxu0 0.0
      %2888 = vmatprep.subr.mxu0 0.0
      %2889 = vmatpush2.msra.mxu0 0.0
      %2890 = vmatprep.subr.mxu0 0.0
      %2891 = vmatpush2.msra.mxu0 0.0
      %2892 = vmatprep.subr.mxu0 0.0
      %2893 = vmatpush2.msra.mxu0 0.0
      %2894 = vmatprep.subr.mxu0 0.0
      %2895 = vmatpush2.msra.mxu0 0.0
      %2896 = vmatprep.subr.mxu0 0.0
      %2897 = vmatpush2.msra.mxu0 0.0
      %2898 = vmatprep.mubr.f32.mxu0 0.0
      %2899 = vmatmul.mubr.f32.gmra.mxu0 %v2832
      %v2900 = vpop.f32.mrf.mxu0
      %v2901 = vadd.f32 0.0, %v2900
      %v2902 = vpop.f32.mrf.mxu0
      %v2903 = vadd.f32 0.0, %v2902
      %2904 = vdwg.mxu0
      %v2905 = vadd.f32 %v2825, %v2901
      %v2906 = vadd.f32 %v2826, %v2903
      %2907 = vrot.lane.b32.xlu0 %v2476, 127
      %v2908 = vpop.permute.xlu0 %2907
      %2909 = vrot.lane.b32.xlu0 %v2477, 127
      %v2910 = vpop.permute.xlu0 %2909
      %v2911 = vsel %vm1120, %v2908, %v2910
      %v2914 = vsel %vm1120, %v2910, 0.0
      %s2915 = scalar_lea.vmem %s9, 40
      %v2916 = vld [vmem:[%s2915] sm:$0xff]
      %v2917 = vmul.f32 %v2911, %v1131
      %v2918 = vmul.f32 %v2914, %v1135
      %v2920 = vsel %vm668, %v2916, 0
      %2922 = vmatprep.subr.mxu0 0.0
      %2923 = vmatpush1.msra.mxu0 0.0
      %2924 = vmatprep.subr.mxu0 0.0
      %2925 = vmatpush1.msra.mxu0 0.0
      %2926 = vmatprep.subr.mxu0 0.0
      %2927 = vmatpush1.msra.mxu0 0.0
      %2928 = vmatprep.subr.mxu0 0.0
      %2929 = vmatpush1.msra.mxu0 0.0
      %2930 = vmatprep.subr.mxu0 0.0
      %2931 = vmatpush1.msra.mxu0 0.0
      %2932 = vmatprep.subr.mxu0 0.0
      %2933 = vmatpush1.msra.mxu0 0.0
      %2934 = vmatprep.subr.mxu0 0.0
      %2935 = vmatpush1.msra.mxu0 0.0
      %2936 = vmatprep.subr.mxu0 0.0
      %2937 = vmatpush1.msra.mxu0 0.0
      %2938 = vmatprep.subr.mxu0 0.0
      %2939 = vmatpush1.msra.mxu0 0.0
      %2940 = vmatprep.subr.mxu0 0.0
      %2941 = vmatpush1.msra.mxu0 0.0
      %2942 = vmatprep.subr.mxu0 0.0
      %2943 = vmatpush1.msra.mxu0 0.0
      %2944 = vmatprep.subr.mxu0 0.0
      %2945 = vmatpush1.msra.mxu0 0.0
      %2946 = vmatprep.subr.mxu0 0.0
      %2947 = vmatpush1.msra.mxu0 0.0
      %2948 = vmatprep.subr.mxu0 0.0
      %2949 = vmatpush1.msra.mxu0 0.0
      %2950 = vmatprep.subr.mxu0 0.0
      %2951 = vmatpush1.msra.mxu0 0.0
      %2952 = vmatprep.subr.mxu0 %v2918
      %2953 = vmatpush1.msra.mxu0 %v2917
      %2954 = vmatprep.subr.mxu0 0.0
      %2955 = vmatpush2.msra.mxu0 0.0
      %2956 = vmatprep.subr.mxu0 0.0
      %2957 = vmatpush2.msra.mxu0 0.0
      %2958 = vmatprep.subr.mxu0 0.0
      %2959 = vmatpush2.msra.mxu0 0.0
      %2960 = vmatprep.subr.mxu0 0.0
      %2961 = vmatpush2.msra.mxu0 0.0
      %2962 = vmatprep.subr.mxu0 0.0
      %2963 = vmatpush2.msra.mxu0 0.0
      %2964 = vmatprep.subr.mxu0 0.0
      %2965 = vmatpush2.msra.mxu0 0.0
      %2966 = vmatprep.subr.mxu0 0.0
      %2967 = vmatpush2.msra.mxu0 0.0
      %2968 = vmatprep.subr.mxu0 0.0
      %2969 = vmatpush2.msra.mxu0 0.0
      %2970 = vmatprep.subr.mxu0 0.0
      %2971 = vmatpush2.msra.mxu0 0.0
      %2972 = vmatprep.subr.mxu0 0.0
      %2973 = vmatpush2.msra.mxu0 0.0
      %2974 = vmatprep.subr.mxu0 0.0
      %2975 = vmatpush2.msra.mxu0 0.0
      %2976 = vmatprep.subr.mxu0 0.0
      %2977 = vmatpush2.msra.mxu0 0.0
      %2978 = vmatprep.subr.mxu0 0.0
      %2979 = vmatpush2.msra.mxu0 0.0
      %2980 = vmatprep.subr.mxu0 0.0
      %2981 = vmatpush2.msra.mxu0 0.0
      %2982 = vmatprep.subr.mxu0 0.0
      %2983 = vmatpush2.msra.mxu0 0.0
      %2984 = vmatprep.subr.mxu0 0.0
      %2985 = vmatpush2.msra.mxu0 0.0
      %2986 = vmatprep.mubr.f32.mxu0 0.0
      %2987 = vmatmul.mubr.f32.gmra.mxu0 %v2920
      %v2988 = vpop.f32.mrf.mxu0
      %v2989 = vadd.f32 0.0, %v2988
      %v2990 = vpop.f32.mrf.mxu0
      %v2991 = vadd.f32 0.0, %v2990
      %2992 = vdwg.mxu0
      %v2993 = vadd.f32 %v2905, %v2989
      %v2994 = vadd.f32 %v2906, %v2991
      %2995 = vrot.lane.b32.xlu0 %v2476, 113
      %v2996 = vpop.permute.xlu0 %2995
      %2997 = vrot.lane.b32.xlu0 %v2477, 113
      %v2998 = vpop.permute.xlu0 %2997
      %v2999 = vsel %vm1222, %v2996, %v2998
      %v3002 = vsel %vm1222, %v2998, 0.0
      %s3003 = scalar_lea.vmem %s9, 48
      %v3004 = vld [vmem:[%s3003] sm:$0xff]
      %v3005 = vmul.f32 %v2999, %v1233
      %v3006 = vmul.f32 %v3002, %v1237
      %v3008 = vsel %vm668, %v3004, 0
      %3010 = vmatprep.subr.mxu0 0.0
      %3011 = vmatpush1.msra.mxu0 0.0
      %3012 = vmatprep.subr.mxu0 0.0
      %3013 = vmatpush1.msra.mxu0 0.0
      %3014 = vmatprep.subr.mxu0 0.0
      %3015 = vmatpush1.msra.mxu0 0.0
      %3016 = vmatprep.subr.mxu0 0.0
      %3017 = vmatpush1.msra.mxu0 0.0
      %3018 = vmatprep.subr.mxu0 0.0
      %3019 = vmatpush1.msra.mxu0 0.0
      %3020 = vmatprep.subr.mxu0 0.0
      %3021 = vmatpush1.msra.mxu0 0.0
      %3022 = vmatprep.subr.mxu0 0.0
      %3023 = vmatpush1.msra.mxu0 0.0
      %3024 = vmatprep.subr.mxu0 0.0
      %3025 = vmatpush1.msra.mxu0 0.0
      %3026 = vmatprep.subr.mxu0 0.0
      %3027 = vmatpush1.msra.mxu0 0.0
      %3028 = vmatprep.subr.mxu0 0.0
      %3029 = vmatpush1.msra.mxu0 0.0
      %3030 = vmatprep.subr.mxu0 0.0
      %3031 = vmatpush1.msra.mxu0 0.0
      %3032 = vmatprep.subr.mxu0 0.0
      %3033 = vmatpush1.msra.mxu0 0.0
      %3034 = vmatprep.subr.mxu0 0.0
      %3035 = vmatpush1.msra.mxu0 0.0
      %3036 = vmatprep.subr.mxu0 0.0
      %3037 = vmatpush1.msra.mxu0 0.0
      %3038 = vmatprep.subr.mxu0 0.0
      %3039 = vmatpush1.msra.mxu0 0.0
      %3040 = vmatprep.subr.mxu0 %v3006
      %3041 = vmatpush1.msra.mxu0 %v3005
      %3042 = vmatprep.subr.mxu0 0.0
      %3043 = vmatpush2.msra.mxu0 0.0
      %3044 = vmatprep.subr.mxu0 0.0
      %3045 = vmatpush2.msra.mxu0 0.0
      %3046 = vmatprep.subr.mxu0 0.0
      %3047 = vmatpush2.msra.mxu0 0.0
      %3048 = vmatprep.subr.mxu0 0.0
      %3049 = vmatpush2.msra.mxu0 0.0
      %3050 = vmatprep.subr.mxu0 0.0
      %3051 = vmatpush2.msra.mxu0 0.0
      %3052 = vmatprep.subr.mxu0 0.0
      %3053 = vmatpush2.msra.mxu0 0.0
      %3054 = vmatprep.subr.mxu0 0.0
      %3055 = vmatpush2.msra.mxu0 0.0
      %3056 = vmatprep.subr.mxu0 0.0
      %3057 = vmatpush2.msra.mxu0 0.0
      %3058 = vmatprep.subr.mxu0 0.0
      %3059 = vmatpush2.msra.mxu0 0.0
      %3060 = vmatprep.subr.mxu0 0.0
      %3061 = vmatpush2.msra.mxu0 0.0
      %3062 = vmatprep.subr.mxu0 0.0
      %3063 = vmatpush2.msra.mxu0 0.0
      %3064 = vmatprep.subr.mxu0 0.0
      %3065 = vmatpush2.msra.mxu0 0.0
      %3066 = vmatprep.subr.mxu0 0.0
      %3067 = vmatpush2.msra.mxu0 0.0
      %3068 = vmatprep.subr.mxu0 0.0
      %3069 = vmatpush2.msra.mxu0 0.0
      %3070 = vmatprep.subr.mxu0 0.0
      %3071 = vmatpush2.msra.mxu0 0.0
      %3072 = vmatprep.subr.mxu0 0.0
      %3073 = vmatpush2.msra.mxu0 0.0
      %3074 = vmatprep.mubr.f32.mxu0 0.0
      %3075 = vmatmul.mubr.f32.gmra.mxu0 %v3008
      %v3076 = vpop.f32.mrf.mxu0
      %v3077 = vadd.f32 0.0, %v3076
      %v3078 = vpop.f32.mrf.mxu0
      %v3079 = vadd.f32 0.0, %v3078
      %3080 = vdwg.mxu0
      %v3081 = vadd.f32 %v2993, %v3077
      %v3082 = vadd.f32 %v2994, %v3079
      %3083 = vrot.lane.b32.xlu0 %v2476, 112
      %v3084 = vpop.permute.xlu0 %3083
      %3085 = vrot.lane.b32.xlu0 %v2477, 112
      %v3086 = vpop.permute.xlu0 %3085
      %v3087 = vsel %vm1324, %v3084, %v3086
      %v3090 = vsel %vm1324, %v3086, 0.0
      %s3091 = scalar_lea.vmem %s9, 56
      %v3092 = vld [vmem:[%s3091] sm:$0xff]
      %v3093 = vmul.f32 %v3087, %v1335
      %v3094 = vmul.f32 %v3090, %v1339
      %v3096 = vsel %vm668, %v3092, 0
      %3098 = vmatprep.subr.mxu0 0.0
      %3099 = vmatpush1.msra.mxu0 0.0
      %3100 = vmatprep.subr.mxu0 0.0
      %3101 = vmatpush1.msra.mxu0 0.0
      %3102 = vmatprep.subr.mxu0 0.0
      %3103 = vmatpush1.msra.mxu0 0.0
      %3104 = vmatprep.subr.mxu0 0.0
      %3105 = vmatpush1.msra.mxu0 0.0
      %3106 = vmatprep.subr.mxu0 0.0
      %3107 = vmatpush1.msra.mxu0 0.0
      %3108 = vmatprep.subr.mxu0 0.0
      %3109 = vmatpush1.msra.mxu0 0.0
      %3110 = vmatprep.subr.mxu0 0.0
      %3111 = vmatpush1.msra.mxu0 0.0
      %3112 = vmatprep.subr.mxu0 0.0
      %3113 = vmatpush1.msra.mxu0 0.0
      %3114 = vmatprep.subr.mxu0 0.0
      %3115 = vmatpush1.msra.mxu0 0.0
      %3116 = vmatprep.subr.mxu0 0.0
      %3117 = vmatpush1.msra.mxu0 0.0
      %3118 = vmatprep.subr.mxu0 0.0
      %3119 = vmatpush1.msra.mxu0 0.0
      %3120 = vmatprep.subr.mxu0 0.0
      %3121 = vmatpush1.msra.mxu0 0.0
      %3122 = vmatprep.subr.mxu0 0.0
      %3123 = vmatpush1.msra.mxu0 0.0
      %3124 = vmatprep.subr.mxu0 0.0
      %3125 = vmatpush1.msra.mxu0 0.0
      %3126 = vmatprep.subr.mxu0 0.0
      %3127 = vmatpush1.msra.mxu0 0.0
      %3128 = vmatprep.subr.mxu0 %v3094
      %3129 = vmatpush1.msra.mxu0 %v3093
      %3130 = vmatprep.subr.mxu0 0.0
      %3131 = vmatpush2.msra.mxu0 0.0
      %3132 = vmatprep.subr.mxu0 0.0
      %3133 = vmatpush2.msra.mxu0 0.0
      %3134 = vmatprep.subr.mxu0 0.0
      %3135 = vmatpush2.msra.mxu0 0.0
      %3136 = vmatprep.subr.mxu0 0.0
      %3137 = vmatpush2.msra.mxu0 0.0
      %3138 = vmatprep.subr.mxu0 0.0
      %3139 = vmatpush2.msra.mxu0 0.0
      %3140 = vmatprep.subr.mxu0 0.0
      %3141 = vmatpush2.msra.mxu0 0.0
      %3142 = vmatprep.subr.mxu0 0.0
      %3143 = vmatpush2.msra.mxu0 0.0
      %3144 = vmatprep.subr.mxu0 0.0
      %3145 = vmatpush2.msra.mxu0 0.0
      %3146 = vmatprep.subr.mxu0 0.0
      %3147 = vmatpush2.msra.mxu0 0.0
      %3148 = vmatprep.subr.mxu0 0.0
      %3149 = vmatpush2.msra.mxu0 0.0
      %3150 = vmatprep.subr.mxu0 0.0
      %3151 = vmatpush2.msra.mxu0 0.0
      %3152 = vmatprep.subr.mxu0 0.0
      %3153 = vmatpush2.msra.mxu0 0.0
      %3154 = vmatprep.subr.mxu0 0.0
      %3155 = vmatpush2.msra.mxu0 0.0
      %3156 = vmatprep.subr.mxu0 0.0
      %3157 = vmatpush2.msra.mxu0 0.0
      %3158 = vmatprep.subr.mxu0 0.0
      %3159 = vmatpush2.msra.mxu0 0.0
      %3160 = vmatprep.subr.mxu0 0.0
      %3161 = vmatpush2.msra.mxu0 0.0
      %3162 = vmatprep.mubr.f32.mxu0 0.0
      %3163 = vmatmul.mubr.f32.gmra.mxu0 %v3096
      %v3164 = vpop.f32.mrf.mxu0
      %v3165 = vadd.f32 0.0, %v3164
      %v3166 = vpop.f32.mrf.mxu0
      %v3167 = vadd.f32 0.0, %v3166
      %3168 = vdwg.mxu0
      %v3169 = vadd.f32 %v3081, %v3165
      %v3170 = vadd.f32 %v3082, %v3167
      %3171 = vrot.lane.b32.xlu0 %v2476, 111
      %v3172 = vpop.permute.xlu0 %3171
      %3173 = vrot.lane.b32.xlu0 %v2477, 111
      %v3174 = vpop.permute.xlu0 %3173
      %v3175 = vsel %vm1426, %v3172, %v3174
      %v3178 = vsel %vm1426, %v3174, 0.0
      %s3179 = scalar_lea.vmem %s9, 64
      %v3180 = vld [vmem:[%s3179] sm:$0xff]
      %v3181 = vmul.f32 %v3175, %v1437
      %v3182 = vmul.f32 %v3178, %v1441
      %v3184 = vsel %vm668, %v3180, 0
      %3186 = vmatprep.subr.mxu0 0.0
      %3187 = vmatpush1.msra.mxu0 0.0
      %3188 = vmatprep.subr.mxu0 0.0
      %3189 = vmatpush1.msra.mxu0 0.0
      %3190 = vmatprep.subr.mxu0 0.0
      %3191 = vmatpush1.msra.mxu0 0.0
      %3192 = vmatprep.subr.mxu0 0.0
      %3193 = vmatpush1.msra.mxu0 0.0
      %3194 = vmatprep.subr.mxu0 0.0
      %3195 = vmatpush1.msra.mxu0 0.0
      %3196 = vmatprep.subr.mxu0 0.0
      %3197 = vmatpush1.msra.mxu0 0.0
      %3198 = vmatprep.subr.mxu0 0.0
      %3199 = vmatpush1.msra.mxu0 0.0
      %3200 = vmatprep.subr.mxu0 0.0
      %3201 = vmatpush1.msra.mxu0 0.0
      %3202 = vmatprep.subr.mxu0 0.0
      %3203 = vmatpush1.msra.mxu0 0.0
      %3204 = vmatprep.subr.mxu0 0.0
      %3205 = vmatpush1.msra.mxu0 0.0
      %3206 = vmatprep.subr.mxu0 0.0
      %3207 = vmatpush1.msra.mxu0 0.0
      %3208 = vmatprep.subr.mxu0 0.0
      %3209 = vmatpush1.msra.mxu0 0.0
      %3210 = vmatprep.subr.mxu0 0.0
      %3211 = vmatpush1.msra.mxu0 0.0
      %3212 = vmatprep.subr.mxu0 0.0
      %3213 = vmatpush1.msra.mxu0 0.0
      %3214 = vmatprep.subr.mxu0 0.0
      %3215 = vmatpush1.msra.mxu0 0.0
      %3216 = vmatprep.subr.mxu0 %v3182
      %3217 = vmatpush1.msra.mxu0 %v3181
      %3218 = vmatprep.subr.mxu0 0.0
      %3219 = vmatpush2.msra.mxu0 0.0
      %3220 = vmatprep.subr.mxu0 0.0
      %3221 = vmatpush2.msra.mxu0 0.0
      %3222 = vmatprep.subr.mxu0 0.0
      %3223 = vmatpush2.msra.mxu0 0.0
      %3224 = vmatprep.subr.mxu0 0.0
      %3225 = vmatpush2.msra.mxu0 0.0
      %3226 = vmatprep.subr.mxu0 0.0
      %3227 = vmatpush2.msra.mxu0 0.0
      %3228 = vmatprep.subr.mxu0 0.0
      %3229 = vmatpush2.msra.mxu0 0.0
      %3230 = vmatprep.subr.mxu0 0.0
      %3231 = vmatpush2.msra.mxu0 0.0
      %3232 = vmatprep.subr.mxu0 0.0
      %3233 = vmatpush2.msra.mxu0 0.0
      %3234 = vmatprep.subr.mxu0 0.0
      %3235 = vmatpush2.msra.mxu0 0.0
      %3236 = vmatprep.subr.mxu0 0.0
      %3237 = vmatpush2.msra.mxu0 0.0
      %3238 = vmatprep.subr.mxu0 0.0
      %3239 = vmatpush2.msra.mxu0 0.0
      %3240 = vmatprep.subr.mxu0 0.0
      %3241 = vmatpush2.msra.mxu0 0.0
      %3242 = vmatprep.subr.mxu0 0.0
      %3243 = vmatpush2.msra.mxu0 0.0
      %3244 = vmatprep.subr.mxu0 0.0
      %3245 = vmatpush2.msra.mxu0 0.0
      %3246 = vmatprep.subr.mxu0 0.0
      %3247 = vmatpush2.msra.mxu0 0.0
      %3248 = vmatprep.subr.mxu0 0.0
      %3249 = vmatpush2.msra.mxu0 0.0
      %3250 = vmatprep.mubr.f32.mxu0 0.0
      %3251 = vmatmul.mubr.f32.gmra.mxu0 %v3184
      %v3252 = vpop.f32.mrf.mxu0
      %v3253 = vadd.f32 0.0, %v3252
      %v3254 = vpop.f32.mrf.mxu0
      %v3255 = vadd.f32 0.0, %v3254
      %3256 = vdwg.mxu0
      %v3257 = vadd.f32 %v3169, %v3253
      %v3258 = vadd.f32 %v3170, %v3255
      %v3259 = vld [vmem:[%s10] sm:$0xff]
      %3261 = vset.pattern.permute.xlu0 0
      %3262 = vperm.xlu0 %3261, %v3259
      %v3263 = vpop.permute.xlu0 %3262
      %3265 = vmatprep.subr.mxu0 0.0
      %3266 = vmatpush1.msra.mxu0 %v514
      %3267 = vmatprep.subr.mxu0 0.0
      %3268 = vmatpush1.msra.mxu0 %v513
      %3269 = vmatprep.subr.mxu0 0.0
      %3270 = vmatpush1.msra.mxu0 %v512
      %3271 = vmatprep.subr.mxu0 0.0
      %3272 = vmatpush1.msra.mxu0 %v511
      %3273 = vmatprep.subr.mxu0 0.0
      %3274 = vmatpush1.msra.mxu0 %v510
      %3275 = vmatprep.subr.mxu0 0.0
      %3276 = vmatpush1.msra.mxu0 %v509
      %3277 = vmatprep.subr.mxu0 0.0
      %3278 = vmatpush1.msra.mxu0 %v508
      %3279 = vmatprep.subr.mxu0 0.0
      %3280 = vmatpush1.msra.mxu0 %v507
      %3281 = vmatprep.subr.mxu0 0.0
      %3282 = vmatpush1.msra.mxu0 %v506
      %3283 = vmatprep.subr.mxu0 0.0
      %3284 = vmatpush1.msra.mxu0 %v505
      %3285 = vmatprep.subr.mxu0 0.0
      %3286 = vmatpush1.msra.mxu0 %v504
      %3287 = vmatprep.subr.mxu0 0.0
      %3288 = vmatpush1.msra.mxu0 %v503
      %3289 = vmatprep.subr.mxu0 0.0
      %3290 = vmatpush1.msra.mxu0 %v502
      %3291 = vmatprep.subr.mxu0 0.0
      %3292 = vmatpush1.msra.mxu0 %v501
      %3293 = vmatprep.subr.mxu0 0.0
      %3294 = vmatpush1.msra.mxu0 %v500
      %3295 = vmatprep.subr.mxu0 0.0
      %3296 = vmatpush1.msra.mxu0 %v499
      %3297 = vmatprep.subr.mxu0 0.0
      %3298 = vmatpush2.msra.mxu0 %v530
      %3299 = vmatprep.subr.mxu0 0.0
      %3300 = vmatpush2.msra.mxu0 %v529
      %3301 = vmatprep.subr.mxu0 0.0
      %3302 = vmatpush2.msra.mxu0 %v528
      %3303 = vmatprep.subr.mxu0 0.0
      %3304 = vmatpush2.msra.mxu0 %v527
      %3305 = vmatprep.subr.mxu0 0.0
      %3306 = vmatpush2.msra.mxu0 %v526
      %3307 = vmatprep.subr.mxu0 0.0
      %3308 = vmatpush2.msra.mxu0 %v525
      %3309 = vmatprep.subr.mxu0 0.0
      %3310 = vmatpush2.msra.mxu0 %v524
      %3311 = vmatprep.subr.mxu0 0.0
      %3312 = vmatpush2.msra.mxu0 %v523
      %3313 = vmatprep.subr.mxu0 0.0
      %3314 = vmatpush2.msra.mxu0 %v522
      %3315 = vmatprep.subr.mxu0 0.0
      %3316 = vmatpush2.msra.mxu0 %v521
      %3317 = vmatprep.subr.mxu0 0.0
      %3318 = vmatpush2.msra.mxu0 %v520
      %3319 = vmatprep.subr.mxu0 0.0
      %3320 = vmatpush2.msra.mxu0 %v519
      %3321 = vmatprep.subr.mxu0 0.0
      %3322 = vmatpush2.msra.mxu0 %v518
      %3323 = vmatprep.subr.mxu0 0.0
      %3324 = vmatpush2.msra.mxu0 %v517
      %3325 = vmatprep.subr.mxu0 0.0
      %3326 = vmatpush2.msra.mxu0 %v516
      %3327 = vmatprep.subr.mxu0 0.0
      %3328 = vmatpush2.msra.mxu0 %v515
      %3329 = vmatprep.mubr.f32.mxu0 %v3258
      %3330 = vmatmul.mubr.f32.gmra.mxu0 %v3257
      %v3331 = vpop.f32.mrf.mxu0
      %v3332 = vadd.f32 %v3263, %v3331
      %v3333 = vpop.f32.mrf.mxu0
      %3334 = vdwg.mxu0
      %v3335 = vmax.f32 %v3332, 0.0
      %v3336 = vmin.f32 %v3335, 6.0
      %3341 = vrot.lane.b32.xlu0 %v495, 17
      %v3342 = vpop.permute.xlu0 %3341
      %3343 = vrot.lane.b32.xlu0 %v496, 17
      %v3344 = vpop.permute.xlu0 %3343
      %3345 = vrot.lane.b32.xlu0 %v497, 17
      %v3346 = vpop.permute.xlu0 %3345
      %3347 = vrot.lane.b32.xlu0 %v498, 17
      %v3348 = vpop.permute.xlu0 %3347
      %v3349 = vsel %vm624, %v3342, %v3344
      %v3350 = vsel %vm624, %v3346, %v3348
      %v3355 = vsel %vm624, 0.0, %v3342
      %v3356 = vsel %vm624, 0.0, %v3346
      %vm3357 = vcmp.gt.f32.partialorder %v617, 0.0
      %v3358 = vsel %vm3357, 1, 0
      %v3359 = vlaneseq
      %v3360 = vshrl.u32 %v3359, 7
      %v3361 = vsub.s32 0, %v3360
      %v3362 = vrot.slane %v3358, %v3361
      %v3363 = vlaneseq
      %v3364 = vshrl.u32 %v3363, 7
      %v3365 = vsub.s32 1, %v3364
      %v3366 = vrot.slane %v3358, %v3365
      %vm3367 = vcmp.eq.s32.totalorder %v3362, 1
      %vm3368 = vcmp.eq.s32.totalorder %v3366, 1
      %v3369 = vsel %vm3367, %v3355, -1e+30
      %v3370 = vsel %vm3368, %v3349, -1e+30
      %v3371 = vsel %vm3367, %v3356, -1e+30
      %v3372 = vsel %vm3368, %v3350, -1e+30
      %v3373 = vmax.f32 %v3369, -1e+30
      %v3374 = vmax.f32 %v3370, -1e+30
      %v3375 = vmax.f32 %v3371, -1e+30
      %v3376 = vmax.f32 %v3372, -1e+30
      %3377 = vrot.lane.b32.xlu0 %v495, 16
      %v3378 = vpop.permute.xlu0 %3377
      %3379 = vrot.lane.b32.xlu0 %v496, 16
      %v3380 = vpop.permute.xlu0 %3379
      %3381 = vrot.lane.b32.xlu0 %v497, 16
      %v3382 = vpop.permute.xlu0 %3381
      %3383 = vrot.lane.b32.xlu0 %v498, 16
      %v3384 = vpop.permute.xlu0 %3383
      %v3385 = vsel %vm538, %v3378, %v3380
      %v3386 = vsel %vm538, %v3382, %v3384
      %v3391 = vsel %vm538, 0.0, %v3378
      %v3392 = vsel %vm538, 0.0, %v3382
      %vm3393 = vcmp.gt.f32.partialorder %v644, 0.0
      %v3394 = vsel %vm3393, 1, 0
      %v3395 = vlaneseq
      %v3396 = vshrl.u32 %v3395, 7
      %v3397 = vsub.s32 0, %v3396
      %v3398 = vrot.slane %v3394, %v3397
      %v3399 = vlaneseq
      %v3400 = vshrl.u32 %v3399, 7
      %v3401 = vsub.s32 1, %v3400
      %v3402 = vrot.slane %v3394, %v3401
      %vm3403 = vcmp.eq.s32.totalorder %v3398, 1
      %vm3404 = vcmp.eq.s32.totalorder %v3402, 1
      %v3405 = vsel %vm3403, %v3391, -1e+30
      %v3406 = vsel %vm3404, %v3385, -1e+30
      %v3407 = vsel %vm3403, %v3392, -1e+30
      %v3408 = vsel %vm3404, %v3386, -1e+30
      %v3409 = vmax.f32 %v3373, %v3405
      %v3410 = vmax.f32 %v3374, %v3406
      %v3411 = vmax.f32 %v3375, %v3407
      %v3412 = vmax.f32 %v3376, %v3408
      %3413 = vrot.lane.b32.xlu0 %v495, 15
      %v3414 = vpop.permute.xlu0 %3413
      %3415 = vrot.lane.b32.xlu0 %v496, 15
      %v3416 = vpop.permute.xlu0 %3415
      %3417 = vrot.lane.b32.xlu0 %v497, 15
      %v3418 = vpop.permute.xlu0 %3417
      %3419 = vrot.lane.b32.xlu0 %v498, 15
      %v3420 = vpop.permute.xlu0 %3419
      %v3421 = vsel %vm823, %v3414, %v3416
      %v3422 = vsel %vm823, %v3418, %v3420
      %v3427 = vsel %vm823, 0.0, %v3414
      %v3428 = vsel %vm823, 0.0, %v3418
      %vm3429 = vcmp.gt.f32.partialorder %v818, 0.0
      %v3430 = vsel %vm3429, 1, 0
      %v3431 = vlaneseq
      %v3432 = vshrl.u32 %v3431, 7
      %v3433 = vsub.s32 0, %v3432
      %v3434 = vrot.slane %v3430, %v3433
      %v3435 = vlaneseq
      %v3436 = vshrl.u32 %v3435, 7
      %v3437 = vsub.s32 1, %v3436
      %v3438 = vrot.slane %v3430, %v3437
      %vm3439 = vcmp.eq.s32.totalorder %v3434, 1
      %vm3440 = vcmp.eq.s32.totalorder %v3438, 1
      %v3441 = vsel %vm3439, %v3427, -1e+30
      %v3442 = vsel %vm3440, %v3421, -1e+30
      %v3443 = vsel %vm3439, %v3428, -1e+30
      %v3444 = vsel %vm3440, %v3422, -1e+30
      %v3445 = vmax.f32 %v3409, %v3441
      %v3446 = vmax.f32 %v3410, %v3442
      %v3447 = vmax.f32 %v3411, %v3443
      %v3448 = vmax.f32 %v3412, %v3444
      %3449 = vrot.lane.b32.xlu0 %v495, 1
      %v3450 = vpop.permute.xlu0 %3449
      %3451 = vrot.lane.b32.xlu0 %v496, 1
      %v3452 = vpop.permute.xlu0 %3451
      %3453 = vrot.lane.b32.xlu0 %v497, 1
      %v3454 = vpop.permute.xlu0 %3453
      %3455 = vrot.lane.b32.xlu0 %v498, 1
      %v3456 = vpop.permute.xlu0 %3455
      %v3457 = vsel %vm925, %v3450, %v3452
      %v3458 = vsel %vm925, %v3454, %v3456
      %v3463 = vsel %vm925, 0.0, %v3450
      %v3464 = vsel %vm925, 0.0, %v3454
      %vm3465 = vcmp.gt.f32.partialorder %v920, 0.0
      %v3466 = vsel %vm3465, 1, 0
      %v3467 = vlaneseq
      %v3468 = vshrl.u32 %v3467, 7
      %v3469 = vsub.s32 0, %v3468
      %v3470 = vrot.slane %v3466, %v3469
      %v3471 = vlaneseq
      %v3472 = vshrl.u32 %v3471, 7
      %v3473 = vsub.s32 1, %v3472
      %v3474 = vrot.slane %v3466, %v3473
      %vm3475 = vcmp.eq.s32.totalorder %v3470, 1
      %vm3476 = vcmp.eq.s32.totalorder %v3474, 1
      %v3477 = vsel %vm3475, %v3463, -1e+30
      %v3478 = vsel %vm3476, %v3457, -1e+30
      %v3479 = vsel %vm3475, %v3464, -1e+30
      %v3480 = vsel %vm3476, %v3458, -1e+30
      %v3481 = vmax.f32 %v3445, %v3477
      %v3482 = vmax.f32 %v3446, %v3478
      %v3483 = vmax.f32 %v3447, %v3479
      %v3484 = vmax.f32 %v3448, %v3480
      %vm3485 = vcmp.gt.f32.partialorder %v1022, 0.0
      %v3486 = vsel %vm3485, 1, 0
      %v3487 = vlaneseq
      %v3488 = vshrl.u32 %v3487, 7
      %v3489 = vsub.s32 0, %v3488
      %v3490 = vrot.slane %v3486, %v3489
      %v3491 = vlaneseq
      %v3492 = vshrl.u32 %v3491, 7
      %v3493 = vsub.s32 1, %v3492
      %v3494 = vrot.slane %v3486, %v3493
      %vm3495 = vcmp.eq.s32.totalorder %v3490, 1
      %vm3496 = vcmp.eq.s32.totalorder %v3494, 1
      %v3497 = vsel %vm3495, %v495, -1e+30
      %v3498 = vsel %vm3496, %v496, -1e+30
      %v3499 = vsel %vm3495, %v497, -1e+30
      %v3500 = vsel %vm3496, %v498, -1e+30
      %v3501 = vmax.f32 %v3481, %v3497
      %v3502 = vmax.f32 %v3482, %v3498
      %v3503 = vmax.f32 %v3483, %v3499
      %v3504 = vmax.f32 %v3484, %v3500
      %3505 = vrot.lane.b32.xlu0 %v495, 127
      %v3506 = vpop.permute.xlu0 %3505
      %3507 = vrot.lane.b32.xlu0 %v496, 127
      %v3508 = vpop.permute.xlu0 %3507
      %3509 = vrot.lane.b32.xlu0 %v497, 127
      %v3510 = vpop.permute.xlu0 %3509
      %3511 = vrot.lane.b32.xlu0 %v498, 127
      %v3512 = vpop.permute.xlu0 %3511
      %v3513 = vsel %vm1120, %v3506, %v3508
      %v3514 = vsel %vm1120, %v3510, %v3512
      %v3519 = vsel %vm1120, %v3508, 0.0
      %v3520 = vsel %vm1120, %v3512, 0.0
      %vm3521 = vcmp.gt.f32.partialorder %v1115, 0.0
      %v3522 = vsel %vm3521, 1, 0
      %v3523 = vlaneseq
      %v3524 = vshrl.u32 %v3523, 7
      %v3525 = vsub.s32 0, %v3524
      %v3526 = vrot.slane %v3522, %v3525
      %v3527 = vlaneseq
      %v3528 = vshrl.u32 %v3527, 7
      %v3529 = vsub.s32 1, %v3528
      %v3530 = vrot.slane %v3522, %v3529
      %vm3531 = vcmp.eq.s32.totalorder %v3526, 1
      %vm3532 = vcmp.eq.s32.totalorder %v3530, 1
      %v3533 = vsel %vm3531, %v3513, -1e+30
      %v3534 = vsel %vm3532, %v3519, -1e+30
      %v3535 = vsel %vm3531, %v3514, -1e+30
      %v3536 = vsel %vm3532, %v3520, -1e+30
      %v3537 = vmax.f32 %v3501, %v3533
      %v3538 = vmax.f32 %v3502, %v3534
      %v3539 = vmax.f32 %v3503, %v3535
      %v3540 = vmax.f32 %v3504, %v3536
      %3541 = vrot.lane.b32.xlu0 %v495, 113
      %v3542 = vpop.permute.xlu0 %3541
      %3543 = vrot.lane.b32.xlu0 %v496, 113
      %v3544 = vpop.permute.xlu0 %3543
      %3545 = vrot.lane.b32.xlu0 %v497, 113
      %v3546 = vpop.permute.xlu0 %3545
      %3547 = vrot.lane.b32.xlu0 %v498, 113
      %v3548 = vpop.permute.xlu0 %3547
      %v3549 = vsel %vm1222, %v3542, %v3544
      %v3550 = vsel %vm1222, %v3546, %v3548
      %v3555 = vsel %vm1222, %v3544, 0.0
      %v3556 = vsel %vm1222, %v3548, 0.0
      %vm3557 = vcmp.gt.f32.partialorder %v1217, 0.0
      %v3558 = vsel %vm3557, 1, 0
      %v3559 = vlaneseq
      %v3560 = vshrl.u32 %v3559, 7
      %v3561 = vsub.s32 0, %v3560
      %v3562 = vrot.slane %v3558, %v3561
      %v3563 = vlaneseq
      %v3564 = vshrl.u32 %v3563, 7
      %v3565 = vsub.s32 1, %v3564
      %v3566 = vrot.slane %v3558, %v3565
      %vm3567 = vcmp.eq.s32.totalorder %v3562, 1
      %vm3568 = vcmp.eq.s32.totalorder %v3566, 1
      %v3569 = vsel %vm3567, %v3549, -1e+30
      %v3570 = vsel %vm3568, %v3555, -1e+30
      %v3571 = vsel %vm3567, %v3550, -1e+30
      %v3572 = vsel %vm3568, %v3556, -1e+30
      %v3573 = vmax.f32 %v3537, %v3569
      %v3574 = vmax.f32 %v3538, %v3570
      %v3575 = vmax.f32 %v3539, %v3571
      %v3576 = vmax.f32 %v3540, %v3572
      %3577 = vrot.lane.b32.xlu0 %v495, 112
      %v3578 = vpop.permute.xlu0 %3577
      %3579 = vrot.lane.b32.xlu0 %v496, 112
      %v3580 = vpop.permute.xlu0 %3579
      %3581 = vrot.lane.b32.xlu0 %v497, 112
      %v3582 = vpop.permute.xlu0 %3581
      %3583 = vrot.lane.b32.xlu0 %v498, 112
      %v3584 = vpop.permute.xlu0 %3583
      %v3585 = vsel %vm1324, %v3578, %v3580
      %v3586 = vsel %vm1324, %v3582, %v3584
      %v3591 = vsel %vm1324, %v3580, 0.0
      %v3592 = vsel %vm1324, %v3584, 0.0
      %vm3593 = vcmp.gt.f32.partialorder %v1319, 0.0
      %v3594 = vsel %vm3593, 1, 0
      %v3595 = vlaneseq
      %v3596 = vshrl.u32 %v3595, 7
      %v3597 = vsub.s32 0, %v3596
      %v3598 = vrot.slane %v3594, %v3597
      %v3599 = vlaneseq
      %v3600 = vshrl.u32 %v3599, 7
      %v3601 = vsub.s32 1, %v3600
      %v3602 = vrot.slane %v3594, %v3601
      %vm3603 = vcmp.eq.s32.totalorder %v3598, 1
      %vm3604 = vcmp.eq.s32.totalorder %v3602, 1
      %v3605 = vsel %vm3603, %v3585, -1e+30
      %v3606 = vsel %vm3604, %v3591, -1e+30
      %v3607 = vsel %vm3603, %v3586, -1e+30
      %v3608 = vsel %vm3604, %v3592, -1e+30
      %v3609 = vmax.f32 %v3573, %v3605
      %v3610 = vmax.f32 %v3574, %v3606
      %v3611 = vmax.f32 %v3575, %v3607
      %v3612 = vmax.f32 %v3576, %v3608
      %3613 = vrot.lane.b32.xlu0 %v495, 111
      %v3614 = vpop.permute.xlu0 %3613
      %3615 = vrot.lane.b32.xlu0 %v496, 111
      %v3616 = vpop.permute.xlu0 %3615
      %3617 = vrot.lane.b32.xlu0 %v497, 111
      %v3618 = vpop.permute.xlu0 %3617
      %3619 = vrot.lane.b32.xlu0 %v498, 111
      %v3620 = vpop.permute.xlu0 %3619
      %v3621 = vsel %vm1426, %v3614, %v3616
      %v3622 = vsel %vm1426, %v3618, %v3620
      %v3627 = vsel %vm1426, %v3616, 0.0
      %v3628 = vsel %vm1426, %v3620, 0.0
      %vm3629 = vcmp.gt.f32.partialorder %v1421, 0.0
      %v3630 = vsel %vm3629, 1, 0
      %v3631 = vlaneseq
      %v3632 = vshrl.u32 %v3631, 7
      %v3633 = vsub.s32 0, %v3632
      %v3634 = vrot.slane %v3630, %v3633
      %v3635 = vlaneseq
      %v3636 = vshrl.u32 %v3635, 7
      %v3637 = vsub.s32 1, %v3636
      %v3638 = vrot.slane %v3630, %v3637
      %vm3639 = vcmp.eq.s32.totalorder %v3634, 1
      %vm3640 = vcmp.eq.s32.totalorder %v3638, 1
      %v3641 = vsel %vm3639, %v3621, -1e+30
      %v3642 = vsel %vm3640, %v3627, -1e+30
      %v3643 = vsel %vm3639, %v3622, -1e+30
      %v3644 = vsel %vm3640, %v3628, -1e+30
      %v3645 = vmax.f32 %v3609, %v3641
      %v3646 = vmax.f32 %v3610, %v3642
      %v3647 = vmax.f32 %v3611, %v3643
      %v3648 = vmax.f32 %v3612, %v3644
      %3649 = vmatprep.subr.mxu0 0.0
      %3650 = vmatpush1.msra.mxu0 %v514
      %3651 = vmatprep.subr.mxu0 0.0
      %3652 = vmatpush1.msra.mxu0 %v513
      %3653 = vmatprep.subr.mxu0 0.0
      %3654 = vmatpush1.msra.mxu0 %v512
      %3655 = vmatprep.subr.mxu0 0.0
      %3656 = vmatpush1.msra.mxu0 %v511
      %3657 = vmatprep.subr.mxu0 0.0
      %3658 = vmatpush1.msra.mxu0 %v510
      %3659 = vmatprep.subr.mxu0 0.0
      %3660 = vmatpush1.msra.mxu0 %v509
      %3661 = vmatprep.subr.mxu0 0.0
      %3662 = vmatpush1.msra.mxu0 %v508
      %3663 = vmatprep.subr.mxu0 0.0
      %3664 = vmatpush1.msra.mxu0 %v507
      %3665 = vmatprep.subr.mxu0 0.0
      %3666 = vmatpush1.msra.mxu0 %v506
      %3667 = vmatprep.subr.mxu0 0.0
      %3668 = vmatpush1.msra.mxu0 %v505
      %3669 = vmatprep.subr.mxu0 0.0
      %3670 = vmatpush1.msra.mxu0 %v504
      %3671 = vmatprep.subr.mxu0 0.0
      %3672 = vmatpush1.msra.mxu0 %v503
      %3673 = vmatprep.subr.mxu0 0.0
      %3674 = vmatpush1.msra.mxu0 %v502
      %3675 = vmatprep.subr.mxu0 0.0
      %3676 = vmatpush1.msra.mxu0 %v501
      %3677 = vmatprep.subr.mxu0 0.0
      %3678 = vmatpush1.msra.mxu0 %v500
      %3679 = vmatprep.subr.mxu0 0.0
      %3680 = vmatpush1.msra.mxu0 %v499
      %3681 = vmatprep.subr.mxu0 0.0
      %3682 = vmatpush2.msra.mxu0 %v530
      %3683 = vmatprep.subr.mxu0 0.0
      %3684 = vmatpush2.msra.mxu0 %v529
      %3685 = vmatprep.subr.mxu0 0.0
      %3686 = vmatpush2.msra.mxu0 %v528
      %3687 = vmatprep.subr.mxu0 0.0
      %3688 = vmatpush2.msra.mxu0 %v527
      %3689 = vmatprep.subr.mxu0 0.0
      %3690 = vmatpush2.msra.mxu0 %v526
      %3691 = vmatprep.subr.mxu0 0.0
      %3692 = vmatpush2.msra.mxu0 %v525
      %3693 = vmatprep.subr.mxu0 0.0
      %3694 = vmatpush2.msra.mxu0 %v524
      %3695 = vmatprep.subr.mxu0 0.0
      %3696 = vmatpush2.msra.mxu0 %v523
      %3697 = vmatprep.subr.mxu0 0.0
      %3698 = vmatpush2.msra.mxu0 %v522
      %3699 = vmatprep.subr.mxu0 0.0
      %3700 = vmatpush2.msra.mxu0 %v521
      %3701 = vmatprep.subr.mxu0 0.0
      %3702 = vmatpush2.msra.mxu0 %v520
      %3703 = vmatprep.subr.mxu0 0.0
      %3704 = vmatpush2.msra.mxu0 %v519
      %3705 = vmatprep.subr.mxu0 0.0
      %3706 = vmatpush2.msra.mxu0 %v518
      %3707 = vmatprep.subr.mxu0 0.0
      %3708 = vmatpush2.msra.mxu0 %v517
      %3709 = vmatprep.subr.mxu0 0.0
      %3710 = vmatpush2.msra.mxu0 %v516
      %3711 = vmatprep.subr.mxu0 0.0
      %3712 = vmatpush2.msra.mxu0 %v515
      %3713 = vmatprep.mubr.f32.mxu0 %v3646
      %3714 = vmatmul.mubr.f32.gmra.mxu0 %v3645
      %v3715 = vpop.f32.mrf.mxu0
      %v3716 = vadd.f32 0.0, %v3715
      %v3717 = vpop.f32.mrf.mxu0
      %3718 = vmatprep.mubr.f32.mxu0 %v3648
      %3719 = vmatmul.mubr.f32.gmra.mxu0 %v3647
      %v3720 = vpop.f32.mrf.mxu0
      %v3721 = vadd.f32 0.0, %v3720
      %v3722 = vpop.f32.mrf.mxu0
      %3723 = vdwg.mxu0
      %v3724 = vld [vmem:[%s11] sm:$0xff]
      %v3725 = vld [vmem:[%s11 + $0x8] sm:$0xff]
      %v3726 = vld [vmem:[%s12] sm:$0xff]
      %v3727 = vld [vmem:[%s12 + $0x8] sm:$0xff]
      %3729 = vset.pattern.permute.xlu0 0
      %3730 = vperm.xlu0 %3729, %v3726
      %v3731 = vpop.permute.xlu0 %3730
      %3734 = vset.pattern.permute.xlu0 0
      %3735 = vperm.xlu0 %3734, %v3727
      %v3736 = vpop.permute.xlu0 %3735
      %v3739 = vsel %vm538, %v3724, 0
      %v3742 = vsel %vm538, %v3725, 0
      %3744 = vmatprep.subr.mxu0 0.0
      %3745 = vmatpush1.msra.mxu0 0.0
      %3746 = vmatprep.subr.mxu0 0.0
      %3747 = vmatpush1.msra.mxu0 0.0
      %3748 = vmatprep.subr.mxu0 0.0
      %3749 = vmatpush1.msra.mxu0 0.0
      %3750 = vmatprep.subr.mxu0 0.0
      %3751 = vmatpush1.msra.mxu0 0.0
      %3752 = vmatprep.subr.mxu0 0.0
      %3753 = vmatpush1.msra.mxu0 0.0
      %3754 = vmatprep.subr.mxu0 0.0
      %3755 = vmatpush1.msra.mxu0 0.0
      %3756 = vmatprep.subr.mxu0 0.0
      %3757 = vmatpush1.msra.mxu0 0.0
      %3758 = vmatprep.subr.mxu0 0.0
      %3759 = vmatpush1.msra.mxu0 0.0
      %3760 = vmatprep.subr.mxu0 0.0
      %3761 = vmatpush1.msra.mxu0 0.0
      %3762 = vmatprep.subr.mxu0 0.0
      %3763 = vmatpush1.msra.mxu0 0.0
      %3764 = vmatprep.subr.mxu0 0.0
      %3765 = vmatpush1.msra.mxu0 0.0
      %3766 = vmatprep.subr.mxu0 0.0
      %3767 = vmatpush1.msra.mxu0 0.0
      %3768 = vmatprep.subr.mxu0 0.0
      %3769 = vmatpush1.msra.mxu0 0.0
      %3770 = vmatprep.subr.mxu0 0.0
      %3771 = vmatpush1.msra.mxu0 0.0
      %3772 = vmatprep.subr.mxu0 0.0
      %3773 = vmatpush1.msra.mxu0 %v3721
      %3774 = vmatprep.subr.mxu0 0.0
      %3775 = vmatpush1.msra.mxu0 %v3716
      %3776 = vmatprep.subr.mxu0 0.0
      %3777 = vmatpush2.msra.mxu0 0.0
      %3778 = vmatprep.subr.mxu0 0.0
      %3779 = vmatpush2.msra.mxu0 0.0
      %3780 = vmatprep.subr.mxu0 0.0
      %3781 = vmatpush2.msra.mxu0 0.0
      %3782 = vmatprep.subr.mxu0 0.0
      %3783 = vmatpush2.msra.mxu0 0.0
      %3784 = vmatprep.subr.mxu0 0.0
      %3785 = vmatpush2.msra.mxu0 0.0
      %3786 = vmatprep.subr.mxu0 0.0
      %3787 = vmatpush2.msra.mxu0 0.0
      %3788 = vmatprep.subr.mxu0 0.0
      %3789 = vmatpush2.msra.mxu0 0.0
      %3790 = vmatprep.subr.mxu0 0.0
      %3791 = vmatpush2.msra.mxu0 0.0
      %3792 = vmatprep.subr.mxu0 0.0
      %3793 = vmatpush2.msra.mxu0 0.0
      %3794 = vmatprep.subr.mxu0 0.0
      %3795 = vmatpush2.msra.mxu0 0.0
      %3796 = vmatprep.subr.mxu0 0.0
      %3797 = vmatpush2.msra.mxu0 0.0
      %3798 = vmatprep.subr.mxu0 0.0
      %3799 = vmatpush2.msra.mxu0 0.0
      %3800 = vmatprep.subr.mxu0 0.0
      %3801 = vmatpush2.msra.mxu0 0.0
      %3802 = vmatprep.subr.mxu0 0.0
      %3803 = vmatpush2.msra.mxu0 0.0
      %3804 = vmatprep.subr.mxu0 0.0
      %3805 = vmatpush2.msra.mxu0 0.0
      %3806 = vmatprep.subr.mxu0 0.0
      %3807 = vmatpush2.msra.mxu0 0.0
      %3808 = vmatprep.mubr.f32.mxu0 0.0
      %3809 = vmatmul.mubr.f32.gmra.mxu0 %v3739
      %v3810 = vpop.f32.mrf.mxu0
      %v3811 = vadd.f32 %v3731, %v3810
      %v3812 = vpop.f32.mrf.mxu0
      %3813 = vmatprep.mubr.f32.mxu0 0.0
      %3814 = vmatmul.mubr.f32.gmra.mxu0 %v3742
      %v3815 = vpop.f32.mrf.mxu0
      %v3816 = vadd.f32 %v3736, %v3815
      %v3817 = vpop.f32.mrf.mxu0
      %3818 = vdwg.mxu0
      %v3819 = vmax.f32 %v3811, 0.0
      %v3820 = vmax.f32 %v3816, 0.0
      %v3821 = vmin.f32 %v3819, 6.0
      %v3822 = vmin.f32 %v3820, 6.0
      %vm3823 = vcmask 523264
      %3824 = vst.msk [vmem:[%s494] sm:$0xff] %vm3823, %v1599
      %3825 = vst.msk [vmem:[%s494 + $0x8] sm:$0xff] %vm3823, %v3336
      %3826 = vst.msk [vmem:[%s494 + $0x10] sm:$0xff] %vm3823, %v3821
      %3827 = vst.msk [vmem:[%s494 + $0x18] sm:$0xff] %vm3823, %v3822
      %p3828 = scmp.lt.s32.totalorder %s26, 1
      %s3829 = scalar_select %p3828, %s26, 1
      %s3830 = smul.addr %s3829, 4
      %s3831 = smul.addr %s3830, 8
      %s3832 = scalar_lea.vmem %s15, %s3831
      // Predicated region
      $region81: #{inception_b_forward.1} parent=79 // pred_check
        %p3833 = pneg %p364
      $region82: #{inception_b_forward.1} parent=79 // pred_check_branch
        %3835 = sbr.rel (%p3833) target = $region84
      $region83: #{inception_b_forward.1} parent=79 // pred_region
        _
      $region84: #{inception_b_forward.1} parent=79 // pred_fallthru
        _
    $region80: #{inception_b_forward.1} parent=5 // pred_fallthru
      _
    %p3836 = scmp.le.s32.totalorder 2, %s21
    // Predicated region
    $region85: #{inception_b_forward.1} parent=5 // pred_check
      %p3837 = pneg %p3836
    $region86: #{inception_b_forward.1} parent=5 // pred_check_branch
      %3839 = sbr.rel (%p3837) target = $region88
    $region87: #{inception_b_forward.1} parent=5 // pred_region
      %s3840 = ssub.s32 %s21, 2
      // Predicated region
      $region89: #{inception_b_forward.1} parent=87 // pred_check
        %p3841 = pneg %p370
      $region90: #{inception_b_forward.1} parent=87 // pred_check_branch
        %3843 = sbr.rel (%p3841) target = $region92
      $region91: #{inception_b_forward.1} parent=87 // pred_region
        %p3844 = scmp.lt.s32.totalorder %s27, 1
        %s3845 = scalar_select %p3844, %s27, 1
        %s3846 = smul.addr %s3845, 4
        %s3847 = smul.addr %s3846, 8
        %s3848 = scalar_lea.vmem %s15, %s3847
      $region92: #{inception_b_forward.1} parent=87 // pred_fallthru
        _
    $region88: #{inception_b_forward.1} parent=5 // pred_fallthru
      _
  $region6: #{inception_b_forward.1} parent=0 // loop_footer
    %s25 = sadd.s32 1, %s21
  $region7: #{inception_b_forward.1} parent=0 // loop_footer_branch
    %20 = sbr.rel target = $region3
  $region8: #{inception_b_forward.1} parent=0 // loop_exit
    _

</llo_original>
